<compile_context>
chip_gen: v6e
topology: v6e:2x2x1
jax: 0.10.0
libtpu: 0.0.40
codegen_flags: <defaults>
</compile_context>

<pallas_src>
import jax
import jax.numpy as jnp
from jax.experimental import pallas as pl
from jax.experimental.pallas import tpu as pltpu


# ---- static stage geometry ---------------------------------------------------
# Stage 1: 28x28 input zero-padded to 32x32 (row pitch 32), channels padded 3->8.
#   conv1 (k=5) valid 24x24 lives at flat lane 32*y + x; pool -> 12x12 at 64*py+2*px.
# Stage 2: conv2 (k=5) on the dilated 12x12 -> valid 8x8 at lane 64*y + 2*x;
#   pool -> 4x4 at lane 128*py + 4*px.
CIN1 = 8            # conv1 input channels padded 3 -> 8 (sublane-tile aligned)
C1 = 16             # conv1 output channels padded 10 -> 16
K1 = 25 * CIN1      # 200 : stacked-K of conv1 matmul
N1 = 768            # conv1 compute span (6 lane tiles; max valid index 23*32+23=759)
S1W = 728           # pooled1 span kept (max lane read by conv2 = 264 + 463 = 727)
K2 = 25 * C1        # 400 : stacked-K of conv2 matmul
N2 = 464            # conv2 compute span (max valid index 7*64+2*7 = 462)
P2W = 397           # pooled2 span (max valid lane 128*3+4*3 = 396)
NFEAT = 320


# ---------------- fused kernel (one batch element per grid step) ----------------

def _net_fused_kernel(x_ref, w1_ref, b1_ref, w2_ref, b2_ref, sel_ref,
                      wf1_ref, bf1_ref, wf2_ref, bf2_ref, o_ref,
                      im1_ref, im2_ref, f_ref):
    """Whole forward pass for one sample.

    x_ref : (8, 1024)   zero-padded input, row pitch 32, channels 3..7 == 0
    w1_ref: (16, 200)   conv1 weights, column 8*t + c  (t = 5*ki + kj)
    b1_ref: (16, 1)     conv1 bias (rows 10..15 == 0)
    w2_ref: (20, 400)   conv2 weights, column 16*t + c
    b2_ref: (20, 1)
    sel_ref:(397, 16)   selection matrix: lane 128*py+4*px -> feature 4*py+px
    wf1_ref:(320, 50), bf1_ref:(1, 50), wf2_ref:(50, 10), bf2_ref:(1, 10)
    o_ref : (1, 10)     log-probabilities
    im1_ref:(200, 768), im2_ref:(400, 464), f_ref:(1, 320)  VMEM scratch
    (scratches are fully overwritten every grid step -> no stale data).
    """
    # ---- conv1: build im2col in VMEM (aligned 8-row stores), ONE matmul ----
    xv = x_ref[...]                                            # (8, 1024)
    for ki in range(5):
        for kj in range(5):
            t = ki * 5 + kj
            off = ki * 32 + kj
            im1_ref[8 * t:8 * t + 8, :] = xv[:, off:off + N1]
    acc1 = jnp.dot(w1_ref[...], im1_ref[...],
                   preferred_element_type=jnp.float32)         # (16, 768)
    acc1 = jnp.maximum(acc1 + b1_ref[...], 0.0)                # bias + ReLU
    mx1 = jnp.maximum(acc1[:, 0:760], acc1[:, 1:761])          # pool along x
    p1 = jnp.maximum(mx1[:, 0:S1W], mx1[:, 32:32 + S1W])       # pool along y
    # p1: value (y, x) at lane 64*y + 2*x; rows 10..15 are exactly zero.

    # ---- conv2: im2col (aligned 16-row stores), ONE matmul ----
    for ki in range(5):
        for kj in range(5):
            t = ki * 5 + kj
            off = ki * 64 + kj * 2
            im2_ref[16 * t:16 * t + 16, :] = p1[:, off:off + N2]
    acc2 = jnp.dot(w2_ref[...], im2_ref[...],
                   preferred_element_type=jnp.float32)         # (20, 464)
    acc2 = jnp.maximum(acc2 + b2_ref[...], 0.0)                # bias + ReLU
    mx2 = jnp.maximum(acc2[:, 0:462], acc2[:, 2:464])          # pool along x
    p2 = jnp.maximum(mx2[:, 0:P2W], mx2[:, 64:64 + P2W])       # pool along y
    # p2: value (py, px) at lane 128*py + 4*px (other lanes finite garbage,
    # zero-weighted by sel_ref below).

    # ---- feature gather (strided lanes -> dense 16) via MXU, then flatten ----
    feat = jnp.dot(p2, sel_ref[...],
                   preferred_element_type=jnp.float32)         # (20, 16)
    for c in range(20):                                        # (c,16c..16c+15)
        f_ref[0:1, 16 * c:16 * c + 16] = feat[c:c + 1, :]      # PyTorch order

    # ---- MLP head: fc1 + ReLU + fc2 + log_softmax ----
    f = f_ref[...]                                             # (1, 320)
    h = jnp.dot(f, wf1_ref[...],
                preferred_element_type=jnp.float32) + bf1_ref[...]
    h = jnp.maximum(h, 0.0)
    z = jnp.dot(h, wf2_ref[...],
                preferred_element_type=jnp.float32) + bf2_ref[...]
    z = z - jnp.max(z, axis=-1, keepdims=True)
    o_ref[...] = z - jnp.log(jnp.sum(jnp.exp(z), axis=-1, keepdims=True))


# ---------------- pallas_call wrapper ----------------

def _net_fused_call(xp, prepped):
    (w1p, b1p, w2p, b2p, sel, wf1, bf1, wf2, bf2) = prepped
    B = xp.shape[0]
    flops = B * 2 * (C1 * K1 * N1 + 20 * K2 * N2 + 20 * P2W * 16
                     + NFEAT * 50 + 50 * 10)
    bytes_acc = (B * (CIN1 * 1024 + 10) * 4
                 + (C1 * K1 + C1 + 20 * K2 + 20 + P2W * 16
                    + NFEAT * 50 + 50 + 50 * 10 + 10) * 4)
    return pl.pallas_call(
        _net_fused_kernel,
        out_shape=jax.ShapeDtypeStruct((B, 1, 10), jnp.float32),
        grid=(B,),
        in_specs=[
            pl.BlockSpec((None, CIN1, 1024), lambda i: (i, 0, 0)),
            pl.BlockSpec((C1, K1), lambda i: (0, 0)),
            pl.BlockSpec((C1, 1), lambda i: (0, 0)),
            pl.BlockSpec((20, K2), lambda i: (0, 0)),
            pl.BlockSpec((20, 1), lambda i: (0, 0)),
            pl.BlockSpec((P2W, 16), lambda i: (0, 0)),
            pl.BlockSpec((NFEAT, 50), lambda i: (0, 0)),
            pl.BlockSpec((1, 50), lambda i: (0, 0)),
            pl.BlockSpec((50, 10), lambda i: (0, 0)),
            pl.BlockSpec((1, 10), lambda i: (0, 0)),
        ],
        out_specs=pl.BlockSpec((None, 1, 10), lambda i: (i, 0, 0)),
        scratch_shapes=[
            pltpu.VMEM((K1, N1), jnp.float32),    # im2col for conv1
            pltpu.VMEM((K2, N2), jnp.float32),    # im2col for conv2
            pltpu.VMEM((1, NFEAT), jnp.float32),  # flattened features
        ],
        compiler_params=pltpu.CompilerParams(
            dimension_semantics=("parallel",)),   # v7x: one sample per TC
        cost_estimate=pl.CostEstimate(flops=flops, transcendentals=B * 11,
                                      bytes_accessed=bytes_acc),
    )(xp, w1p, b1p, w2p, b2p, sel, wf1, bf1, wf2, bf2)


# ---------------- one-time parameter relayout (run OUTSIDE jit) ----------------

def prepare_params(params):
    """PyTorch layouts ((Cout,Cin,kh,kw) conv, (out,in) linear) -> kernel layouts."""
    w1, b1, w2, b2, fw1, fb1, fw2, fb2 = [jnp.asarray(p, jnp.float32)
                                          for p in params]
    # conv1 -> (16, 200): column 8*t + c holds W1[o, c, ki, kj] (t = 5*ki + kj);
    # padded input channels (c>=3) and padded output rows (o>=10) get zero weight.
    w1t = jnp.transpose(w1, (2, 3, 0, 1)).reshape(25, 10, 3)       # [t, o, c]
    w1t = jnp.pad(w1t, ((0, 0), (0, 0), (0, CIN1 - 3)))            # [t, o, 8]
    w1p = jnp.pad(jnp.transpose(w1t, (1, 0, 2)).reshape(10, K1),
                  ((0, C1 - 10), (0, 0)))                          # (16, 200)
    b1p = jnp.pad(b1, (0, C1 - 10)).reshape(C1, 1)                 # (16, 1)
    # conv2 -> (20, 400): column 16*t + c holds W2[o, c, ki, kj].
    w2t = jnp.transpose(w2, (2, 3, 0, 1)).reshape(25, 20, 10)      # [t, o, c]
    w2t = jnp.pad(w2t, ((0, 0), (0, 0), (0, C1 - 10)))             # [t, o, 16]
    w2p = jnp.transpose(w2t, (1, 0, 2)).reshape(20, K2)            # (20, 400)
    b2p = b2.reshape(20, 1)
    # Selection matrix: pooled2 lane 128*py + 4*px -> feature column 4*py + px.
    j = jnp.arange(16)
    lanes = 128 * (j // 4) + 4 * (j % 4)
    sel = (jnp.arange(P2W)[:, None] == lanes[None, :]).astype(jnp.float32)
    # fc layers: (out, in) -> (in, out); biases as row vectors.
    return (w1p, b1p, w2p, b2p, sel,
            fw1.T, fb1.reshape(1, 50), fw2.T, fb2.reshape(1, 10))


# ---------------- forward pass ----------------

def net_forward(x, prepped):
    """x: (B, 3, 28, 28) f32, NCHW. prepped: output of prepare_params()."""
    B = x.shape[0]
    # Zero-pad channels 3->8 and spatial 28x28 -> 32x32 (row pitch 32), flatten
    # spatial to lanes.  Single tiny XLA op; everything else is one pallas_call.
    xp = jnp.pad(x, ((0, 0), (0, CIN1 - 3), (0, 4), (0, 4))).reshape(B, CIN1, 1024)
    out = _net_fused_call(xp, prepped)                 # (B, 1, 10)
    return out.reshape(B, 10)                          # free metadata reshape


# ---------------- pure-JAX reference (for correctness check) ----------------

def net_reference(x, params):
    w1, b1, w2, b2, fw1, fb1, fw2, fb2 = params
    dn = ("NCHW", "OIHW", "NCHW")
    h = jax.lax.conv_general_dilated(x, w1, (1, 1), "VALID",
                                     dimension_numbers=dn,
                                     precision=jax.lax.Precision.HIGHEST)
    h = h + b1[None, :, None, None]
    h = jax.lax.reduce_window(h, -jnp.inf, jax.lax.max,
                              (1, 1, 2, 2), (1, 1, 2, 2), "VALID")
    h = jnp.maximum(h, 0.0)
    h = jax.lax.conv_general_dilated(h, w2, (1, 1), "VALID",
                                     dimension_numbers=dn,
                                     precision=jax.lax.Precision.HIGHEST)
    h = h + b2[None, :, None, None]
    h = jax.lax.reduce_window(h, -jnp.inf, jax.lax.max,
                              (1, 1, 2, 2), (1, 1, 2, 2), "VALID")
    h = jnp.maximum(h, 0.0)
    h = h.reshape(h.shape[0], 320)
    h = jnp.maximum(h @ fw1.T + fb1, 0.0)
    z = h @ fw2.T + fb2
    return jax.nn.log_softmax(z, axis=-1)


if __name__ == "__main__":
    key = jax.random.PRNGKey(0)
    keys = jax.random.split(key, 9)

    def uinit(k, shape, fan_in):
        bound = 1.0 / (fan_in ** 0.5)
        return jax.random.uniform(k, shape, jnp.float32, -bound, bound)

    # PyTorch-layout parameters (Conv2d: (Cout,Cin,kh,kw), Linear: (out,in)).
    params = (
        uinit(keys[0], (10, 3, 5, 5), 3 * 25),    # conv1.weight
        uinit(keys[1], (10,), 3 * 25),            # conv1.bias
        uinit(keys[2], (20, 10, 5, 5), 10 * 25),  # conv2.weight
        uinit(keys[3], (20,), 10 * 25),           # conv2.bias
        uinit(keys[4], (50, 320), 320),           # fc1.weight
        uinit(keys[5], (50,), 320),               # fc1.bias
        uinit(keys[6], (10, 50), 50),             # fc2.weight
        uinit(keys[7], (10,), 50),                # fc2.bias
    )

    x = jax.random.normal(keys[8], (2, 3, 28, 28), jnp.float32)

    prepped = prepare_params(params)              # one-time relayout, outside jit
    fwd = jax.jit(net_forward)
    out = fwd(x, prepped)
    jax.block_until_ready(out)

    assert out.shape == (2, 10)
    assert bool(jnp.all(jnp.isfinite(out)))
    # log_softmax rows should sum to ~1 in probability space
    assert bool(jnp.allclose(jnp.sum(jnp.exp(out), axis=1), 1.0, atol=1e-4))
    # match the pure-JAX reference of the PyTorch module.
    # 10x tighter than the previous 5e-2 (catches any layout/indexing regression);
    # the all-f32 MXU path keeps the real error orders of magnitude below this.
    ref = net_reference(x, params)
    assert bool(jnp.allclose(out, ref, atol=5e-3)), "mismatch vs reference"

    print("KERNEL_OK")
</pallas_src>

<mosaic_0001>
module attributes {stable_mosaic.version = 11 : i64} {
  func.func @_net_fused_kernel(%arg0: i32, %arg1: memref<1x8x1024xf32, #tpu.memory_space<vmem>>, %arg2: memref<16x200xf32, #tpu.memory_space<vmem>>, %arg3: memref<16x1xf32, #tpu.memory_space<vmem>>, %arg4: memref<20x400xf32, #tpu.memory_space<vmem>>, %arg5: memref<20x1xf32, #tpu.memory_space<vmem>>, %arg6: memref<397x16xf32, #tpu.memory_space<vmem>>, %arg7: memref<320x50xf32, #tpu.memory_space<vmem>>, %arg8: memref<1x50xf32, #tpu.memory_space<vmem>>, %arg9: memref<50x10xf32, #tpu.memory_space<vmem>>, %arg10: memref<1x10xf32, #tpu.memory_space<vmem>>, %arg11: memref<1x1x10xf32, #tpu.memory_space<vmem>>, %arg12: memref<200x768xf32, #tpu.memory_space<vmem>>, %arg13: memref<400x464xf32, #tpu.memory_space<vmem>>, %arg14: memref<1x320xf32, #tpu.memory_space<vmem>>) attributes {dimension_semantics = [#tpu.dimension_semantics<parallel>], iteration_bounds = array<i64: 2>, scalar_prefetch = 0 : i64, scratch_operands = 3 : i64, tpu.core_type = #tpu.core_type<tc>, window_params = [{transform_indices = @transform_0, window_bounds = array<i64: 1, 8, 1024>}, {pipeline_mode = #tpu.pipeline_mode<synchronous>, transform_indices = @transform_1, window_bounds = array<i64: 16, 200>}, {pipeline_mode = #tpu.pipeline_mode<synchronous>, transform_indices = @transform_2, window_bounds = array<i64: 16, 1>}, {pipeline_mode = #tpu.pipeline_mode<synchronous>, transform_indices = @transform_3, window_bounds = array<i64: 20, 400>}, {pipeline_mode = #tpu.pipeline_mode<synchronous>, transform_indices = @transform_4, window_bounds = array<i64: 20, 1>}, {pipeline_mode = #tpu.pipeline_mode<synchronous>, transform_indices = @transform_5, window_bounds = array<i64: 397, 16>}, {pipeline_mode = #tpu.pipeline_mode<synchronous>, transform_indices = @transform_6, window_bounds = array<i64: 320, 50>}, {pipeline_mode = #tpu.pipeline_mode<synchronous>, transform_indices = @transform_7, window_bounds = array<i64: 1, 50>}, {pipeline_mode = #tpu.pipeline_mode<synchronous>, transform_indices = @transform_8, window_bounds = array<i64: 50, 10>}, {pipeline_mode = #tpu.pipeline_mode<synchronous>, transform_indices = @transform_9, window_bounds = array<i64: 1, 10>}, {transform_indices = @transform_10, window_bounds = array<i64: 1, 1, 10>}]} {
    %c0 = arith.constant 0 : index
    %c0_0 = arith.constant 0 : index
    %c0_1 = arith.constant 0 : index
    %0 = vector.load %arg1[%c0, %c0_0, %c0_1] : memref<1x8x1024xf32, #tpu.memory_space<vmem>>, vector<1x8x1024xf32>
    %1 = vector.shape_cast %0 : vector<1x8x1024xf32> to vector<8x1024xf32>
    %2 = vector.extract_strided_slice %1 {offsets = [0, 0], sizes = [8, 768], strides = [1, 1]} : vector<8x1024xf32> to vector<8x768xf32>
    %c0_2 = arith.constant 0 : index
    %c0_3 = arith.constant 0 : index
    %3 = vector.load %arg12[%c0_2, %c0_3] : memref<200x768xf32, #tpu.memory_space<vmem>>, vector<8x768xf32>
    tpu.vector_store %arg12[%c0_2, %c0_3], %2 {strides = array<i32>} : memref<200x768xf32, #tpu.memory_space<vmem>>, vector<8x768xf32>,
    %4 = vector.extract_strided_slice %1 {offsets = [0, 1], sizes = [8, 768], strides = [1, 1]} : vector<8x1024xf32> to vector<8x768xf32>
    %c8 = arith.constant 8 : index
    %c0_4 = arith.constant 0 : index
    %5 = vector.load %arg12[%c8, %c0_4] : memref<200x768xf32, #tpu.memory_space<vmem>>, vector<8x768xf32>
    tpu.vector_store %arg12[%c8, %c0_4], %4 {strides = array<i32>} : memref<200x768xf32, #tpu.memory_space<vmem>>, vector<8x768xf32>,
    %6 = vector.extract_strided_slice %1 {offsets = [0, 2], sizes = [8, 768], strides = [1, 1]} : vector<8x1024xf32> to vector<8x768xf32>
    %c16 = arith.constant 16 : index
    %c0_5 = arith.constant 0 : index
    %7 = vector.load %arg12[%c16, %c0_5] : memref<200x768xf32, #tpu.memory_space<vmem>>, vector<8x768xf32>
    tpu.vector_store %arg12[%c16, %c0_5], %6 {strides = array<i32>} : memref<200x768xf32, #tpu.memory_space<vmem>>, vector<8x768xf32>,
    %8 = vector.extract_strided_slice %1 {offsets = [0, 3], sizes = [8, 768], strides = [1, 1]} : vector<8x1024xf32> to vector<8x768xf32>
    %c24 = arith.constant 24 : index
    %c0_6 = arith.constant 0 : index
    %9 = vector.load %arg12[%c24, %c0_6] : memref<200x768xf32, #tpu.memory_space<vmem>>, vector<8x768xf32>
    tpu.vector_store %arg12[%c24, %c0_6], %8 {strides = array<i32>} : memref<200x768xf32, #tpu.memory_space<vmem>>, vector<8x768xf32>,
    %10 = vector.extract_strided_slice %1 {offsets = [0, 4], sizes = [8, 768], strides = [1, 1]} : vector<8x1024xf32> to vector<8x768xf32>
    %c32 = arith.constant 32 : index
    %c0_7 = arith.constant 0 : index
    %11 = vector.load %arg12[%c32, %c0_7] : memref<200x768xf32, #tpu.memory_space<vmem>>, vector<8x768xf32>
    tpu.vector_store %arg12[%c32, %c0_7], %10 {strides = array<i32>} : memref<200x768xf32, #tpu.memory_space<vmem>>, vector<8x768xf32>,
    %12 = vector.extract_strided_slice %1 {offsets = [0, 32], sizes = [8, 768], strides = [1, 1]} : vector<8x1024xf32> to vector<8x768xf32>
    %c40 = arith.constant 40 : index
    %c0_8 = arith.constant 0 : index
    %13 = vector.load %arg12[%c40, %c0_8] : memref<200x768xf32, #tpu.memory_space<vmem>>, vector<8x768xf32>
    tpu.vector_store %arg12[%c40, %c0_8], %12 {strides = array<i32>} : memref<200x768xf32, #tpu.memory_space<vmem>>, vector<8x768xf32>,
    %14 = vector.extract_strided_slice %1 {offsets = [0, 33], sizes = [8, 768], strides = [1, 1]} : vector<8x1024xf32> to vector<8x768xf32>
    %c48 = arith.constant 48 : index
    %c0_9 = arith.constant 0 : index
    %15 = vector.load %arg12[%c48, %c0_9] : memref<200x768xf32, #tpu.memory_space<vmem>>, vector<8x768xf32>
    tpu.vector_store %arg12[%c48, %c0_9], %14 {strides = array<i32>} : memref<200x768xf32, #tpu.memory_space<vmem>>, vector<8x768xf32>,
    %16 = vector.extract_strided_slice %1 {offsets = [0, 34], sizes = [8, 768], strides = [1, 1]} : vector<8x1024xf32> to vector<8x768xf32>
    %c56 = arith.constant 56 : index
    %c0_10 = arith.constant 0 : index
    %17 = vector.load %arg12[%c56, %c0_10] : memref<200x768xf32, #tpu.memory_space<vmem>>, vector<8x768xf32>
    tpu.vector_store %arg12[%c56, %c0_10], %16 {strides = array<i32>} : memref<200x768xf32, #tpu.memory_space<vmem>>, vector<8x768xf32>,
    %18 = vector.extract_strided_slice %1 {offsets = [0, 35], sizes = [8, 768], strides = [1, 1]} : vector<8x1024xf32> to vector<8x768xf32>
    %c64 = arith.constant 64 : index
    %c0_11 = arith.constant 0 : index
    %19 = vector.load %arg12[%c64, %c0_11] : memref<200x768xf32, #tpu.memory_space<vmem>>, vector<8x768xf32>
    tpu.vector_store %arg12[%c64, %c0_11], %18 {strides = array<i32>} : memref<200x768xf32, #tpu.memory_space<vmem>>, vector<8x768xf32>,
    %20 = vector.extract_strided_slice %1 {offsets = [0, 36], sizes = [8, 768], strides = [1, 1]} : vector<8x1024xf32> to vector<8x768xf32>
    %c72 = arith.constant 72 : index
    %c0_12 = arith.constant 0 : index
    %21 = vector.load %arg12[%c72, %c0_12] : memref<200x768xf32, #tpu.memory_space<vmem>>, vector<8x768xf32>
    tpu.vector_store %arg12[%c72, %c0_12], %20 {strides = array<i32>} : memref<200x768xf32, #tpu.memory_space<vmem>>, vector<8x768xf32>,
    %22 = vector.extract_strided_slice %1 {offsets = [0, 64], sizes = [8, 768], strides = [1, 1]} : vector<8x1024xf32> to vector<8x768xf32>
    %c80 = arith.constant 80 : index
    %c0_13 = arith.constant 0 : index
    %23 = vector.load %arg12[%c80, %c0_13] : memref<200x768xf32, #tpu.memory_space<vmem>>, vector<8x768xf32>
    tpu.vector_store %arg12[%c80, %c0_13], %22 {strides = array<i32>} : memref<200x768xf32, #tpu.memory_space<vmem>>, vector<8x768xf32>,
    %24 = vector.extract_strided_slice %1 {offsets = [0, 65], sizes = [8, 768], strides = [1, 1]} : vector<8x1024xf32> to vector<8x768xf32>
    %c88 = arith.constant 88 : index
    %c0_14 = arith.constant 0 : index
    %25 = vector.load %arg12[%c88, %c0_14] : memref<200x768xf32, #tpu.memory_space<vmem>>, vector<8x768xf32>
    tpu.vector_store %arg12[%c88, %c0_14], %24 {strides = array<i32>} : memref<200x768xf32, #tpu.memory_space<vmem>>, vector<8x768xf32>,
    %26 = vector.extract_strided_slice %1 {offsets = [0, 66], sizes = [8, 768], strides = [1, 1]} : vector<8x1024xf32> to vector<8x768xf32>
    %c96 = arith.constant 96 : index
    %c0_15 = arith.constant 0 : index
    %27 = vector.load %arg12[%c96, %c0_15] : memref<200x768xf32, #tpu.memory_space<vmem>>, vector<8x768xf32>
    tpu.vector_store %arg12[%c96, %c0_15], %26 {strides = array<i32>} : memref<200x768xf32, #tpu.memory_space<vmem>>, vector<8x768xf32>,
    %28 = vector.extract_strided_slice %1 {offsets = [0, 67], sizes = [8, 768], strides = [1, 1]} : vector<8x1024xf32> to vector<8x768xf32>
    %c104 = arith.constant 104 : index
    %c0_16 = arith.constant 0 : index
    %29 = vector.load %arg12[%c104, %c0_16] : memref<200x768xf32, #tpu.memory_space<vmem>>, vector<8x768xf32>
    tpu.vector_store %arg12[%c104, %c0_16], %28 {strides = array<i32>} : memref<200x768xf32, #tpu.memory_space<vmem>>, vector<8x768xf32>,
    %30 = vector.extract_strided_slice %1 {offsets = [0, 68], sizes = [8, 768], strides = [1, 1]} : vector<8x1024xf32> to vector<8x768xf32>
    %c112 = arith.constant 112 : index
    %c0_17 = arith.constant 0 : index
    %31 = vector.load %arg12[%c112, %c0_17] : memref<200x768xf32, #tpu.memory_space<vmem>>, vector<8x768xf32>
    tpu.vector_store %arg12[%c112, %c0_17], %30 {strides = array<i32>} : memref<200x768xf32, #tpu.memory_space<vmem>>, vector<8x768xf32>,
    %32 = vector.extract_strided_slice %1 {offsets = [0, 96], sizes = [8, 768], strides = [1, 1]} : vector<8x1024xf32> to vector<8x768xf32>
    %c120 = arith.constant 120 : index
    %c0_18 = arith.constant 0 : index
    %33 = vector.load %arg12[%c120, %c0_18] : memref<200x768xf32, #tpu.memory_space<vmem>>, vector<8x768xf32>
    tpu.vector_store %arg12[%c120, %c0_18], %32 {strides = array<i32>} : memref<200x768xf32, #tpu.memory_space<vmem>>, vector<8x768xf32>,
    %34 = vector.extract_strided_slice %1 {offsets = [0, 97], sizes = [8, 768], strides = [1, 1]} : vector<8x1024xf32> to vector<8x768xf32>
    %c128 = arith.constant 128 : index
    %c0_19 = arith.constant 0 : index
    %35 = vector.load %arg12[%c128, %c0_19] : memref<200x768xf32, #tpu.memory_space<vmem>>, vector<8x768xf32>
    tpu.vector_store %arg12[%c128, %c0_19], %34 {strides = array<i32>} : memref<200x768xf32, #tpu.memory_space<vmem>>, vector<8x768xf32>,
    %36 = vector.extract_strided_slice %1 {offsets = [0, 98], sizes = [8, 768], strides = [1, 1]} : vector<8x1024xf32> to vector<8x768xf32>
    %c136 = arith.constant 136 : index
    %c0_20 = arith.constant 0 : index
    %37 = vector.load %arg12[%c136, %c0_20] : memref<200x768xf32, #tpu.memory_space<vmem>>, vector<8x768xf32>
    tpu.vector_store %arg12[%c136, %c0_20], %36 {strides = array<i32>} : memref<200x768xf32, #tpu.memory_space<vmem>>, vector<8x768xf32>,
    %38 = vector.extract_strided_slice %1 {offsets = [0, 99], sizes = [8, 768], strides = [1, 1]} : vector<8x1024xf32> to vector<8x768xf32>
    %c144 = arith.constant 144 : index
    %c0_21 = arith.constant 0 : index
    %39 = vector.load %arg12[%c144, %c0_21] : memref<200x768xf32, #tpu.memory_space<vmem>>, vector<8x768xf32>
    tpu.vector_store %arg12[%c144, %c0_21], %38 {strides = array<i32>} : memref<200x768xf32, #tpu.memory_space<vmem>>, vector<8x768xf32>,
    %40 = vector.extract_strided_slice %1 {offsets = [0, 100], sizes = [8, 768], strides = [1, 1]} : vector<8x1024xf32> to vector<8x768xf32>
    %c152 = arith.constant 152 : index
    %c0_22 = arith.constant 0 : index
    %41 = vector.load %arg12[%c152, %c0_22] : memref<200x768xf32, #tpu.memory_space<vmem>>, vector<8x768xf32>
    tpu.vector_store %arg12[%c152, %c0_22], %40 {strides = array<i32>} : memref<200x768xf32, #tpu.memory_space<vmem>>, vector<8x768xf32>,
    %42 = vector.extract_strided_slice %1 {offsets = [0, 128], sizes = [8, 768], strides = [1, 1]} : vector<8x1024xf32> to vector<8x768xf32>
    %c160 = arith.constant 160 : index
    %c0_23 = arith.constant 0 : index
    %43 = vector.load %arg12[%c160, %c0_23] : memref<200x768xf32, #tpu.memory_space<vmem>>, vector<8x768xf32>
    tpu.vector_store %arg12[%c160, %c0_23], %42 {strides = array<i32>} : memref<200x768xf32, #tpu.memory_space<vmem>>, vector<8x768xf32>,
    %44 = vector.extract_strided_slice %1 {offsets = [0, 129], sizes = [8, 768], strides = [1, 1]} : vector<8x1024xf32> to vector<8x768xf32>
    %c168 = arith.constant 168 : index
    %c0_24 = arith.constant 0 : index
    %45 = vector.load %arg12[%c168, %c0_24] : memref<200x768xf32, #tpu.memory_space<vmem>>, vector<8x768xf32>
    tpu.vector_store %arg12[%c168, %c0_24], %44 {strides = array<i32>} : memref<200x768xf32, #tpu.memory_space<vmem>>, vector<8x768xf32>,
    %46 = vector.extract_strided_slice %1 {offsets = [0, 130], sizes = [8, 768], strides = [1, 1]} : vector<8x1024xf32> to vector<8x768xf32>
    %c176 = arith.constant 176 : index
    %c0_25 = arith.constant 0 : index
    %47 = vector.load %arg12[%c176, %c0_25] : memref<200x768xf32, #tpu.memory_space<vmem>>, vector<8x768xf32>
    tpu.vector_store %arg12[%c176, %c0_25], %46 {strides = array<i32>} : memref<200x768xf32, #tpu.memory_space<vmem>>, vector<8x768xf32>,
    %48 = vector.extract_strided_slice %1 {offsets = [0, 131], sizes = [8, 768], strides = [1, 1]} : vector<8x1024xf32> to vector<8x768xf32>
    %c184 = arith.constant 184 : index
    %c0_26 = arith.constant 0 : index
    %49 = vector.load %arg12[%c184, %c0_26] : memref<200x768xf32, #tpu.memory_space<vmem>>, vector<8x768xf32>
    tpu.vector_store %arg12[%c184, %c0_26], %48 {strides = array<i32>} : memref<200x768xf32, #tpu.memory_space<vmem>>, vector<8x768xf32>,
    %50 = vector.extract_strided_slice %1 {offsets = [0, 132], sizes = [8, 768], strides = [1, 1]} : vector<8x1024xf32> to vector<8x768xf32>
    %c192 = arith.constant 192 : index
    %c0_27 = arith.constant 0 : index
    %51 = vector.load %arg12[%c192, %c0_27] : memref<200x768xf32, #tpu.memory_space<vmem>>, vector<8x768xf32>
    tpu.vector_store %arg12[%c192, %c0_27], %50 {strides = array<i32>} : memref<200x768xf32, #tpu.memory_space<vmem>>, vector<8x768xf32>,
    %c0_28 = arith.constant 0 : index
    %c0_29 = arith.constant 0 : index
    %52 = vector.load %arg2[%c0_28, %c0_29] : memref<16x200xf32, #tpu.memory_space<vmem>>, vector<16x200xf32>
    %c0_30 = arith.constant 0 : index
    %c0_31 = arith.constant 0 : index
    %53 = vector.load %arg12[%c0_30, %c0_31] : memref<200x768xf32, #tpu.memory_space<vmem>>, vector<200x768xf32>
    %cst = arith.constant dense<0.000000e+00> : vector<16x768xf32>
    %54 = tpu.matmul %52, %53, %cst {dimension_numbers = #tpu.dot_dimension_numbers<[1], [0], [0], [1], [0, 0, 1, 1], [], []>} : vector<16x200xf32>, vector<200x768xf32>, vector<16x768xf32> -> vector<16x768xf32>
    %c0_32 = arith.constant 0 : index
    %c0_33 = arith.constant 0 : index
    %55 = vector.load %arg3[%c0_32, %c0_33] : memref<16x1xf32, #tpu.memory_space<vmem>>, vector<16x1xf32>
    %56 = vector.broadcast %55 : vector<16x1xf32> to vector<16x768xf32>
    %57 = arith.addf %54, %56 : vector<16x768xf32>
    %cst_34 = arith.constant 0.000000e+00 : f32
    %58 = vector.broadcast %cst_34 : f32 to vector<16x768xf32>
    %59 = arith.maximumf %57, %58 : vector<16x768xf32>
    %60 = vector.extract_strided_slice %59 {offsets = [0, 0], sizes = [16, 760], strides = [1, 1]} : vector<16x768xf32> to vector<16x760xf32>
    %61 = vector.extract_strided_slice %59 {offsets = [0, 1], sizes = [16, 760], strides = [1, 1]} : vector<16x768xf32> to vector<16x760xf32>
    %62 = arith.maximumf %60, %61 : vector<16x760xf32>
    %63 = vector.extract_strided_slice %62 {offsets = [0, 0], sizes = [16, 728], strides = [1, 1]} : vector<16x760xf32> to vector<16x728xf32>
    %64 = vector.extract_strided_slice %62 {offsets = [0, 32], sizes = [16, 728], strides = [1, 1]} : vector<16x760xf32> to vector<16x728xf32>
    %65 = arith.maximumf %63, %64 : vector<16x728xf32>
    %66 = vector.extract_strided_slice %65 {offsets = [0, 0], sizes = [16, 464], strides = [1, 1]} : vector<16x728xf32> to vector<16x464xf32>
    %c0_35 = arith.constant 0 : index
    %c0_36 = arith.constant 0 : index
    %67 = vector.load %arg13[%c0_35, %c0_36] : memref<400x464xf32, #tpu.memory_space<vmem>>, vector<16x464xf32>
    tpu.vector_store %arg13[%c0_35, %c0_36], %66 {strides = array<i32>} : memref<400x464xf32, #tpu.memory_space<vmem>>, vector<16x464xf32>,
    %68 = vector.extract_strided_slice %65 {offsets = [0, 2], sizes = [16, 464], strides = [1, 1]} : vector<16x728xf32> to vector<16x464xf32>
    %c16_37 = arith.constant 16 : index
    %c0_38 = arith.constant 0 : index
    %69 = vector.load %arg13[%c16_37, %c0_38] : memref<400x464xf32, #tpu.memory_space<vmem>>, vector<16x464xf32>
    tpu.vector_store %arg13[%c16_37, %c0_38], %68 {strides = array<i32>} : memref<400x464xf32, #tpu.memory_space<vmem>>, vector<16x464xf32>,
    %70 = vector.extract_strided_slice %65 {offsets = [0, 4], sizes = [16, 464], strides = [1, 1]} : vector<16x728xf32> to vector<16x464xf32>
    %c32_39 = arith.constant 32 : index
    %c0_40 = arith.constant 0 : index
    %71 = vector.load %arg13[%c32_39, %c0_40] : memref<400x464xf32, #tpu.memory_space<vmem>>, vector<16x464xf32>
    tpu.vector_store %arg13[%c32_39, %c0_40], %70 {strides = array<i32>} : memref<400x464xf32, #tpu.memory_space<vmem>>, vector<16x464xf32>,
    %72 = vector.extract_strided_slice %65 {offsets = [0, 6], sizes = [16, 464], strides = [1, 1]} : vector<16x728xf32> to vector<16x464xf32>
    %c48_41 = arith.constant 48 : index
    %c0_42 = arith.constant 0 : index
    %73 = vector.load %arg13[%c48_41, %c0_42] : memref<400x464xf32, #tpu.memory_space<vmem>>, vector<16x464xf32>
    tpu.vector_store %arg13[%c48_41, %c0_42], %72 {strides = array<i32>} : memref<400x464xf32, #tpu.memory_space<vmem>>, vector<16x464xf32>,
    %74 = vector.extract_strided_slice %65 {offsets = [0, 8], sizes = [16, 464], strides = [1, 1]} : vector<16x728xf32> to vector<16x464xf32>
    %c64_43 = arith.constant 64 : index
    %c0_44 = arith.constant 0 : index
    %75 = vector.load %arg13[%c64_43, %c0_44] : memref<400x464xf32, #tpu.memory_space<vmem>>, vector<16x464xf32>
    tpu.vector_store %arg13[%c64_43, %c0_44], %74 {strides = array<i32>} : memref<400x464xf32, #tpu.memory_space<vmem>>, vector<16x464xf32>,
    %76 = vector.extract_strided_slice %65 {offsets = [0, 64], sizes = [16, 464], strides = [1, 1]} : vector<16x728xf32> to vector<16x464xf32>
    %c80_45 = arith.constant 80 : index
    %c0_46 = arith.constant 0 : index
    %77 = vector.load %arg13[%c80_45, %c0_46] : memref<400x464xf32, #tpu.memory_space<vmem>>, vector<16x464xf32>
    tpu.vector_store %arg13[%c80_45, %c0_46], %76 {strides = array<i32>} : memref<400x464xf32, #tpu.memory_space<vmem>>, vector<16x464xf32>,
    %78 = vector.extract_strided_slice %65 {offsets = [0, 66], sizes = [16, 464], strides = [1, 1]} : vector<16x728xf32> to vector<16x464xf32>
    %c96_47 = arith.constant 96 : index
    %c0_48 = arith.constant 0 : index
    %79 = vector.load %arg13[%c96_47, %c0_48] : memref<400x464xf32, #tpu.memory_space<vmem>>, vector<16x464xf32>
    tpu.vector_store %arg13[%c96_47, %c0_48], %78 {strides = array<i32>} : memref<400x464xf32, #tpu.memory_space<vmem>>, vector<16x464xf32>,
    %80 = vector.extract_strided_slice %65 {offsets = [0, 68], sizes = [16, 464], strides = [1, 1]} : vector<16x728xf32> to vector<16x464xf32>
    %c112_49 = arith.constant 112 : index
    %c0_50 = arith.constant 0 : index
    %81 = vector.load %arg13[%c112_49, %c0_50] : memref<400x464xf32, #tpu.memory_space<vmem>>, vector<16x464xf32>
    tpu.vector_store %arg13[%c112_49, %c0_50], %80 {strides = array<i32>} : memref<400x464xf32, #tpu.memory_space<vmem>>, vector<16x464xf32>,
    %82 = vector.extract_strided_slice %65 {offsets = [0, 70], sizes = [16, 464], strides = [1, 1]} : vector<16x728xf32> to vector<16x464xf32>
    %c128_51 = arith.constant 128 : index
    %c0_52 = arith.constant 0 : index
    %83 = vector.load %arg13[%c128_51, %c0_52] : memref<400x464xf32, #tpu.memory_space<vmem>>, vector<16x464xf32>
    tpu.vector_store %arg13[%c128_51, %c0_52], %82 {strides = array<i32>} : memref<400x464xf32, #tpu.memory_space<vmem>>, vector<16x464xf32>,
    %84 = vector.extract_strided_slice %65 {offsets = [0, 72], sizes = [16, 464], strides = [1, 1]} : vector<16x728xf32> to vector<16x464xf32>
    %c144_53 = arith.constant 144 : index
    %c0_54 = arith.constant 0 : index
    %85 = vector.load %arg13[%c144_53, %c0_54] : memref<400x464xf32, #tpu.memory_space<vmem>>, vector<16x464xf32>
    tpu.vector_store %arg13[%c144_53, %c0_54], %84 {strides = array<i32>} : memref<400x464xf32, #tpu.memory_space<vmem>>, vector<16x464xf32>,
    %86 = vector.extract_strided_slice %65 {offsets = [0, 128], sizes = [16, 464], strides = [1, 1]} : vector<16x728xf32> to vector<16x464xf32>
    %c160_55 = arith.constant 160 : index
    %c0_56 = arith.constant 0 : index
    %87 = vector.load %arg13[%c160_55, %c0_56] : memref<400x464xf32, #tpu.memory_space<vmem>>, vector<16x464xf32>
    tpu.vector_store %arg13[%c160_55, %c0_56], %86 {strides = array<i32>} : memref<400x464xf32, #tpu.memory_space<vmem>>, vector<16x464xf32>,
    %88 = vector.extract_strided_slice %65 {offsets = [0, 130], sizes = [16, 464], strides = [1, 1]} : vector<16x728xf32> to vector<16x464xf32>
    %c176_57 = arith.constant 176 : index
    %c0_58 = arith.constant 0 : index
    %89 = vector.load %arg13[%c176_57, %c0_58] : memref<400x464xf32, #tpu.memory_space<vmem>>, vector<16x464xf32>
    tpu.vector_store %arg13[%c176_57, %c0_58], %88 {strides = array<i32>} : memref<400x464xf32, #tpu.memory_space<vmem>>, vector<16x464xf32>,
    %90 = vector.extract_strided_slice %65 {offsets = [0, 132], sizes = [16, 464], strides = [1, 1]} : vector<16x728xf32> to vector<16x464xf32>
    %c192_59 = arith.constant 192 : index
    %c0_60 = arith.constant 0 : index
    %91 = vector.load %arg13[%c192_59, %c0_60] : memref<400x464xf32, #tpu.memory_space<vmem>>, vector<16x464xf32>
    tpu.vector_store %arg13[%c192_59, %c0_60], %90 {strides = array<i32>} : memref<400x464xf32, #tpu.memory_space<vmem>>, vector<16x464xf32>,
    %92 = vector.extract_strided_slice %65 {offsets = [0, 134], sizes = [16, 464], strides = [1, 1]} : vector<16x728xf32> to vector<16x464xf32>
    %c208 = arith.constant 208 : index
    %c0_61 = arith.constant 0 : index
    %93 = vector.load %arg13[%c208, %c0_61] : memref<400x464xf32, #tpu.memory_space<vmem>>, vector<16x464xf32>
    tpu.vector_store %arg13[%c208, %c0_61], %92 {strides = array<i32>} : memref<400x464xf32, #tpu.memory_space<vmem>>, vector<16x464xf32>,
    %94 = vector.extract_strided_slice %65 {offsets = [0, 136], sizes = [16, 464], strides = [1, 1]} : vector<16x728xf32> to vector<16x464xf32>
    %c224 = arith.constant 224 : index
    %c0_62 = arith.constant 0 : index
    %95 = vector.load %arg13[%c224, %c0_62] : memref<400x464xf32, #tpu.memory_space<vmem>>, vector<16x464xf32>
    tpu.vector_store %arg13[%c224, %c0_62], %94 {strides = array<i32>} : memref<400x464xf32, #tpu.memory_space<vmem>>, vector<16x464xf32>,
    %96 = vector.extract_strided_slice %65 {offsets = [0, 192], sizes = [16, 464], strides = [1, 1]} : vector<16x728xf32> to vector<16x464xf32>
    %c240 = arith.constant 240 : index
    %c0_63 = arith.constant 0 : index
    %97 = vector.load %arg13[%c240, %c0_63] : memref<400x464xf32, #tpu.memory_space<vmem>>, vector<16x464xf32>
    tpu.vector_store %arg13[%c240, %c0_63], %96 {strides = array<i32>} : memref<400x464xf32, #tpu.memory_space<vmem>>, vector<16x464xf32>,
    %98 = vector.extract_strided_slice %65 {offsets = [0, 194], sizes = [16, 464], strides = [1, 1]} : vector<16x728xf32> to vector<16x464xf32>
    %c256 = arith.constant 256 : index
    %c0_64 = arith.constant 0 : index
    %99 = vector.load %arg13[%c256, %c0_64] : memref<400x464xf32, #tpu.memory_space<vmem>>, vector<16x464xf32>
    tpu.vector_store %arg13[%c256, %c0_64], %98 {strides = array<i32>} : memref<400x464xf32, #tpu.memory_space<vmem>>, vector<16x464xf32>,
    %100 = vector.extract_strided_slice %65 {offsets = [0, 196], sizes = [16, 464], strides = [1, 1]} : vector<16x728xf32> to vector<16x464xf32>
    %c272 = arith.constant 272 : index
    %c0_65 = arith.constant 0 : index
    %101 = vector.load %arg13[%c272, %c0_65] : memref<400x464xf32, #tpu.memory_space<vmem>>, vector<16x464xf32>
    tpu.vector_store %arg13[%c272, %c0_65], %100 {strides = array<i32>} : memref<400x464xf32, #tpu.memory_space<vmem>>, vector<16x464xf32>,
    %102 = vector.extract_strided_slice %65 {offsets = [0, 198], sizes = [16, 464], strides = [1, 1]} : vector<16x728xf32> to vector<16x464xf32>
    %c288 = arith.constant 288 : index
    %c0_66 = arith.constant 0 : index
    %103 = vector.load %arg13[%c288, %c0_66] : memref<400x464xf32, #tpu.memory_space<vmem>>, vector<16x464xf32>
    tpu.vector_store %arg13[%c288, %c0_66], %102 {strides = array<i32>} : memref<400x464xf32, #tpu.memory_space<vmem>>, vector<16x464xf32>,
    %104 = vector.extract_strided_slice %65 {offsets = [0, 200], sizes = [16, 464], strides = [1, 1]} : vector<16x728xf32> to vector<16x464xf32>
    %c304 = arith.constant 304 : index
    %c0_67 = arith.constant 0 : index
    %105 = vector.load %arg13[%c304, %c0_67] : memref<400x464xf32, #tpu.memory_space<vmem>>, vector<16x464xf32>
    tpu.vector_store %arg13[%c304, %c0_67], %104 {strides = array<i32>} : memref<400x464xf32, #tpu.memory_space<vmem>>, vector<16x464xf32>,
    %106 = vector.extract_strided_slice %65 {offsets = [0, 256], sizes = [16, 464], strides = [1, 1]} : vector<16x728xf32> to vector<16x464xf32>
    %c320 = arith.constant 320 : index
    %c0_68 = arith.constant 0 : index
    %107 = vector.load %arg13[%c320, %c0_68] : memref<400x464xf32, #tpu.memory_space<vmem>>, vector<16x464xf32>
    tpu.vector_store %arg13[%c320, %c0_68], %106 {strides = array<i32>} : memref<400x464xf32, #tpu.memory_space<vmem>>, vector<16x464xf32>,
    %108 = vector.extract_strided_slice %65 {offsets = [0, 258], sizes = [16, 464], strides = [1, 1]} : vector<16x728xf32> to vector<16x464xf32>
    %c336 = arith.constant 336 : index
    %c0_69 = arith.constant 0 : index
    %109 = vector.load %arg13[%c336, %c0_69] : memref<400x464xf32, #tpu.memory_space<vmem>>, vector<16x464xf32>
    tpu.vector_store %arg13[%c336, %c0_69], %108 {strides = array<i32>} : memref<400x464xf32, #tpu.memory_space<vmem>>, vector<16x464xf32>,
    %110 = vector.extract_strided_slice %65 {offsets = [0, 260], sizes = [16, 464], strides = [1, 1]} : vector<16x728xf32> to vector<16x464xf32>
    %c352 = arith.constant 352 : index
    %c0_70 = arith.constant 0 : index
    %111 = vector.load %arg13[%c352, %c0_70] : memref<400x464xf32, #tpu.memory_space<vmem>>, vector<16x464xf32>
    tpu.vector_store %arg13[%c352, %c0_70], %110 {strides = array<i32>} : memref<400x464xf32, #tpu.memory_space<vmem>>, vector<16x464xf32>,
    %112 = vector.extract_strided_slice %65 {offsets = [0, 262], sizes = [16, 464], strides = [1, 1]} : vector<16x728xf32> to vector<16x464xf32>
    %c368 = arith.constant 368 : index
    %c0_71 = arith.constant 0 : index
    %113 = vector.load %arg13[%c368, %c0_71] : memref<400x464xf32, #tpu.memory_space<vmem>>, vector<16x464xf32>
    tpu.vector_store %arg13[%c368, %c0_71], %112 {strides = array<i32>} : memref<400x464xf32, #tpu.memory_space<vmem>>, vector<16x464xf32>,
    %114 = vector.extract_strided_slice %65 {offsets = [0, 264], sizes = [16, 464], strides = [1, 1]} : vector<16x728xf32> to vector<16x464xf32>
    %c384 = arith.constant 384 : index
    %c0_72 = arith.constant 0 : index
    %115 = vector.load %arg13[%c384, %c0_72] : memref<400x464xf32, #tpu.memory_space<vmem>>, vector<16x464xf32>
    tpu.vector_store %arg13[%c384, %c0_72], %114 {strides = array<i32>} : memref<400x464xf32, #tpu.memory_space<vmem>>, vector<16x464xf32>,
    %c0_73 = arith.constant 0 : index
    %c0_74 = arith.constant 0 : index
    %116 = vector.load %arg4[%c0_73, %c0_74] : memref<20x400xf32, #tpu.memory_space<vmem>>, vector<20x400xf32>
    %c0_75 = arith.constant 0 : index
    %c0_76 = arith.constant 0 : index
    %117 = vector.load %arg13[%c0_75, %c0_76] : memref<400x464xf32, #tpu.memory_space<vmem>>, vector<400x464xf32>
    %cst_77 = arith.constant dense<0.000000e+00> : vector<20x464xf32>
    %118 = tpu.matmul %116, %117, %cst_77 {dimension_numbers = #tpu.dot_dimension_numbers<[1], [0], [0], [1], [0, 0, 1, 1], [], []>} : vector<20x400xf32>, vector<400x464xf32>, vector<20x464xf32> -> vector<20x464xf32>
    %c0_78 = arith.constant 0 : index
    %c0_79 = arith.constant 0 : index
    %119 = vector.load %arg5[%c0_78, %c0_79] : memref<20x1xf32, #tpu.memory_space<vmem>>, vector<20x1xf32>
    %120 = vector.broadcast %119 : vector<20x1xf32> to vector<20x464xf32>
    %121 = arith.addf %118, %120 : vector<20x464xf32>
    %cst_80 = arith.constant 0.000000e+00 : f32
    %122 = vector.broadcast %cst_80 : f32 to vector<20x464xf32>
    %123 = arith.maximumf %121, %122 : vector<20x464xf32>
    %124 = vector.extract_strided_slice %123 {offsets = [0, 0], sizes = [20, 462], strides = [1, 1]} : vector<20x464xf32> to vector<20x462xf32>
    %125 = vector.extract_strided_slice %123 {offsets = [0, 2], sizes = [20, 462], strides = [1, 1]} : vector<20x464xf32> to vector<20x462xf32>
    %126 = arith.maximumf %124, %125 : vector<20x462xf32>
    %127 = vector.extract_strided_slice %126 {offsets = [0, 0], sizes = [20, 397], strides = [1, 1]} : vector<20x462xf32> to vector<20x397xf32>
    %128 = vector.extract_strided_slice %126 {offsets = [0, 64], sizes = [20, 397], strides = [1, 1]} : vector<20x462xf32> to vector<20x397xf32>
    %129 = arith.maximumf %127, %128 : vector<20x397xf32>
    %c0_81 = arith.constant 0 : index
    %c0_82 = arith.constant 0 : index
    %130 = vector.load %arg6[%c0_81, %c0_82] : memref<397x16xf32, #tpu.memory_space<vmem>>, vector<397x16xf32>
    %cst_83 = arith.constant dense<0.000000e+00> : vector<20x16xf32>
    %131 = tpu.matmul %129, %130, %cst_83 {dimension_numbers = #tpu.dot_dimension_numbers<[1], [0], [0], [1], [0, 0, 1, 1], [], []>} : vector<20x397xf32>, vector<397x16xf32>, vector<20x16xf32> -> vector<20x16xf32>
    %132 = vector.extract_strided_slice %131 {offsets = [0, 0], sizes = [1, 16], strides = [1, 1]} : vector<20x16xf32> to vector<1x16xf32>
    %c0_84 = arith.constant 0 : index
    %c0_85 = arith.constant 0 : index
    %133 = vector.load %arg14[%c0_84, %c0_85] : memref<1x320xf32, #tpu.memory_space<vmem>>, vector<1x16xf32>
    tpu.vector_store %arg14[%c0_84, %c0_85], %132 {strides = array<i32>} : memref<1x320xf32, #tpu.memory_space<vmem>>, vector<1x16xf32>,
    %134 = vector.extract_strided_slice %131 {offsets = [1, 0], sizes = [1, 16], strides = [1, 1]} : vector<20x16xf32> to vector<1x16xf32>
    %c0_86 = arith.constant 0 : index
    %c16_87 = arith.constant 16 : index
    %135 = vector.load %arg14[%c0_86, %c16_87] : memref<1x320xf32, #tpu.memory_space<vmem>>, vector<1x16xf32>
    tpu.vector_store %arg14[%c0_86, %c16_87], %134 {strides = array<i32>} : memref<1x320xf32, #tpu.memory_space<vmem>>, vector<1x16xf32>,
    %136 = vector.extract_strided_slice %131 {offsets = [2, 0], sizes = [1, 16], strides = [1, 1]} : vector<20x16xf32> to vector<1x16xf32>
    %c0_88 = arith.constant 0 : index
    %c32_89 = arith.constant 32 : index
    %137 = vector.load %arg14[%c0_88, %c32_89] : memref<1x320xf32, #tpu.memory_space<vmem>>, vector<1x16xf32>
    tpu.vector_store %arg14[%c0_88, %c32_89], %136 {strides = array<i32>} : memref<1x320xf32, #tpu.memory_space<vmem>>, vector<1x16xf32>,
    %138 = vector.extract_strided_slice %131 {offsets = [3, 0], sizes = [1, 16], strides = [1, 1]} : vector<20x16xf32> to vector<1x16xf32>
    %c0_90 = arith.constant 0 : index
    %c48_91 = arith.constant 48 : index
    %139 = vector.load %arg14[%c0_90, %c48_91] : memref<1x320xf32, #tpu.memory_space<vmem>>, vector<1x16xf32>
    tpu.vector_store %arg14[%c0_90, %c48_91], %138 {strides = array<i32>} : memref<1x320xf32, #tpu.memory_space<vmem>>, vector<1x16xf32>,
    %140 = vector.extract_strided_slice %131 {offsets = [4, 0], sizes = [1, 16], strides = [1, 1]} : vector<20x16xf32> to vector<1x16xf32>
    %c0_92 = arith.constant 0 : index
    %c64_93 = arith.constant 64 : index
    %141 = vector.load %arg14[%c0_92, %c64_93] : memref<1x320xf32, #tpu.memory_space<vmem>>, vector<1x16xf32>
    tpu.vector_store %arg14[%c0_92, %c64_93], %140 {strides = array<i32>} : memref<1x320xf32, #tpu.memory_space<vmem>>, vector<1x16xf32>,
    %142 = vector.extract_strided_slice %131 {offsets = [5, 0], sizes = [1, 16], strides = [1, 1]} : vector<20x16xf32> to vector<1x16xf32>
    %c0_94 = arith.constant 0 : index
    %c80_95 = arith.constant 80 : index
    %143 = vector.load %arg14[%c0_94, %c80_95] : memref<1x320xf32, #tpu.memory_space<vmem>>, vector<1x16xf32>
    tpu.vector_store %arg14[%c0_94, %c80_95], %142 {strides = array<i32>} : memref<1x320xf32, #tpu.memory_space<vmem>>, vector<1x16xf32>,
    %144 = vector.extract_strided_slice %131 {offsets = [6, 0], sizes = [1, 16], strides = [1, 1]} : vector<20x16xf32> to vector<1x16xf32>
    %c0_96 = arith.constant 0 : index
    %c96_97 = arith.constant 96 : index
    %145 = vector.load %arg14[%c0_96, %c96_97] : memref<1x320xf32, #tpu.memory_space<vmem>>, vector<1x16xf32>
    tpu.vector_store %arg14[%c0_96, %c96_97], %144 {strides = array<i32>} : memref<1x320xf32, #tpu.memory_space<vmem>>, vector<1x16xf32>,
    %146 = vector.extract_strided_slice %131 {offsets = [7, 0], sizes = [1, 16], strides = [1, 1]} : vector<20x16xf32> to vector<1x16xf32>
    %c0_98 = arith.constant 0 : index
    %c112_99 = arith.constant 112 : index
    %147 = vector.load %arg14[%c0_98, %c112_99] : memref<1x320xf32, #tpu.memory_space<vmem>>, vector<1x16xf32>
    tpu.vector_store %arg14[%c0_98, %c112_99], %146 {strides = array<i32>} : memref<1x320xf32, #tpu.memory_space<vmem>>, vector<1x16xf32>,
    %148 = vector.extract_strided_slice %131 {offsets = [8, 0], sizes = [1, 16], strides = [1, 1]} : vector<20x16xf32> to vector<1x16xf32>
    %c0_100 = arith.constant 0 : index
    %c128_101 = arith.constant 128 : index
    %149 = vector.load %arg14[%c0_100, %c128_101] : memref<1x320xf32, #tpu.memory_space<vmem>>, vector<1x16xf32>
    tpu.vector_store %arg14[%c0_100, %c128_101], %148 {strides = array<i32>} : memref<1x320xf32, #tpu.memory_space<vmem>>, vector<1x16xf32>,
    %150 = vector.extract_strided_slice %131 {offsets = [9, 0], sizes = [1, 16], strides = [1, 1]} : vector<20x16xf32> to vector<1x16xf32>
    %c0_102 = arith.constant 0 : index
    %c144_103 = arith.constant 144 : index
    %151 = vector.load %arg14[%c0_102, %c144_103] : memref<1x320xf32, #tpu.memory_space<vmem>>, vector<1x16xf32>
    tpu.vector_store %arg14[%c0_102, %c144_103], %150 {strides = array<i32>} : memref<1x320xf32, #tpu.memory_space<vmem>>, vector<1x16xf32>,
    %152 = vector.extract_strided_slice %131 {offsets = [10, 0], sizes = [1, 16], strides = [1, 1]} : vector<20x16xf32> to vector<1x16xf32>
    %c0_104 = arith.constant 0 : index
    %c160_105 = arith.constant 160 : index
    %153 = vector.load %arg14[%c0_104, %c160_105] : memref<1x320xf32, #tpu.memory_space<vmem>>, vector<1x16xf32>
    tpu.vector_store %arg14[%c0_104, %c160_105], %152 {strides = array<i32>} : memref<1x320xf32, #tpu.memory_space<vmem>>, vector<1x16xf32>,
    %154 = vector.extract_strided_slice %131 {offsets = [11, 0], sizes = [1, 16], strides = [1, 1]} : vector<20x16xf32> to vector<1x16xf32>
    %c0_106 = arith.constant 0 : index
    %c176_107 = arith.constant 176 : index
    %155 = vector.load %arg14[%c0_106, %c176_107] : memref<1x320xf32, #tpu.memory_space<vmem>>, vector<1x16xf32>
    tpu.vector_store %arg14[%c0_106, %c176_107], %154 {strides = array<i32>} : memref<1x320xf32, #tpu.memory_space<vmem>>, vector<1x16xf32>,
    %156 = vector.extract_strided_slice %131 {offsets = [12, 0], sizes = [1, 16], strides = [1, 1]} : vector<20x16xf32> to vector<1x16xf32>
    %c0_108 = arith.constant 0 : index
    %c192_109 = arith.constant 192 : index
    %157 = vector.load %arg14[%c0_108, %c192_109] : memref<1x320xf32, #tpu.memory_space<vmem>>, vector<1x16xf32>
    tpu.vector_store %arg14[%c0_108, %c192_109], %156 {strides = array<i32>} : memref<1x320xf32, #tpu.memory_space<vmem>>, vector<1x16xf32>,
    %158 = vector.extract_strided_slice %131 {offsets = [13, 0], sizes = [1, 16], strides = [1, 1]} : vector<20x16xf32> to vector<1x16xf32>
    %c0_110 = arith.constant 0 : index
    %c208_111 = arith.constant 208 : index
    %159 = vector.load %arg14[%c0_110, %c208_111] : memref<1x320xf32, #tpu.memory_space<vmem>>, vector<1x16xf32>
    tpu.vector_store %arg14[%c0_110, %c208_111], %158 {strides = array<i32>} : memref<1x320xf32, #tpu.memory_space<vmem>>, vector<1x16xf32>,
    %160 = vector.extract_strided_slice %131 {offsets = [14, 0], sizes = [1, 16], strides = [1, 1]} : vector<20x16xf32> to vector<1x16xf32>
    %c0_112 = arith.constant 0 : index
    %c224_113 = arith.constant 224 : index
    %161 = vector.load %arg14[%c0_112, %c224_113] : memref<1x320xf32, #tpu.memory_space<vmem>>, vector<1x16xf32>
    tpu.vector_store %arg14[%c0_112, %c224_113], %160 {strides = array<i32>} : memref<1x320xf32, #tpu.memory_space<vmem>>, vector<1x16xf32>,
    %162 = vector.extract_strided_slice %131 {offsets = [15, 0], sizes = [1, 16], strides = [1, 1]} : vector<20x16xf32> to vector<1x16xf32>
    %c0_114 = arith.constant 0 : index
    %c240_115 = arith.constant 240 : index
    %163 = vector.load %arg14[%c0_114, %c240_115] : memref<1x320xf32, #tpu.memory_space<vmem>>, vector<1x16xf32>
    tpu.vector_store %arg14[%c0_114, %c240_115], %162 {strides = array<i32>} : memref<1x320xf32, #tpu.memory_space<vmem>>, vector<1x16xf32>,
    %164 = vector.extract_strided_slice %131 {offsets = [16, 0], sizes = [1, 16], strides = [1, 1]} : vector<20x16xf32> to vector<1x16xf32>
    %c0_116 = arith.constant 0 : index
    %c256_117 = arith.constant 256 : index
    %165 = vector.load %arg14[%c0_116, %c256_117] : memref<1x320xf32, #tpu.memory_space<vmem>>, vector<1x16xf32>
    tpu.vector_store %arg14[%c0_116, %c256_117], %164 {strides = array<i32>} : memref<1x320xf32, #tpu.memory_space<vmem>>, vector<1x16xf32>,
    %166 = vector.extract_strided_slice %131 {offsets = [17, 0], sizes = [1, 16], strides = [1, 1]} : vector<20x16xf32> to vector<1x16xf32>
    %c0_118 = arith.constant 0 : index
    %c272_119 = arith.constant 272 : index
    %167 = vector.load %arg14[%c0_118, %c272_119] : memref<1x320xf32, #tpu.memory_space<vmem>>, vector<1x16xf32>
    tpu.vector_store %arg14[%c0_118, %c272_119], %166 {strides = array<i32>} : memref<1x320xf32, #tpu.memory_space<vmem>>, vector<1x16xf32>,
    %168 = vector.extract_strided_slice %131 {offsets = [18, 0], sizes = [1, 16], strides = [1, 1]} : vector<20x16xf32> to vector<1x16xf32>
    %c0_120 = arith.constant 0 : index
    %c288_121 = arith.constant 288 : index
    %169 = vector.load %arg14[%c0_120, %c288_121] : memref<1x320xf32, #tpu.memory_space<vmem>>, vector<1x16xf32>
    tpu.vector_store %arg14[%c0_120, %c288_121], %168 {strides = array<i32>} : memref<1x320xf32, #tpu.memory_space<vmem>>, vector<1x16xf32>,
    %170 = vector.extract_strided_slice %131 {offsets = [19, 0], sizes = [1, 16], strides = [1, 1]} : vector<20x16xf32> to vector<1x16xf32>
    %c0_122 = arith.constant 0 : index
    %c304_123 = arith.constant 304 : index
    %171 = vector.load %arg14[%c0_122, %c304_123] : memref<1x320xf32, #tpu.memory_space<vmem>>, vector<1x16xf32>
    tpu.vector_store %arg14[%c0_122, %c304_123], %170 {strides = array<i32>} : memref<1x320xf32, #tpu.memory_space<vmem>>, vector<1x16xf32>,
    %c0_124 = arith.constant 0 : index
    %c0_125 = arith.constant 0 : index
    %172 = vector.load %arg14[%c0_124, %c0_125] : memref<1x320xf32, #tpu.memory_space<vmem>>, vector<1x320xf32>
    %c0_126 = arith.constant 0 : index
    %c0_127 = arith.constant 0 : index
    %173 = vector.load %arg7[%c0_126, %c0_127] : memref<320x50xf32, #tpu.memory_space<vmem>>, vector<320x50xf32>
    %cst_128 = arith.constant dense<0.000000e+00> : vector<1x50xf32>
    %174 = tpu.matmul %172, %173, %cst_128 {dimension_numbers = #tpu.dot_dimension_numbers<[1], [0], [0], [1], [0, 0, 1, 1], [], []>} : vector<1x320xf32>, vector<320x50xf32>, vector<1x50xf32> -> vector<1x50xf32>
    %c0_129 = arith.constant 0 : index
    %c0_130 = arith.constant 0 : index
    %175 = vector.load %arg8[%c0_129, %c0_130] : memref<1x50xf32, #tpu.memory_space<vmem>>, vector<1x50xf32>
    %176 = arith.addf %174, %175 : vector<1x50xf32>
    %cst_131 = arith.constant 0.000000e+00 : f32
    %177 = vector.broadcast %cst_131 : f32 to vector<1x50xf32>
    %178 = arith.maximumf %176, %177 : vector<1x50xf32>
    %c0_132 = arith.constant 0 : index
    %c0_133 = arith.constant 0 : index
    %179 = vector.load %arg9[%c0_132, %c0_133] : memref<50x10xf32, #tpu.memory_space<vmem>>, vector<50x10xf32>
    %cst_134 = arith.constant dense<0.000000e+00> : vector<1x10xf32>
    %180 = tpu.matmul %178, %179, %cst_134 {dimension_numbers = #tpu.dot_dimension_numbers<[1], [0], [0], [1], [0, 0, 1, 1], [], []>} : vector<1x50xf32>, vector<50x10xf32>, vector<1x10xf32> -> vector<1x10xf32>
    %c0_135 = arith.constant 0 : index
    %c0_136 = arith.constant 0 : index
    %181 = vector.load %arg10[%c0_135, %c0_136] : memref<1x10xf32, #tpu.memory_space<vmem>>, vector<1x10xf32>
    %182 = arith.addf %180, %181 : vector<1x10xf32>
    %cst_137 = arith.constant dense<0xFF800000> : vector<1xf32>
    %183 = vector.multi_reduction <maximumf>, %182, %cst_137 [1] : vector<1x10xf32> to vector<1xf32>
    %184 = vector.shape_cast %183 : vector<1xf32> to vector<1x1xf32>
    %185 = vector.broadcast %184 : vector<1x1xf32> to vector<1x10xf32>
    %186 = arith.subf %182, %185 : vector<1x10xf32>
    %187 = math.exp %186 : vector<1x10xf32>
    %cst_138 = arith.constant dense<0.000000e+00> : vector<1xf32>
    %188 = vector.multi_reduction <add>, %187, %cst_138 [1] : vector<1x10xf32> to vector<1xf32>
    %189 = vector.shape_cast %188 : vector<1xf32> to vector<1x1xf32>
    %190 = math.log %189 : vector<1x1xf32>
    %191 = vector.broadcast %190 : vector<1x1xf32> to vector<1x10xf32>
    %192 = arith.subf %186, %191 : vector<1x10xf32>
    %c0_139 = arith.constant 0 : index
    %c0_140 = arith.constant 0 : index
    %c0_141 = arith.constant 0 : index
    %193 = vector.load %arg11[%c0_139, %c0_140, %c0_141] : memref<1x1x10xf32, #tpu.memory_space<vmem>>, vector<1x1x10xf32>
    %194 = vector.shape_cast %193 : vector<1x1x10xf32> to vector<1x10xf32>
    %195 = vector.shape_cast %192 : vector<1x10xf32> to vector<1x1x10xf32>
    tpu.vector_store %arg11[%c0_139, %c0_140, %c0_141], %195 {strides = array<i32>} : memref<1x1x10xf32, #tpu.memory_space<vmem>>, vector<1x1x10xf32>,
    return
  }
  func.func @transform_0(%arg0: i32) -> (i32, i32, i32) {
    %c0_i32 = arith.constant 0 : i32
    %c0_i32_0 = arith.constant 0 : i32
    %c0_i32_1 = arith.constant 0 : i32
    return %arg0, %c0_i32, %c0_i32_0 : i32, i32, i32
  }
  func.func @transform_1(%arg0: i32) -> (i32, i32) {
    %c0_i32 = arith.constant 0 : i32
    %c0_i32_0 = arith.constant 0 : i32
    %c0_i32_1 = arith.constant 0 : i32
    return %c0_i32, %c0_i32_0 : i32, i32
  }
  func.func @transform_2(%arg0: i32) -> (i32, i32) {
    %c0_i32 = arith.constant 0 : i32
    %c0_i32_0 = arith.constant 0 : i32
    %c0_i32_1 = arith.constant 0 : i32
    return %c0_i32, %c0_i32_0 : i32, i32
  }
  func.func @transform_3(%arg0: i32) -> (i32, i32) {
    %c0_i32 = arith.constant 0 : i32
    %c0_i32_0 = arith.constant 0 : i32
    %c0_i32_1 = arith.constant 0 : i32
    return %c0_i32, %c0_i32_0 : i32, i32
  }
  func.func @transform_4(%arg0: i32) -> (i32, i32) {
    %c0_i32 = arith.constant 0 : i32
    %c0_i32_0 = arith.constant 0 : i32
    %c0_i32_1 = arith.constant 0 : i32
    return %c0_i32, %c0_i32_0 : i32, i32
  }
  func.func @transform_5(%arg0: i32) -> (i32, i32) {
    %c0_i32 = arith.constant 0 : i32
    %c0_i32_0 = arith.constant 0 : i32
    %c0_i32_1 = arith.constant 0 : i32
    return %c0_i32, %c0_i32_0 : i32, i32
  }
  func.func @transform_6(%arg0: i32) -> (i32, i32) {
    %c0_i32 = arith.constant 0 : i32
    %c0_i32_0 = arith.constant 0 : i32
    %c0_i32_1 = arith.constant 0 : i32
    return %c0_i32, %c0_i32_0 : i32, i32
  }
  func.func @transform_7(%arg0: i32) -> (i32, i32) {
    %c0_i32 = arith.constant 0 : i32
    %c0_i32_0 = arith.constant 0 : i32
    %c0_i32_1 = arith.constant 0 : i32
    return %c0_i32, %c0_i32_0 : i32, i32
  }
  func.func @transform_8(%arg0: i32) -> (i32, i32) {
    %c0_i32 = arith.constant 0 : i32
    %c0_i32_0 = arith.constant 0 : i32
    %c0_i32_1 = arith.constant 0 : i32
    return %c0_i32, %c0_i32_0 : i32, i32
  }
  func.func @transform_9(%arg0: i32) -> (i32, i32) {
    %c0_i32 = arith.constant 0 : i32
    %c0_i32_0 = arith.constant 0 : i32
    %c0_i32_1 = arith.constant 0 : i32
    return %c0_i32, %c0_i32_0 : i32, i32
  }
  func.func @transform_10(%arg0: i32) -> (i32, i32, i32) {
    %c0_i32 = arith.constant 0 : i32
    %c0_i32_0 = arith.constant 0 : i32
    %c0_i32_1 = arith.constant 0 : i32
    return %arg0, %c0_i32, %c0_i32_0 : i32, i32, i32
  }
}

</mosaic_0001>

<llo_original>
// kernel: net_forward.1
$region0: #{net_forward.1}
  #allocation0 [shape = 'u32[]', space=smem, size = 0x4, offset = 0x4, fixed_abs, tag = 'smem constant byte address 0x4 - core index']
  #allocation1 [shape = 'u32[144,128]{1,0:T(1,128)}', space=vmem, size = 0x12000, scoped, tag = 'internal scratch']
  #allocation2 [shape = 'f32[200,768]{1,0:T(8,128)}', space=vmem, size = 0x96000, scoped, tag = 'scratch operand']
  #allocation3 [shape = 'f32[400,464]{1,0:T(8,128)}', space=vmem, size = 0xc8000, scoped, tag = 'scratch operand']
  #allocation4 [shape = 'f32[1,320]{1,0:T(1,128)}', space=vmem, size = 0x600, scoped, tag = 'scratch operand']
  %s0 = inlined_call_operand.vmem [shape: f32[2,8,1024], index: 0, kind: input, shape index: {}]
  %s1 = inlined_call_operand.vmem [shape: f32[16,200], index: 1, kind: input, shape index: {}]
  %s2 = inlined_call_operand.vmem [shape: f32[16,1], index: 2, kind: input, shape index: {}]
  %s3 = inlined_call_operand.vmem [shape: f32[20,400], index: 3, kind: input, shape index: {}]
  %s4 = inlined_call_operand.vmem [shape: f32[20,1], index: 4, kind: input, shape index: {}]
  %s5 = inlined_call_operand.vmem [shape: f32[397,16], index: 5, kind: input, shape index: {}]
  %s6 = inlined_call_operand.vmem [shape: f32[320,50], index: 6, kind: input, shape index: {}]
  %s7 = inlined_call_operand.vmem [shape: f32[1,50], index: 7, kind: input, shape index: {}]
  %s8 = inlined_call_operand.vmem [shape: f32[50,10], index: 8, kind: input, shape index: {}]
  %s9 = inlined_call_operand.vmem [shape: f32[1,10], index: 9, kind: input, shape index: {}]
  %s10 = inlined_call_operand.hbm [shape: f32[2,1,10], index: 10, kind: output, shape index: {}]
  %s11 = sld [smem:[#allocation0]]
  $region73: #{net_forward.1} parent=0
    _
  %s13 = ssub.s32 1, %s11
  %s14 = scalar_select 0, %s13, %s11
  $region1: #{net_forward.1} parent=0
    #allocation5 [shape = 'u8[1024]{0}', space=vmem, size = 0x400, scoped, tag = 'output window, operand 0']
    #allocation6 [shape = 's32[2]{0}', space=sflag, size = 0x8, scoped, tag = 'scoped memory for net_forward.1']
    %15 = vsyncpa [#allocation6], 0
    %s16 = scalar_lea.sflag [#allocation6], 1
    %17 = vsyncpa %s16, 0
    loop: start=0, step=1, limit=4
    $region2: #{net_forward.1} parent=1 // loop_pre_header
      _
    $region3: #{net_forward.1} parent=1 // loop_header
      %s19 = sphi 0, %s23
      %p20 = scmp.ge.s32.totalorder %s19, 4
      %s29 = sphi 0, %s31
      %s32 = sphi 0, %s29
      %s33 = sphi 0, %s32
      %s49 = sphi 0, %s33
      %s53 = sphi 0, %s53
      %s55 = sphi 0, %s53
      %s56 = sphi 0, %s55
      %s70 = sphi 0, %s56
      %s74 = sphi 0, %s74
      %s76 = sphi 0, %s74
      %s77 = sphi 0, %s76
      %s91 = sphi 0, %s77
      %s95 = sphi 0, %s95
      %s97 = sphi 0, %s95
      %s98 = sphi 0, %s97
      %s112 = sphi 0, %s98
      %s116 = sphi 0, %s116
      %s118 = sphi 0, %s116
      %s119 = sphi 0, %s118
      %s133 = sphi 0, %s119
      %s137 = sphi 0, %s137
      %s139 = sphi 0, %s137
      %s140 = sphi 0, %s139
      %s154 = sphi 0, %s140
      %s158 = sphi 0, %s158
      %s160 = sphi 0, %s158
      %s161 = sphi 0, %s160
      %s175 = sphi 0, %s161
      %s179 = sphi 0, %s179
      %s181 = sphi 0, %s179
      %s182 = sphi 0, %s181
      %s196 = sphi 0, %s182
      %s200 = sphi 0, %s200
      %s202 = sphi 0, %s200
      %s203 = sphi 0, %s202
      %s217 = sphi 0, %s203
      %s221 = sphi 0, %s221
      %s223 = sphi 0, %s221
      %s224 = sphi 0, %s223
      %s238 = sphi 0, %s224
      %s244 = sphi 0, %s246
      %s247 = sphi 0, %s244
      %s248 = sphi 0, %s247
      %s264 = sphi 0, %s248
    $region4: #{net_forward.1} parent=1 // loop_header_branch
      %22 = sbr.rel (%p20) target = $region8
    $region5: #{net_forward.1} parent=1 // loop_body
      %s24 = ssub.s32 %s19, 1
      %s25 = ssub.s32 %s19, 2
      %s26 = sadd.s32 %s19, 1
      %s27 = ssub.s32 %s19, %s26
      %p28 = scmp.eq.s32.totalorder %s27, 0
      %s30 = sadd.s32 %s29, 1
      %s31 = scalar_select %p28, %s29, %s30
      %p34 = pneg %p28
      %p35 = scmp.eq.s32.totalorder %s19, 1
      %p36 = por %p34, %p35
      %p37 = scmp.ne.s32.totalorder %s29, %s32
      %p38 = scmp.eq.s32.totalorder %s19, 0
      %p39 = por %p37, %p38
      %p40 = scmp.ne.s32.totalorder %s29, %s32
      %p41 = scmp.eq.s32.totalorder %s24, 1
      %p42 = por %p40, %p41
      %p43 = scmp.ne.s32.totalorder %s32, %s33
      %p44 = scmp.eq.s32.totalorder %s24, 0
      %p45 = por %p43, %p44
      %p46 = scmp.ne.s32.totalorder %s32, %s33
      %p47 = scmp.eq.s32.totalorder %s25, 1
      %p48 = por %p46, %p47
      %p50 = scmp.ne.s32.totalorder %s33, %s49
      %p51 = scmp.eq.s32.totalorder %s25, 0
      %p52 = por %p50, %p51
      %s54 = sadd.s32 %s53, 1
      %p57 = scmp.eq.s32.totalorder %s19, 1
      %p58 = scmp.ne.s32.totalorder %s53, %s55
      %p59 = scmp.eq.s32.totalorder %s19, 0
      %p60 = por %p58, %p59
      %p61 = scmp.ne.s32.totalorder %s53, %s55
      %p62 = scmp.eq.s32.totalorder %s24, 1
      %p63 = por %p61, %p62
      %p64 = scmp.ne.s32.totalorder %s55, %s56
      %p65 = scmp.eq.s32.totalorder %s24, 0
      %p66 = por %p64, %p65
      %p67 = scmp.ne.s32.totalorder %s55, %s56
      %p68 = scmp.eq.s32.totalorder %s25, 1
      %p69 = por %p67, %p68
      %p71 = scmp.ne.s32.totalorder %s56, %s70
      %p72 = scmp.eq.s32.totalorder %s25, 0
      %p73 = por %p71, %p72
      %s75 = sadd.s32 %s74, 1
      %p78 = scmp.eq.s32.totalorder %s19, 1
      %p79 = scmp.ne.s32.totalorder %s74, %s76
      %p80 = scmp.eq.s32.totalorder %s19, 0
      %p81 = por %p79, %p80
      %p82 = scmp.ne.s32.totalorder %s74, %s76
      %p83 = scmp.eq.s32.totalorder %s24, 1
      %p84 = por %p82, %p83
      %p85 = scmp.ne.s32.totalorder %s76, %s77
      %p86 = scmp.eq.s32.totalorder %s24, 0
      %p87 = por %p85, %p86
      %p88 = scmp.ne.s32.totalorder %s76, %s77
      %p89 = scmp.eq.s32.totalorder %s25, 1
      %p90 = por %p88, %p89
      %p92 = scmp.ne.s32.totalorder %s77, %s91
      %p93 = scmp.eq.s32.totalorder %s25, 0
      %p94 = por %p92, %p93
      %s96 = sadd.s32 %s95, 1
      %p99 = scmp.eq.s32.totalorder %s19, 1
      %p100 = scmp.ne.s32.totalorder %s95, %s97
      %p101 = scmp.eq.s32.totalorder %s19, 0
      %p102 = por %p100, %p101
      %p103 = scmp.ne.s32.totalorder %s95, %s97
      %p104 = scmp.eq.s32.totalorder %s24, 1
      %p105 = por %p103, %p104
      %p106 = scmp.ne.s32.totalorder %s97, %s98
      %p107 = scmp.eq.s32.totalorder %s24, 0
      %p108 = por %p106, %p107
      %p109 = scmp.ne.s32.totalorder %s97, %s98
      %p110 = scmp.eq.s32.totalorder %s25, 1
      %p111 = por %p109, %p110
      %p113 = scmp.ne.s32.totalorder %s98, %s112
      %p114 = scmp.eq.s32.totalorder %s25, 0
      %p115 = por %p113, %p114
      %s117 = sadd.s32 %s116, 1
      %p120 = scmp.eq.s32.totalorder %s19, 1
      %p121 = scmp.ne.s32.totalorder %s116, %s118
      %p122 = scmp.eq.s32.totalorder %s19, 0
      %p123 = por %p121, %p122
      %p124 = scmp.ne.s32.totalorder %s116, %s118
      %p125 = scmp.eq.s32.totalorder %s24, 1
      %p126 = por %p124, %p125
      %p127 = scmp.ne.s32.totalorder %s118, %s119
      %p128 = scmp.eq.s32.totalorder %s24, 0
      %p129 = por %p127, %p128
      %p130 = scmp.ne.s32.totalorder %s118, %s119
      %p131 = scmp.eq.s32.totalorder %s25, 1
      %p132 = por %p130, %p131
      %p134 = scmp.ne.s32.totalorder %s119, %s133
      %p135 = scmp.eq.s32.totalorder %s25, 0
      %p136 = por %p134, %p135
      %s138 = sadd.s32 %s137, 1
      %p141 = scmp.eq.s32.totalorder %s19, 1
      %p142 = scmp.ne.s32.totalorder %s137, %s139
      %p143 = scmp.eq.s32.totalorder %s19, 0
      %p144 = por %p142, %p143
      %p145 = scmp.ne.s32.totalorder %s137, %s139
      %p146 = scmp.eq.s32.totalorder %s24, 1
      %p147 = por %p145, %p146
      %p148 = scmp.ne.s32.totalorder %s139, %s140
      %p149 = scmp.eq.s32.totalorder %s24, 0
      %p150 = por %p148, %p149
      %p151 = scmp.ne.s32.totalorder %s139, %s140
      %p152 = scmp.eq.s32.totalorder %s25, 1
      %p153 = por %p151, %p152
      %p155 = scmp.ne.s32.totalorder %s140, %s154
      %p156 = scmp.eq.s32.totalorder %s25, 0
      %p157 = por %p155, %p156
      %s159 = sadd.s32 %s158, 1
      %p162 = scmp.eq.s32.totalorder %s19, 1
      %p163 = scmp.ne.s32.totalorder %s158, %s160
      %p164 = scmp.eq.s32.totalorder %s19, 0
      %p165 = por %p163, %p164
      %p166 = scmp.ne.s32.totalorder %s158, %s160
      %p167 = scmp.eq.s32.totalorder %s24, 1
      %p168 = por %p166, %p167
      %p169 = scmp.ne.s32.totalorder %s160, %s161
      %p170 = scmp.eq.s32.totalorder %s24, 0
      %p171 = por %p169, %p170
      %p172 = scmp.ne.s32.totalorder %s160, %s161
      %p173 = scmp.eq.s32.totalorder %s25, 1
      %p174 = por %p172, %p173
      %p176 = scmp.ne.s32.totalorder %s161, %s175
      %p177 = scmp.eq.s32.totalorder %s25, 0
      %p178 = por %p176, %p177
      %s180 = sadd.s32 %s179, 1
      %p183 = scmp.eq.s32.totalorder %s19, 1
      %p184 = scmp.ne.s32.totalorder %s179, %s181
      %p185 = scmp.eq.s32.totalorder %s19, 0
      %p186 = por %p184, %p185
      %p187 = scmp.ne.s32.totalorder %s179, %s181
      %p188 = scmp.eq.s32.totalorder %s24, 1
      %p189 = por %p187, %p188
      %p190 = scmp.ne.s32.totalorder %s181, %s182
      %p191 = scmp.eq.s32.totalorder %s24, 0
      %p192 = por %p190, %p191
      %p193 = scmp.ne.s32.totalorder %s181, %s182
      %p194 = scmp.eq.s32.totalorder %s25, 1
      %p195 = por %p193, %p194
      %p197 = scmp.ne.s32.totalorder %s182, %s196
      %p198 = scmp.eq.s32.totalorder %s25, 0
      %p199 = por %p197, %p198
      %s201 = sadd.s32 %s200, 1
      %p204 = scmp.eq.s32.totalorder %s19, 1
      %p205 = scmp.ne.s32.totalorder %s200, %s202
      %p206 = scmp.eq.s32.totalorder %s19, 0
      %p207 = por %p205, %p206
      %p208 = scmp.ne.s32.totalorder %s200, %s202
      %p209 = scmp.eq.s32.totalorder %s24, 1
      %p210 = por %p208, %p209
      %p211 = scmp.ne.s32.totalorder %s202, %s203
      %p212 = scmp.eq.s32.totalorder %s24, 0
      %p213 = por %p211, %p212
      %p214 = scmp.ne.s32.totalorder %s202, %s203
      %p215 = scmp.eq.s32.totalorder %s25, 1
      %p216 = por %p214, %p215
      %p218 = scmp.ne.s32.totalorder %s203, %s217
      %p219 = scmp.eq.s32.totalorder %s25, 0
      %p220 = por %p218, %p219
      %s222 = sadd.s32 %s221, 1
      %p225 = scmp.eq.s32.totalorder %s19, 1
      %p226 = scmp.ne.s32.totalorder %s221, %s223
      %p227 = scmp.eq.s32.totalorder %s19, 0
      %p228 = por %p226, %p227
      %p229 = scmp.ne.s32.totalorder %s221, %s223
      %p230 = scmp.eq.s32.totalorder %s24, 1
      %p231 = por %p229, %p230
      %p232 = scmp.ne.s32.totalorder %s223, %s224
      %p233 = scmp.eq.s32.totalorder %s24, 0
      %p234 = por %p232, %p233
      %p235 = scmp.ne.s32.totalorder %s223, %s224
      %p236 = scmp.eq.s32.totalorder %s25, 1
      %p237 = por %p235, %p236
      %p239 = scmp.ne.s32.totalorder %s224, %s238
      %p240 = scmp.eq.s32.totalorder %s25, 0
      %p241 = por %p239, %p240
      %s242 = ssub.s32 %s19, %s26
      %p243 = scmp.eq.s32.totalorder %s242, 0
      %s245 = sadd.s32 %s244, 1
      %s246 = scalar_select %p243, %s244, %s245
      %p249 = pneg %p243
      %p250 = scmp.eq.s32.totalorder %s19, 1
      %p251 = por %p249, %p250
      %p252 = scmp.ne.s32.totalorder %s244, %s247
      %p253 = scmp.eq.s32.totalorder %s19, 0
      %p254 = por %p252, %p253
      %p255 = scmp.ne.s32.totalorder %s244, %s247
      %p256 = scmp.eq.s32.totalorder %s24, 1
      %p257 = por %p255, %p256
      %p258 = scmp.ne.s32.totalorder %s247, %s248
      %p259 = scmp.eq.s32.totalorder %s24, 0
      %p260 = por %p258, %p259
      %p261 = scmp.ne.s32.totalorder %s247, %s248
      %p262 = scmp.eq.s32.totalorder %s25, 1
      %p263 = por %p261, %p262
      %p265 = scmp.ne.s32.totalorder %s248, %s264
      %p266 = scmp.eq.s32.totalorder %s25, 0
      %p267 = por %p265, %p266
      %p268 = scmp.le.s32.totalorder 1, %s19
      %p269 = scmp.lt.s32.totalorder %s19, 3
      %p270 = pnand %p268, %p269
      %p271 = pneg %p270
      // Predicated region
      $region9: #{net_forward.1} parent=5 // pred_check
        _
      $region10: #{net_forward.1} parent=5 // pred_check_branch
        %273 = sbr.rel (%p270) target = $region12
      $region11: #{net_forward.1} parent=5 // pred_region
        %s274 = ssub.s32 %s19, 1
        // Predicated region
        $region13: #{net_forward.1} parent=11 // pred_check
          %p275 = pneg %p66
        $region14: #{net_forward.1} parent=11 // pred_check_branch
          %277 = sbr.rel (%p275) target = $region16
        $region15: #{net_forward.1} parent=11 // pred_region
          _
        $region16: #{net_forward.1} parent=11 // pred_fallthru
          _
        // Predicated region
        $region17: #{net_forward.1} parent=11 // pred_check
          %p278 = pneg %p87
        $region18: #{net_forward.1} parent=11 // pred_check_branch
          %280 = sbr.rel (%p278) target = $region20
        $region19: #{net_forward.1} parent=11 // pred_region
          _
        $region20: #{net_forward.1} parent=11 // pred_fallthru
          _
        // Predicated region
        $region21: #{net_forward.1} parent=11 // pred_check
          %p281 = pneg %p108
        $region22: #{net_forward.1} parent=11 // pred_check_branch
          %283 = sbr.rel (%p281) target = $region24
        $region23: #{net_forward.1} parent=11 // pred_region
          _
        $region24: #{net_forward.1} parent=11 // pred_fallthru
          _
        // Predicated region
        $region25: #{net_forward.1} parent=11 // pred_check
          %p284 = pneg %p129
        $region26: #{net_forward.1} parent=11 // pred_check_branch
          %286 = sbr.rel (%p284) target = $region28
        $region27: #{net_forward.1} parent=11 // pred_region
          _
        $region28: #{net_forward.1} parent=11 // pred_fallthru
          _
        // Predicated region
        $region29: #{net_forward.1} parent=11 // pred_check
          %p287 = pneg %p150
        $region30: #{net_forward.1} parent=11 // pred_check_branch
          %289 = sbr.rel (%p287) target = $region32
        $region31: #{net_forward.1} parent=11 // pred_region
          _
        $region32: #{net_forward.1} parent=11 // pred_fallthru
          _
        // Predicated region
        $region33: #{net_forward.1} parent=11 // pred_check
          %p290 = pneg %p171
        $region34: #{net_forward.1} parent=11 // pred_check_branch
          %292 = sbr.rel (%p290) target = $region36
        $region35: #{net_forward.1} parent=11 // pred_region
          _
        $region36: #{net_forward.1} parent=11 // pred_fallthru
          _
        // Predicated region
        $region37: #{net_forward.1} parent=11 // pred_check
          %p293 = pneg %p192
        $region38: #{net_forward.1} parent=11 // pred_check_branch
          %295 = sbr.rel (%p293) target = $region40
        $region39: #{net_forward.1} parent=11 // pred_region
          _
        $region40: #{net_forward.1} parent=11 // pred_fallthru
          _
        // Predicated region
        $region41: #{net_forward.1} parent=11 // pred_check
          %p296 = pneg %p213
        $region42: #{net_forward.1} parent=11 // pred_check_branch
          %298 = sbr.rel (%p296) target = $region44
        $region43: #{net_forward.1} parent=11 // pred_region
          _
        $region44: #{net_forward.1} parent=11 // pred_fallthru
          _
        // Predicated region
        $region45: #{net_forward.1} parent=11 // pred_check
          %p299 = pneg %p234
        $region46: #{net_forward.1} parent=11 // pred_check_branch
          %301 = sbr.rel (%p299) target = $region48
        $region47: #{net_forward.1} parent=11 // pred_region
          _
        $region48: #{net_forward.1} parent=11 // pred_fallthru
          _
      $region12: #{net_forward.1} parent=5 // pred_fallthru
        _
      %p302 = scmp.lt.s32.totalorder %s19, 2
      // Predicated region
      $region49: #{net_forward.1} parent=5 // pred_check
        %p303 = pneg %p302
      $region50: #{net_forward.1} parent=5 // pred_check_branch
        %305 = sbr.rel (%p303) target = $region52
      $region51: #{net_forward.1} parent=5 // pred_region
        // Predicated region
        $region53: #{net_forward.1} parent=51 // pred_check
          %p306 = pneg %p39
        $region54: #{net_forward.1} parent=51 // pred_check_branch
          %308 = sbr.rel (%p306) target = $region56
        $region55: #{net_forward.1} parent=51 // pred_region
          %p309 = scmp.lt.s32.totalorder %s19, 1
          %s310 = scalar_select %p309, %s19, 1
          %s311 = smul.addr %s310, 8
          %s312 = smul.addr %s311, 8
          %s313 = scalar_lea.vmem %s0, %s312
        $region56: #{net_forward.1} parent=51 // pred_fallthru
          _
      $region52: #{net_forward.1} parent=5 // pred_fallthru
        _
      %p314 = scmp.le.s32.totalorder 1, %s19
      %p315 = scmp.lt.s32.totalorder %s19, 3
      %p316 = pnand %p314, %p315
      %p317 = pneg %p316
      // Predicated region
      $region57: #{net_forward.1} parent=5 // pred_check
        _
      $region58: #{net_forward.1} parent=5 // pred_check_branch
        %319 = sbr.rel (%p316) target = $region60
      $region59: #{net_forward.1} parent=5 // pred_region
        %s320 = ssub.s32 %s19, 1
        %p321 = scmp.lt.s32.totalorder %s24, 1
        %s322 = scalar_select %p321, %s24, 1
        %s323 = smul.addr %s322, 8
        %s324 = smul.addr %s323, 8
        %s325 = scalar_lea.vmem %s0, %s324
        %p326 = pneg %p45
        %p327 = pneg %p42
        %p328 = pneg %p66
        %p329 = pneg %p63
        %p330 = pneg %p87
        %p331 = pneg %p84
        %p332 = pneg %p108
        %p333 = pneg %p105
        %p334 = pneg %p129
        %p335 = pneg %p126
        %p336 = pneg %p150
        %p337 = pneg %p147
        %p338 = pneg %p171
        %p339 = pneg %p168
        %p340 = pneg %p192
        %p341 = pneg %p189
        %p342 = pneg %p213
        %p343 = pneg %p210
        %p344 = pneg %p234
        %p345 = pneg %p231
        %p346 = pneg %p260
        %p347 = pneg %p257
        %s348 = sand.u32 %s247, 1
        %s349 = scalar_lea.sflag [#allocation6], %s348
        %s350 = sand.u32 %s247, 1
        %s351 = scalar_lea.vmem [#allocation5], %s350
        %p352 = scmp.lt.s32.totalorder %s24, 1
        %s353 = scalar_select %p352, %s24, 1
        %s354 = smul.addr %s353, 8
        %s355 = smul.addr %s354, 8
        %s356 = scalar_lea.vmem %s0, %s355
        %v357 = vld [vmem:[%s356] sm:$0xff]
        %v358 = vld [vmem:[%s356 + $0x8] sm:$0xff]
        %v359 = vld [vmem:[%s356 + $0x10] sm:$0xff]
        %v360 = vld [vmem:[%s356 + $0x18] sm:$0xff]
        %v361 = vld [vmem:[%s356 + $0x20] sm:$0xff]
        %v362 = vld [vmem:[%s356 + $0x28] sm:$0xff]
        %v363 = vld [vmem:[%s356 + $0x30] sm:$0xff]
        %v364 = vld [vmem:[%s356 + $0x38] sm:$0xff]
        %365 = vst [vmem:[#allocation2] sm:$0xff] %v357
        %366 = vst [vmem:[#allocation2 + $0x8] sm:$0xff] %v358
        %367 = vst [vmem:[#allocation2 + $0x10] sm:$0xff] %v359
        %368 = vst [vmem:[#allocation2 + $0x18] sm:$0xff] %v360
        %369 = vst [vmem:[#allocation2 + $0x20] sm:$0xff] %v361
        %370 = vst [vmem:[#allocation2 + $0x28] sm:$0xff] %v362
        %378 = vrot.lane.b32.xlu0 %v357, 127
        %v379 = vpop.permute.xlu0 %378
        %380 = vrot.lane.b32.xlu0 %v358, 127
        %v381 = vpop.permute.xlu0 %380
        %382 = vrot.lane.b32.xlu0 %v359, 127
        %v383 = vpop.permute.xlu0 %382
        %384 = vrot.lane.b32.xlu0 %v360, 127
        %v385 = vpop.permute.xlu0 %384
        %386 = vrot.lane.b32.xlu0 %v361, 127
        %v387 = vpop.permute.xlu0 %386
        %388 = vrot.lane.b32.xlu0 %v362, 127
        %v389 = vpop.permute.xlu0 %388
        %390 = vrot.lane.b32.xlu0 %v363, 127
        %v391 = vpop.permute.xlu0 %390
        %vm392 = vcmask 1039360
        %v393 = vsel %vm392, %v379, %v381
        %v394 = vsel %vm392, %v381, %v383
        %v395 = vsel %vm392, %v383, %v385
        %v396 = vsel %vm392, %v385, %v387
        %v397 = vsel %vm392, %v387, %v389
        %v398 = vsel %vm392, %v389, %v391
        %405 = vst [vmem:[#allocation2 + $0x30] sm:$0xff] %v393
        %406 = vst [vmem:[#allocation2 + $0x38] sm:$0xff] %v394
        %407 = vst [vmem:[#allocation2 + $0x40] sm:$0xff] %v395
        %408 = vst [vmem:[#allocation2 + $0x48] sm:$0xff] %v396
        %409 = vst [vmem:[#allocation2 + $0x50] sm:$0xff] %v397
        %410 = vst [vmem:[#allocation2 + $0x58] sm:$0xff] %v398
        %411 = vrot.lane.b32.xlu0 %v357, 126
        %v412 = vpop.permute.xlu0 %411
        %413 = vrot.lane.b32.xlu0 %v358, 126
        %v414 = vpop.permute.xlu0 %413
        %415 = vrot.lane.b32.xlu0 %v359, 126
        %v416 = vpop.permute.xlu0 %415
        %417 = vrot.lane.b32.xlu0 %v360, 126
        %v418 = vpop.permute.xlu0 %417
        %419 = vrot.lane.b32.xlu0 %v361, 126
        %v420 = vpop.permute.xlu0 %419
        %421 = vrot.lane.b32.xlu0 %v362, 126
        %v422 = vpop.permute.xlu0 %421
        %423 = vrot.lane.b32.xlu0 %v363, 126
        %v424 = vpop.permute.xlu0 %423
        %vm425 = vcmask 1031168
        %v426 = vsel %vm425, %v412, %v414
        %v427 = vsel %vm425, %v414, %v416
        %v428 = vsel %vm425, %v416, %v418
        %v429 = vsel %vm425, %v418, %v420
        %v430 = vsel %vm425, %v420, %v422
        %v431 = vsel %vm425, %v422, %v424
        %438 = vst [vmem:[#allocation2 + $0x60] sm:$0xff] %v426
        %439 = vst [vmem:[#allocation2 + $0x68] sm:$0xff] %v427
        %440 = vst [vmem:[#allocation2 + $0x70] sm:$0xff] %v428
        %441 = vst [vmem:[#allocation2 + $0x78] sm:$0xff] %v429
        %442 = vst [vmem:[#allocation2 + $0x80] sm:$0xff] %v430
        %443 = vst [vmem:[#allocation2 + $0x88] sm:$0xff] %v431
        %444 = vrot.lane.b32.xlu0 %v357, 125
        %v445 = vpop.permute.xlu0 %444
        %446 = vrot.lane.b32.xlu0 %v358, 125
        %v447 = vpop.permute.xlu0 %446
        %448 = vrot.lane.b32.xlu0 %v359, 125
        %v449 = vpop.permute.xlu0 %448
        %450 = vrot.lane.b32.xlu0 %v360, 125
        %v451 = vpop.permute.xlu0 %450
        %452 = vrot.lane.b32.xlu0 %v361, 125
        %v453 = vpop.permute.xlu0 %452
        %454 = vrot.lane.b32.xlu0 %v362, 125
        %v455 = vpop.permute.xlu0 %454
        %456 = vrot.lane.b32.xlu0 %v363, 125
        %v457 = vpop.permute.xlu0 %456
        %vm458 = vcmask 1022976
        %v459 = vsel %vm458, %v445, %v447
        %v460 = vsel %vm458, %v447, %v449
        %v461 = vsel %vm458, %v449, %v451
        %v462 = vsel %vm458, %v451, %v453
        %v463 = vsel %vm458, %v453, %v455
        %v464 = vsel %vm458, %v455, %v457
        %471 = vst [vmem:[#allocation2 + $0x90] sm:$0xff] %v459
        %472 = vst [vmem:[#allocation2 + $0x98] sm:$0xff] %v460
        %473 = vst [vmem:[#allocation2 + $0xa0] sm:$0xff] %v461
        %474 = vst [vmem:[#allocation2 + $0xa8] sm:$0xff] %v462
        %475 = vst [vmem:[#allocation2 + $0xb0] sm:$0xff] %v463
        %476 = vst [vmem:[#allocation2 + $0xb8] sm:$0xff] %v464
        %477 = vrot.lane.b32.xlu0 %v357, 124
        %v478 = vpop.permute.xlu0 %477
        %479 = vrot.lane.b32.xlu0 %v358, 124
        %v480 = vpop.permute.xlu0 %479
        %481 = vrot.lane.b32.xlu0 %v359, 124
        %v482 = vpop.permute.xlu0 %481
        %483 = vrot.lane.b32.xlu0 %v360, 124
        %v484 = vpop.permute.xlu0 %483
        %485 = vrot.lane.b32.xlu0 %v361, 124
        %v486 = vpop.permute.xlu0 %485
        %487 = vrot.lane.b32.xlu0 %v362, 124
        %v488 = vpop.permute.xlu0 %487
        %489 = vrot.lane.b32.xlu0 %v363, 124
        %v490 = vpop.permute.xlu0 %489
        %vm491 = vcmask 1014784
        %v492 = vsel %vm491, %v478, %v480
        %v493 = vsel %vm491, %v480, %v482
        %v494 = vsel %vm491, %v482, %v484
        %v495 = vsel %vm491, %v484, %v486
        %v496 = vsel %vm491, %v486, %v488
        %v497 = vsel %vm491, %v488, %v490
        %504 = vst [vmem:[#allocation2 + $0xc0] sm:$0xff] %v492
        %505 = vst [vmem:[#allocation2 + $0xc8] sm:$0xff] %v493
        %506 = vst [vmem:[#allocation2 + $0xd0] sm:$0xff] %v494
        %507 = vst [vmem:[#allocation2 + $0xd8] sm:$0xff] %v495
        %508 = vst [vmem:[#allocation2 + $0xe0] sm:$0xff] %v496
        %509 = vst [vmem:[#allocation2 + $0xe8] sm:$0xff] %v497
        %510 = vrot.lane.b32.xlu0 %v357, 96
        %v511 = vpop.permute.xlu0 %510
        %512 = vrot.lane.b32.xlu0 %v358, 96
        %v513 = vpop.permute.xlu0 %512
        %514 = vrot.lane.b32.xlu0 %v359, 96
        %v515 = vpop.permute.xlu0 %514
        %516 = vrot.lane.b32.xlu0 %v360, 96
        %v517 = vpop.permute.xlu0 %516
        %518 = vrot.lane.b32.xlu0 %v361, 96
        %v519 = vpop.permute.xlu0 %518
        %520 = vrot.lane.b32.xlu0 %v362, 96
        %v521 = vpop.permute.xlu0 %520
        %522 = vrot.lane.b32.xlu0 %v363, 96
        %v523 = vpop.permute.xlu0 %522
        %vm524 = vcmask 785408
        %v525 = vsel %vm524, %v511, %v513
        %v526 = vsel %vm524, %v513, %v515
        %v527 = vsel %vm524, %v515, %v517
        %v528 = vsel %vm524, %v517, %v519
        %v529 = vsel %vm524, %v519, %v521
        %v530 = vsel %vm524, %v521, %v523
        %537 = vst [vmem:[#allocation2 + $0xf0] sm:$0xff] %v525
        %538 = vst [vmem:[#allocation2 + $0xf8] sm:$0xff] %v526
        %539 = vst [vmem:[#allocation2 + $0x100] sm:$0xff] %v527
        %540 = vst [vmem:[#allocation2 + $0x108] sm:$0xff] %v528
        %541 = vst [vmem:[#allocation2 + $0x110] sm:$0xff] %v529
        %542 = vst [vmem:[#allocation2 + $0x118] sm:$0xff] %v530
        %543 = vrot.lane.b32.xlu0 %v357, 95
        %v544 = vpop.permute.xlu0 %543
        %545 = vrot.lane.b32.xlu0 %v358, 95
        %v546 = vpop.permute.xlu0 %545
        %547 = vrot.lane.b32.xlu0 %v359, 95
        %v548 = vpop.permute.xlu0 %547
        %549 = vrot.lane.b32.xlu0 %v360, 95
        %v550 = vpop.permute.xlu0 %549
        %551 = vrot.lane.b32.xlu0 %v361, 95
        %v552 = vpop.permute.xlu0 %551
        %553 = vrot.lane.b32.xlu0 %v362, 95
        %v554 = vpop.permute.xlu0 %553
        %555 = vrot.lane.b32.xlu0 %v363, 95
        %v556 = vpop.permute.xlu0 %555
        %vm557 = vcmask 777216
        %v558 = vsel %vm557, %v544, %v546
        %v559 = vsel %vm557, %v546, %v548
        %v560 = vsel %vm557, %v548, %v550
        %v561 = vsel %vm557, %v550, %v552
        %v562 = vsel %vm557, %v552, %v554
        %v563 = vsel %vm557, %v554, %v556
        %570 = vst [vmem:[#allocation2 + $0x120] sm:$0xff] %v558
        %571 = vst [vmem:[#allocation2 + $0x128] sm:$0xff] %v559
        %572 = vst [vmem:[#allocation2 + $0x130] sm:$0xff] %v560
        %573 = vst [vmem:[#allocation2 + $0x138] sm:$0xff] %v561
        %574 = vst [vmem:[#allocation2 + $0x140] sm:$0xff] %v562
        %575 = vst [vmem:[#allocation2 + $0x148] sm:$0xff] %v563
        %576 = vrot.lane.b32.xlu0 %v357, 94
        %v577 = vpop.permute.xlu0 %576
        %578 = vrot.lane.b32.xlu0 %v358, 94
        %v579 = vpop.permute.xlu0 %578
        %580 = vrot.lane.b32.xlu0 %v359, 94
        %v581 = vpop.permute.xlu0 %580
        %582 = vrot.lane.b32.xlu0 %v360, 94
        %v583 = vpop.permute.xlu0 %582
        %584 = vrot.lane.b32.xlu0 %v361, 94
        %v585 = vpop.permute.xlu0 %584
        %586 = vrot.lane.b32.xlu0 %v362, 94
        %v587 = vpop.permute.xlu0 %586
        %588 = vrot.lane.b32.xlu0 %v363, 94
        %v589 = vpop.permute.xlu0 %588
        %vm590 = vcmask 769024
        %v591 = vsel %vm590, %v577, %v579
        %v592 = vsel %vm590, %v579, %v581
        %v593 = vsel %vm590, %v581, %v583
        %v594 = vsel %vm590, %v583, %v585
        %v595 = vsel %vm590, %v585, %v587
        %v596 = vsel %vm590, %v587, %v589
        %603 = vst [vmem:[#allocation2 + $0x150] sm:$0xff] %v591
        %604 = vst [vmem:[#allocation2 + $0x158] sm:$0xff] %v592
        %605 = vst [vmem:[#allocation2 + $0x160] sm:$0xff] %v593
        %606 = vst [vmem:[#allocation2 + $0x168] sm:$0xff] %v594
        %607 = vst [vmem:[#allocation2 + $0x170] sm:$0xff] %v595
        %608 = vst [vmem:[#allocation2 + $0x178] sm:$0xff] %v596
        %609 = vrot.lane.b32.xlu0 %v357, 93
        %v610 = vpop.permute.xlu0 %609
        %611 = vrot.lane.b32.xlu0 %v358, 93
        %v612 = vpop.permute.xlu0 %611
        %613 = vrot.lane.b32.xlu0 %v359, 93
        %v614 = vpop.permute.xlu0 %613
        %615 = vrot.lane.b32.xlu0 %v360, 93
        %v616 = vpop.permute.xlu0 %615
        %617 = vrot.lane.b32.xlu0 %v361, 93
        %v618 = vpop.permute.xlu0 %617
        %619 = vrot.lane.b32.xlu0 %v362, 93
        %v620 = vpop.permute.xlu0 %619
        %621 = vrot.lane.b32.xlu0 %v363, 93
        %v622 = vpop.permute.xlu0 %621
        %vm623 = vcmask 760832
        %v624 = vsel %vm623, %v610, %v612
        %v625 = vsel %vm623, %v612, %v614
        %v626 = vsel %vm623, %v614, %v616
        %v627 = vsel %vm623, %v616, %v618
        %v628 = vsel %vm623, %v618, %v620
        %v629 = vsel %vm623, %v620, %v622
        %636 = vst [vmem:[#allocation2 + $0x180] sm:$0xff] %v624
        %637 = vst [vmem:[#allocation2 + $0x188] sm:$0xff] %v625
        %638 = vst [vmem:[#allocation2 + $0x190] sm:$0xff] %v626
        %639 = vst [vmem:[#allocation2 + $0x198] sm:$0xff] %v627
        %640 = vst [vmem:[#allocation2 + $0x1a0] sm:$0xff] %v628
        %641 = vst [vmem:[#allocation2 + $0x1a8] sm:$0xff] %v629
        %642 = vrot.lane.b32.xlu0 %v357, 92
        %v643 = vpop.permute.xlu0 %642
        %644 = vrot.lane.b32.xlu0 %v358, 92
        %v645 = vpop.permute.xlu0 %644
        %646 = vrot.lane.b32.xlu0 %v359, 92
        %v647 = vpop.permute.xlu0 %646
        %648 = vrot.lane.b32.xlu0 %v360, 92
        %v649 = vpop.permute.xlu0 %648
        %650 = vrot.lane.b32.xlu0 %v361, 92
        %v651 = vpop.permute.xlu0 %650
        %652 = vrot.lane.b32.xlu0 %v362, 92
        %v653 = vpop.permute.xlu0 %652
        %654 = vrot.lane.b32.xlu0 %v363, 92
        %v655 = vpop.permute.xlu0 %654
        %vm656 = vcmask 752640
        %v657 = vsel %vm656, %v643, %v645
        %v658 = vsel %vm656, %v645, %v647
        %v659 = vsel %vm656, %v647, %v649
        %v660 = vsel %vm656, %v649, %v651
        %v661 = vsel %vm656, %v651, %v653
        %v662 = vsel %vm656, %v653, %v655
        %669 = vst [vmem:[#allocation2 + $0x1b0] sm:$0xff] %v657
        %670 = vst [vmem:[#allocation2 + $0x1b8] sm:$0xff] %v658
        %671 = vst [vmem:[#allocation2 + $0x1c0] sm:$0xff] %v659
        %672 = vst [vmem:[#allocation2 + $0x1c8] sm:$0xff] %v660
        %673 = vst [vmem:[#allocation2 + $0x1d0] sm:$0xff] %v661
        %674 = vst [vmem:[#allocation2 + $0x1d8] sm:$0xff] %v662
        %675 = vrot.lane.b32.xlu0 %v357, 64
        %v676 = vpop.permute.xlu0 %675
        %677 = vrot.lane.b32.xlu0 %v358, 64
        %v678 = vpop.permute.xlu0 %677
        %679 = vrot.lane.b32.xlu0 %v359, 64
        %v680 = vpop.permute.xlu0 %679
        %681 = vrot.lane.b32.xlu0 %v360, 64
        %v682 = vpop.permute.xlu0 %681
        %683 = vrot.lane.b32.xlu0 %v361, 64
        %v684 = vpop.permute.xlu0 %683
        %685 = vrot.lane.b32.xlu0 %v362, 64
        %v686 = vpop.permute.xlu0 %685
        %687 = vrot.lane.b32.xlu0 %v363, 64
        %v688 = vpop.permute.xlu0 %687
        %vm689 = vcmask 523264
        %v690 = vsel %vm689, %v676, %v678
        %v691 = vsel %vm689, %v678, %v680
        %v692 = vsel %vm689, %v680, %v682
        %v693 = vsel %vm689, %v682, %v684
        %v694 = vsel %vm689, %v684, %v686
        %v695 = vsel %vm689, %v686, %v688
        %702 = vst [vmem:[#allocation2 + $0x1e0] sm:$0xff] %v690
        %703 = vst [vmem:[#allocation2 + $0x1e8] sm:$0xff] %v691
        %704 = vst [vmem:[#allocation2 + $0x1f0] sm:$0xff] %v692
        %705 = vst [vmem:[#allocation2 + $0x1f8] sm:$0xff] %v693
        %706 = vst [vmem:[#allocation2 + $0x200] sm:$0xff] %v694
        %707 = vst [vmem:[#allocation2 + $0x208] sm:$0xff] %v695
        %708 = vrot.lane.b32.xlu0 %v357, 63
        %v709 = vpop.permute.xlu0 %708
        %710 = vrot.lane.b32.xlu0 %v358, 63
        %v711 = vpop.permute.xlu0 %710
        %712 = vrot.lane.b32.xlu0 %v359, 63
        %v713 = vpop.permute.xlu0 %712
        %714 = vrot.lane.b32.xlu0 %v360, 63
        %v715 = vpop.permute.xlu0 %714
        %716 = vrot.lane.b32.xlu0 %v361, 63
        %v717 = vpop.permute.xlu0 %716
        %718 = vrot.lane.b32.xlu0 %v362, 63
        %v719 = vpop.permute.xlu0 %718
        %720 = vrot.lane.b32.xlu0 %v363, 63
        %v721 = vpop.permute.xlu0 %720
        %vm722 = vcmask 515072
        %v723 = vsel %vm722, %v709, %v711
        %v724 = vsel %vm722, %v711, %v713
        %v725 = vsel %vm722, %v713, %v715
        %v726 = vsel %vm722, %v715, %v717
        %v727 = vsel %vm722, %v717, %v719
        %v728 = vsel %vm722, %v719, %v721
        %735 = vst [vmem:[#allocation2 + $0x210] sm:$0xff] %v723
        %736 = vst [vmem:[#allocation2 + $0x218] sm:$0xff] %v724
        %737 = vst [vmem:[#allocation2 + $0x220] sm:$0xff] %v725
        %738 = vst [vmem:[#allocation2 + $0x228] sm:$0xff] %v726
        %739 = vst [vmem:[#allocation2 + $0x230] sm:$0xff] %v727
        %740 = vst [vmem:[#allocation2 + $0x238] sm:$0xff] %v728
        %741 = vrot.lane.b32.xlu0 %v357, 62
        %v742 = vpop.permute.xlu0 %741
        %743 = vrot.lane.b32.xlu0 %v358, 62
        %v744 = vpop.permute.xlu0 %743
        %745 = vrot.lane.b32.xlu0 %v359, 62
        %v746 = vpop.permute.xlu0 %745
        %747 = vrot.lane.b32.xlu0 %v360, 62
        %v748 = vpop.permute.xlu0 %747
        %749 = vrot.lane.b32.xlu0 %v361, 62
        %v750 = vpop.permute.xlu0 %749
        %751 = vrot.lane.b32.xlu0 %v362, 62
        %v752 = vpop.permute.xlu0 %751
        %753 = vrot.lane.b32.xlu0 %v363, 62
        %v754 = vpop.permute.xlu0 %753
        %vm755 = vcmask 506880
        %v756 = vsel %vm755, %v742, %v744
        %v757 = vsel %vm755, %v744, %v746
        %v758 = vsel %vm755, %v746, %v748
        %v759 = vsel %vm755, %v748, %v750
        %v760 = vsel %vm755, %v750, %v752
        %v761 = vsel %vm755, %v752, %v754
        %768 = vst [vmem:[#allocation2 + $0x240] sm:$0xff] %v756
        %769 = vst [vmem:[#allocation2 + $0x248] sm:$0xff] %v757
        %770 = vst [vmem:[#allocation2 + $0x250] sm:$0xff] %v758
        %771 = vst [vmem:[#allocation2 + $0x258] sm:$0xff] %v759
        %772 = vst [vmem:[#allocation2 + $0x260] sm:$0xff] %v760
        %773 = vst [vmem:[#allocation2 + $0x268] sm:$0xff] %v761
        %774 = vrot.lane.b32.xlu0 %v357, 61
        %v775 = vpop.permute.xlu0 %774
        %776 = vrot.lane.b32.xlu0 %v358, 61
        %v777 = vpop.permute.xlu0 %776
        %778 = vrot.lane.b32.xlu0 %v359, 61
        %v779 = vpop.permute.xlu0 %778
        %780 = vrot.lane.b32.xlu0 %v360, 61
        %v781 = vpop.permute.xlu0 %780
        %782 = vrot.lane.b32.xlu0 %v361, 61
        %v783 = vpop.permute.xlu0 %782
        %784 = vrot.lane.b32.xlu0 %v362, 61
        %v785 = vpop.permute.xlu0 %784
        %786 = vrot.lane.b32.xlu0 %v363, 61
        %v787 = vpop.permute.xlu0 %786
        %vm788 = vcmask 498688
        %v789 = vsel %vm788, %v775, %v777
        %v790 = vsel %vm788, %v777, %v779
        %v791 = vsel %vm788, %v779, %v781
        %v792 = vsel %vm788, %v781, %v783
        %v793 = vsel %vm788, %v783, %v785
        %v794 = vsel %vm788, %v785, %v787
        %801 = vst [vmem:[#allocation2 + $0x270] sm:$0xff] %v789
        %802 = vst [vmem:[#allocation2 + $0x278] sm:$0xff] %v790
        %803 = vst [vmem:[#allocation2 + $0x280] sm:$0xff] %v791
        %804 = vst [vmem:[#allocation2 + $0x288] sm:$0xff] %v792
        %805 = vst [vmem:[#allocation2 + $0x290] sm:$0xff] %v793
        %806 = vst [vmem:[#allocation2 + $0x298] sm:$0xff] %v794
        %807 = vrot.lane.b32.xlu0 %v357, 60
        %v808 = vpop.permute.xlu0 %807
        %809 = vrot.lane.b32.xlu0 %v358, 60
        %v810 = vpop.permute.xlu0 %809
        %811 = vrot.lane.b32.xlu0 %v359, 60
        %v812 = vpop.permute.xlu0 %811
        %813 = vrot.lane.b32.xlu0 %v360, 60
        %v814 = vpop.permute.xlu0 %813
        %815 = vrot.lane.b32.xlu0 %v361, 60
        %v816 = vpop.permute.xlu0 %815
        %817 = vrot.lane.b32.xlu0 %v362, 60
        %v818 = vpop.permute.xlu0 %817
        %819 = vrot.lane.b32.xlu0 %v363, 60
        %v820 = vpop.permute.xlu0 %819
        %vm821 = vcmask 490496
        %v822 = vsel %vm821, %v808, %v810
        %v823 = vsel %vm821, %v810, %v812
        %v824 = vsel %vm821, %v812, %v814
        %v825 = vsel %vm821, %v814, %v816
        %v826 = vsel %vm821, %v816, %v818
        %v827 = vsel %vm821, %v818, %v820
        %834 = vst [vmem:[#allocation2 + $0x2a0] sm:$0xff] %v822
        %835 = vst [vmem:[#allocation2 + $0x2a8] sm:$0xff] %v823
        %836 = vst [vmem:[#allocation2 + $0x2b0] sm:$0xff] %v824
        %837 = vst [vmem:[#allocation2 + $0x2b8] sm:$0xff] %v825
        %838 = vst [vmem:[#allocation2 + $0x2c0] sm:$0xff] %v826
        %839 = vst [vmem:[#allocation2 + $0x2c8] sm:$0xff] %v827
        %840 = vrot.lane.b32.xlu0 %v357, 32
        %v841 = vpop.permute.xlu0 %840
        %842 = vrot.lane.b32.xlu0 %v358, 32
        %v843 = vpop.permute.xlu0 %842
        %844 = vrot.lane.b32.xlu0 %v359, 32
        %v845 = vpop.permute.xlu0 %844
        %846 = vrot.lane.b32.xlu0 %v360, 32
        %v847 = vpop.permute.xlu0 %846
        %848 = vrot.lane.b32.xlu0 %v361, 32
        %v849 = vpop.permute.xlu0 %848
        %850 = vrot.lane.b32.xlu0 %v362, 32
        %v851 = vpop.permute.xlu0 %850
        %852 = vrot.lane.b32.xlu0 %v363, 32
        %v853 = vpop.permute.xlu0 %852
        %vm854 = vcmask 261120
        %v855 = vsel %vm854, %v841, %v843
        %v856 = vsel %vm854, %v843, %v845
        %v857 = vsel %vm854, %v845, %v847
        %v858 = vsel %vm854, %v847, %v849
        %v859 = vsel %vm854, %v849, %v851
        %v860 = vsel %vm854, %v851, %v853
        %867 = vst [vmem:[#allocation2 + $0x2d0] sm:$0xff] %v855
        %868 = vst [vmem:[#allocation2 + $0x2d8] sm:$0xff] %v856
        %869 = vst [vmem:[#allocation2 + $0x2e0] sm:$0xff] %v857
        %870 = vst [vmem:[#allocation2 + $0x2e8] sm:$0xff] %v858
        %871 = vst [vmem:[#allocation2 + $0x2f0] sm:$0xff] %v859
        %872 = vst [vmem:[#allocation2 + $0x2f8] sm:$0xff] %v860
        %873 = vrot.lane.b32.xlu0 %v357, 31
        %v874 = vpop.permute.xlu0 %873
        %875 = vrot.lane.b32.xlu0 %v358, 31
        %v876 = vpop.permute.xlu0 %875
        %877 = vrot.lane.b32.xlu0 %v359, 31
        %v878 = vpop.permute.xlu0 %877
        %879 = vrot.lane.b32.xlu0 %v360, 31
        %v880 = vpop.permute.xlu0 %879
        %881 = vrot.lane.b32.xlu0 %v361, 31
        %v882 = vpop.permute.xlu0 %881
        %883 = vrot.lane.b32.xlu0 %v362, 31
        %v884 = vpop.permute.xlu0 %883
        %885 = vrot.lane.b32.xlu0 %v363, 31
        %v886 = vpop.permute.xlu0 %885
        %vm887 = vcmask 252928
        %v888 = vsel %vm887, %v874, %v876
        %v889 = vsel %vm887, %v876, %v878
        %v890 = vsel %vm887, %v878, %v880
        %v891 = vsel %vm887, %v880, %v882
        %v892 = vsel %vm887, %v882, %v884
        %v893 = vsel %vm887, %v884, %v886
        %900 = vst [vmem:[#allocation2 + $0x300] sm:$0xff] %v888
        %901 = vst [vmem:[#allocation2 + $0x308] sm:$0xff] %v889
        %902 = vst [vmem:[#allocation2 + $0x310] sm:$0xff] %v890
        %903 = vst [vmem:[#allocation2 + $0x318] sm:$0xff] %v891
        %904 = vst [vmem:[#allocation2 + $0x320] sm:$0xff] %v892
        %905 = vst [vmem:[#allocation2 + $0x328] sm:$0xff] %v893
        %906 = vrot.lane.b32.xlu0 %v357, 30
        %v907 = vpop.permute.xlu0 %906
        %908 = vrot.lane.b32.xlu0 %v358, 30
        %v909 = vpop.permute.xlu0 %908
        %910 = vrot.lane.b32.xlu0 %v359, 30
        %v911 = vpop.permute.xlu0 %910
        %912 = vrot.lane.b32.xlu0 %v360, 30
        %v913 = vpop.permute.xlu0 %912
        %914 = vrot.lane.b32.xlu0 %v361, 30
        %v915 = vpop.permute.xlu0 %914
        %916 = vrot.lane.b32.xlu0 %v362, 30
        %v917 = vpop.permute.xlu0 %916
        %918 = vrot.lane.b32.xlu0 %v363, 30
        %v919 = vpop.permute.xlu0 %918
        %vm920 = vcmask 244736
        %v921 = vsel %vm920, %v907, %v909
        %v922 = vsel %vm920, %v909, %v911
        %v923 = vsel %vm920, %v911, %v913
        %v924 = vsel %vm920, %v913, %v915
        %v925 = vsel %vm920, %v915, %v917
        %v926 = vsel %vm920, %v917, %v919
        %933 = vst [vmem:[#allocation2 + $0x330] sm:$0xff] %v921
        %934 = vst [vmem:[#allocation2 + $0x338] sm:$0xff] %v922
        %935 = vst [vmem:[#allocation2 + $0x340] sm:$0xff] %v923
        %936 = vst [vmem:[#allocation2 + $0x348] sm:$0xff] %v924
        %937 = vst [vmem:[#allocation2 + $0x350] sm:$0xff] %v925
        %938 = vst [vmem:[#allocation2 + $0x358] sm:$0xff] %v926
        %939 = vrot.lane.b32.xlu0 %v357, 29
        %v940 = vpop.permute.xlu0 %939
        %941 = vrot.lane.b32.xlu0 %v358, 29
        %v942 = vpop.permute.xlu0 %941
        %943 = vrot.lane.b32.xlu0 %v359, 29
        %v944 = vpop.permute.xlu0 %943
        %945 = vrot.lane.b32.xlu0 %v360, 29
        %v946 = vpop.permute.xlu0 %945
        %947 = vrot.lane.b32.xlu0 %v361, 29
        %v948 = vpop.permute.xlu0 %947
        %949 = vrot.lane.b32.xlu0 %v362, 29
        %v950 = vpop.permute.xlu0 %949
        %951 = vrot.lane.b32.xlu0 %v363, 29
        %v952 = vpop.permute.xlu0 %951
        %vm953 = vcmask 236544
        %v954 = vsel %vm953, %v940, %v942
        %v955 = vsel %vm953, %v942, %v944
        %v956 = vsel %vm953, %v944, %v946
        %v957 = vsel %vm953, %v946, %v948
        %v958 = vsel %vm953, %v948, %v950
        %v959 = vsel %vm953, %v950, %v952
        %966 = vst [vmem:[#allocation2 + $0x360] sm:$0xff] %v954
        %967 = vst [vmem:[#allocation2 + $0x368] sm:$0xff] %v955
        %968 = vst [vmem:[#allocation2 + $0x370] sm:$0xff] %v956
        %969 = vst [vmem:[#allocation2 + $0x378] sm:$0xff] %v957
        %970 = vst [vmem:[#allocation2 + $0x380] sm:$0xff] %v958
        %971 = vst [vmem:[#allocation2 + $0x388] sm:$0xff] %v959
        %972 = vrot.lane.b32.xlu0 %v357, 28
        %v973 = vpop.permute.xlu0 %972
        %974 = vrot.lane.b32.xlu0 %v358, 28
        %v975 = vpop.permute.xlu0 %974
        %976 = vrot.lane.b32.xlu0 %v359, 28
        %v977 = vpop.permute.xlu0 %976
        %978 = vrot.lane.b32.xlu0 %v360, 28
        %v979 = vpop.permute.xlu0 %978
        %980 = vrot.lane.b32.xlu0 %v361, 28
        %v981 = vpop.permute.xlu0 %980
        %982 = vrot.lane.b32.xlu0 %v362, 28
        %v983 = vpop.permute.xlu0 %982
        %984 = vrot.lane.b32.xlu0 %v363, 28
        %v985 = vpop.permute.xlu0 %984
        %vm986 = vcmask 228352
        %v987 = vsel %vm986, %v973, %v975
        %v988 = vsel %vm986, %v975, %v977
        %v989 = vsel %vm986, %v977, %v979
        %v990 = vsel %vm986, %v979, %v981
        %v991 = vsel %vm986, %v981, %v983
        %v992 = vsel %vm986, %v983, %v985
        %999 = vst [vmem:[#allocation2 + $0x390] sm:$0xff] %v987
        %1000 = vst [vmem:[#allocation2 + $0x398] sm:$0xff] %v988
        %1001 = vst [vmem:[#allocation2 + $0x3a0] sm:$0xff] %v989
        %1002 = vst [vmem:[#allocation2 + $0x3a8] sm:$0xff] %v990
        %1003 = vst [vmem:[#allocation2 + $0x3b0] sm:$0xff] %v991
        %1004 = vst [vmem:[#allocation2 + $0x3b8] sm:$0xff] %v992
        %1005 = vst [vmem:[#allocation2 + $0x3c0] sm:$0xff] %v358
        %1006 = vst [vmem:[#allocation2 + $0x3c8] sm:$0xff] %v359
        %1007 = vst [vmem:[#allocation2 + $0x3d0] sm:$0xff] %v360
        %1008 = vst [vmem:[#allocation2 + $0x3d8] sm:$0xff] %v361
        %1009 = vst [vmem:[#allocation2 + $0x3e0] sm:$0xff] %v362
        %1010 = vst [vmem:[#allocation2 + $0x3e8] sm:$0xff] %v363
        %1012 = vrot.lane.b32.xlu0 %v364, 127
        %v1013 = vpop.permute.xlu0 %1012
        %v1014 = vsel %vm392, %v391, %v1013
        %1016 = vst [vmem:[#allocation2 + $0x3f0] sm:$0xff] %v394
        %1017 = vst [vmem:[#allocation2 + $0x3f8] sm:$0xff] %v395
        %1018 = vst [vmem:[#allocation2 + $0x400] sm:$0xff] %v396
        %1019 = vst [vmem:[#allocation2 + $0x408] sm:$0xff] %v397
        %1020 = vst [vmem:[#allocation2 + $0x410] sm:$0xff] %v398
        %1021 = vst [vmem:[#allocation2 + $0x418] sm:$0xff] %v1014
        %1022 = vrot.lane.b32.xlu0 %v364, 126
        %v1023 = vpop.permute.xlu0 %1022
        %v1024 = vsel %vm425, %v424, %v1023
        %1026 = vst [vmem:[#allocation2 + $0x420] sm:$0xff] %v427
        %1027 = vst [vmem:[#allocation2 + $0x428] sm:$0xff] %v428
        %1028 = vst [vmem:[#allocation2 + $0x430] sm:$0xff] %v429
        %1029 = vst [vmem:[#allocation2 + $0x438] sm:$0xff] %v430
        %1030 = vst [vmem:[#allocation2 + $0x440] sm:$0xff] %v431
        %1031 = vst [vmem:[#allocation2 + $0x448] sm:$0xff] %v1024
        %1032 = vrot.lane.b32.xlu0 %v364, 125
        %v1033 = vpop.permute.xlu0 %1032
        %v1034 = vsel %vm458, %v457, %v1033
        %1036 = vst [vmem:[#allocation2 + $0x450] sm:$0xff] %v460
        %1037 = vst [vmem:[#allocation2 + $0x458] sm:$0xff] %v461
        %1038 = vst [vmem:[#allocation2 + $0x460] sm:$0xff] %v462
        %1039 = vst [vmem:[#allocation2 + $0x468] sm:$0xff] %v463
        %1040 = vst [vmem:[#allocation2 + $0x470] sm:$0xff] %v464
        %1041 = vst [vmem:[#allocation2 + $0x478] sm:$0xff] %v1034
        %1042 = vrot.lane.b32.xlu0 %v364, 124
        %v1043 = vpop.permute.xlu0 %1042
        %v1044 = vsel %vm491, %v490, %v1043
        %1046 = vst [vmem:[#allocation2 + $0x480] sm:$0xff] %v493
        %1047 = vst [vmem:[#allocation2 + $0x488] sm:$0xff] %v494
        %1048 = vst [vmem:[#allocation2 + $0x490] sm:$0xff] %v495
        %1049 = vst [vmem:[#allocation2 + $0x498] sm:$0xff] %v496
        %1050 = vst [vmem:[#allocation2 + $0x4a0] sm:$0xff] %v497
        %1051 = vst [vmem:[#allocation2 + $0x4a8] sm:$0xff] %v1044
        %v1052 = vld [vmem:[%s1] sm:$0xff]
        %v1053 = vld [vmem:[%s1 + $0x8] sm:$0xff]
        %v1054 = vld [vmem:[%s1 + $0x10] sm:$0xff]
        %v1055 = vld [vmem:[%s1 + $0x18] sm:$0xff]
        %v1056 = vld [vmem:[#allocation2] sm:$0xff]
        %v1057 = vld [vmem:[#allocation2 + $0x8] sm:$0xff]
        %v1058 = vld [vmem:[#allocation2 + $0x10] sm:$0xff]
        %v1059 = vld [vmem:[#allocation2 + $0x18] sm:$0xff]
        %v1060 = vld [vmem:[#allocation2 + $0x20] sm:$0xff]
        %v1061 = vld [vmem:[#allocation2 + $0x28] sm:$0xff]
        %v1062 = vld [vmem:[#allocation2 + $0x30] sm:$0xff]
        %v1063 = vld [vmem:[#allocation2 + $0x38] sm:$0xff]
        %v1064 = vld [vmem:[#allocation2 + $0x40] sm:$0xff]
        %v1065 = vld [vmem:[#allocation2 + $0x48] sm:$0xff]
        %v1066 = vld [vmem:[#allocation2 + $0x50] sm:$0xff]
        %v1067 = vld [vmem:[#allocation2 + $0x58] sm:$0xff]
        %v1068 = vld [vmem:[#allocation2 + $0x60] sm:$0xff]
        %v1069 = vld [vmem:[#allocation2 + $0x68] sm:$0xff]
        %v1070 = vld [vmem:[#allocation2 + $0x70] sm:$0xff]
        %v1071 = vld [vmem:[#allocation2 + $0x78] sm:$0xff]
        %v1072 = vld [vmem:[#allocation2 + $0x80] sm:$0xff]
        %v1073 = vld [vmem:[#allocation2 + $0x88] sm:$0xff]
        %v1074 = vld [vmem:[#allocation2 + $0x90] sm:$0xff]
        %v1075 = vld [vmem:[#allocation2 + $0x98] sm:$0xff]
        %v1076 = vld [vmem:[#allocation2 + $0xa0] sm:$0xff]
        %v1077 = vld [vmem:[#allocation2 + $0xa8] sm:$0xff]
        %v1078 = vld [vmem:[#allocation2 + $0xb0] sm:$0xff]
        %v1079 = vld [vmem:[#allocation2 + $0xb8] sm:$0xff]
        %v1080 = vld [vmem:[#allocation2 + $0xc0] sm:$0xff]
        %v1081 = vld [vmem:[#allocation2 + $0xc8] sm:$0xff]
        %v1082 = vld [vmem:[#allocation2 + $0xd0] sm:$0xff]
        %v1083 = vld [vmem:[#allocation2 + $0xd8] sm:$0xff]
        %v1084 = vld [vmem:[#allocation2 + $0xe0] sm:$0xff]
        %v1085 = vld [vmem:[#allocation2 + $0xe8] sm:$0xff]
        %v1086 = vld [vmem:[#allocation2 + $0xf0] sm:$0xff]
        %v1087 = vld [vmem:[#allocation2 + $0xf8] sm:$0xff]
        %v1088 = vld [vmem:[#allocation2 + $0x100] sm:$0xff]
        %v1089 = vld [vmem:[#allocation2 + $0x108] sm:$0xff]
        %v1090 = vld [vmem:[#allocation2 + $0x110] sm:$0xff]
        %v1091 = vld [vmem:[#allocation2 + $0x118] sm:$0xff]
        %v1092 = vld [vmem:[#allocation2 + $0x120] sm:$0xff]
        %v1093 = vld [vmem:[#allocation2 + $0x128] sm:$0xff]
        %v1094 = vld [vmem:[#allocation2 + $0x130] sm:$0xff]
        %v1095 = vld [vmem:[#allocation2 + $0x138] sm:$0xff]
        %v1096 = vld [vmem:[#allocation2 + $0x140] sm:$0xff]
        %v1097 = vld [vmem:[#allocation2 + $0x148] sm:$0xff]
        %v1098 = vld [vmem:[#allocation2 + $0x150] sm:$0xff]
        %v1099 = vld [vmem:[#allocation2 + $0x158] sm:$0xff]
        %v1100 = vld [vmem:[#allocation2 + $0x160] sm:$0xff]
        %v1101 = vld [vmem:[#allocation2 + $0x168] sm:$0xff]
        %v1102 = vld [vmem:[#allocation2 + $0x170] sm:$0xff]
        %v1103 = vld [vmem:[#allocation2 + $0x178] sm:$0xff]
        %v1104 = vld [vmem:[#allocation2 + $0x180] sm:$0xff]
        %v1105 = vld [vmem:[#allocation2 + $0x188] sm:$0xff]
        %v1106 = vld [vmem:[#allocation2 + $0x190] sm:$0xff]
        %v1107 = vld [vmem:[#allocation2 + $0x198] sm:$0xff]
        %v1108 = vld [vmem:[#allocation2 + $0x1a0] sm:$0xff]
        %v1109 = vld [vmem:[#allocation2 + $0x1a8] sm:$0xff]
        %v1110 = vld [vmem:[#allocation2 + $0x1b0] sm:$0xff]
        %v1111 = vld [vmem:[#allocation2 + $0x1b8] sm:$0xff]
        %v1112 = vld [vmem:[#allocation2 + $0x1c0] sm:$0xff]
        %v1113 = vld [vmem:[#allocation2 + $0x1c8] sm:$0xff]
        %v1114 = vld [vmem:[#allocation2 + $0x1d0] sm:$0xff]
        %v1115 = vld [vmem:[#allocation2 + $0x1d8] sm:$0xff]
        %v1116 = vld [vmem:[#allocation2 + $0x1e0] sm:$0xff]
        %v1117 = vld [vmem:[#allocation2 + $0x1e8] sm:$0xff]
        %v1118 = vld [vmem:[#allocation2 + $0x1f0] sm:$0xff]
        %v1119 = vld [vmem:[#allocation2 + $0x1f8] sm:$0xff]
        %v1120 = vld [vmem:[#allocation2 + $0x200] sm:$0xff]
        %v1121 = vld [vmem:[#allocation2 + $0x208] sm:$0xff]
        %v1122 = vld [vmem:[#allocation2 + $0x210] sm:$0xff]
        %v1123 = vld [vmem:[#allocation2 + $0x218] sm:$0xff]
        %v1124 = vld [vmem:[#allocation2 + $0x220] sm:$0xff]
        %v1125 = vld [vmem:[#allocation2 + $0x228] sm:$0xff]
        %v1126 = vld [vmem:[#allocation2 + $0x230] sm:$0xff]
        %v1127 = vld [vmem:[#allocation2 + $0x238] sm:$0xff]
        %v1128 = vld [vmem:[#allocation2 + $0x240] sm:$0xff]
        %v1129 = vld [vmem:[#allocation2 + $0x248] sm:$0xff]
        %v1130 = vld [vmem:[#allocation2 + $0x250] sm:$0xff]
        %v1131 = vld [vmem:[#allocation2 + $0x258] sm:$0xff]
        %v1132 = vld [vmem:[#allocation2 + $0x260] sm:$0xff]
        %v1133 = vld [vmem:[#allocation2 + $0x268] sm:$0xff]
        %v1134 = vld [vmem:[#allocation2 + $0x270] sm:$0xff]
        %v1135 = vld [vmem:[#allocation2 + $0x278] sm:$0xff]
        %v1136 = vld [vmem:[#allocation2 + $0x280] sm:$0xff]
        %v1137 = vld [vmem:[#allocation2 + $0x288] sm:$0xff]
        %v1138 = vld [vmem:[#allocation2 + $0x290] sm:$0xff]
        %v1139 = vld [vmem:[#allocation2 + $0x298] sm:$0xff]
        %v1140 = vld [vmem:[#allocation2 + $0x2a0] sm:$0xff]
        %v1141 = vld [vmem:[#allocation2 + $0x2a8] sm:$0xff]
        %v1142 = vld [vmem:[#allocation2 + $0x2b0] sm:$0xff]
        %v1143 = vld [vmem:[#allocation2 + $0x2b8] sm:$0xff]
        %v1144 = vld [vmem:[#allocation2 + $0x2c0] sm:$0xff]
        %v1145 = vld [vmem:[#allocation2 + $0x2c8] sm:$0xff]
        %v1146 = vld [vmem:[#allocation2 + $0x2d0] sm:$0xff]
        %v1147 = vld [vmem:[#allocation2 + $0x2d8] sm:$0xff]
        %v1148 = vld [vmem:[#allocation2 + $0x2e0] sm:$0xff]
        %v1149 = vld [vmem:[#allocation2 + $0x2e8] sm:$0xff]
        %v1150 = vld [vmem:[#allocation2 + $0x2f0] sm:$0xff]
        %v1151 = vld [vmem:[#allocation2 + $0x2f8] sm:$0xff]
        %v1152 = vld [vmem:[#allocation2 + $0x300] sm:$0xff]
        %v1153 = vld [vmem:[#allocation2 + $0x308] sm:$0xff]
        %v1154 = vld [vmem:[#allocation2 + $0x310] sm:$0xff]
        %v1155 = vld [vmem:[#allocation2 + $0x318] sm:$0xff]
        %v1156 = vld [vmem:[#allocation2 + $0x320] sm:$0xff]
        %v1157 = vld [vmem:[#allocation2 + $0x328] sm:$0xff]
        %v1158 = vld [vmem:[#allocation2 + $0x330] sm:$0xff]
        %v1159 = vld [vmem:[#allocation2 + $0x338] sm:$0xff]
        %v1160 = vld [vmem:[#allocation2 + $0x340] sm:$0xff]
        %v1161 = vld [vmem:[#allocation2 + $0x348] sm:$0xff]
        %v1162 = vld [vmem:[#allocation2 + $0x350] sm:$0xff]
        %v1163 = vld [vmem:[#allocation2 + $0x358] sm:$0xff]
        %v1164 = vld [vmem:[#allocation2 + $0x360] sm:$0xff]
        %v1165 = vld [vmem:[#allocation2 + $0x368] sm:$0xff]
        %v1166 = vld [vmem:[#allocation2 + $0x370] sm:$0xff]
        %v1167 = vld [vmem:[#allocation2 + $0x378] sm:$0xff]
        %v1168 = vld [vmem:[#allocation2 + $0x380] sm:$0xff]
        %v1169 = vld [vmem:[#allocation2 + $0x388] sm:$0xff]
        %v1170 = vld [vmem:[#allocation2 + $0x390] sm:$0xff]
        %v1171 = vld [vmem:[#allocation2 + $0x398] sm:$0xff]
        %v1172 = vld [vmem:[#allocation2 + $0x3a0] sm:$0xff]
        %v1173 = vld [vmem:[#allocation2 + $0x3a8] sm:$0xff]
        %v1174 = vld [vmem:[#allocation2 + $0x3b0] sm:$0xff]
        %v1175 = vld [vmem:[#allocation2 + $0x3b8] sm:$0xff]
        %v1176 = vld [vmem:[#allocation2 + $0x3c0] sm:$0xff]
        %v1177 = vld [vmem:[#allocation2 + $0x3c8] sm:$0xff]
        %v1178 = vld [vmem:[#allocation2 + $0x3d0] sm:$0xff]
        %v1179 = vld [vmem:[#allocation2 + $0x3d8] sm:$0xff]
        %v1180 = vld [vmem:[#allocation2 + $0x3e0] sm:$0xff]
        %v1181 = vld [vmem:[#allocation2 + $0x3e8] sm:$0xff]
        %v1182 = vld [vmem:[#allocation2 + $0x3f0] sm:$0xff]
        %v1183 = vld [vmem:[#allocation2 + $0x3f8] sm:$0xff]
        %v1184 = vld [vmem:[#allocation2 + $0x400] sm:$0xff]
        %v1185 = vld [vmem:[#allocation2 + $0x408] sm:$0xff]
        %v1186 = vld [vmem:[#allocation2 + $0x410] sm:$0xff]
        %v1187 = vld [vmem:[#allocation2 + $0x418] sm:$0xff]
        %v1188 = vld [vmem:[#allocation2 + $0x420] sm:$0xff]
        %v1189 = vld [vmem:[#allocation2 + $0x428] sm:$0xff]
        %v1190 = vld [vmem:[#allocation2 + $0x430] sm:$0xff]
        %v1191 = vld [vmem:[#allocation2 + $0x438] sm:$0xff]
        %v1192 = vld [vmem:[#allocation2 + $0x440] sm:$0xff]
        %v1193 = vld [vmem:[#allocation2 + $0x448] sm:$0xff]
        %v1194 = vld [vmem:[#allocation2 + $0x450] sm:$0xff]
        %v1195 = vld [vmem:[#allocation2 + $0x458] sm:$0xff]
        %v1196 = vld [vmem:[#allocation2 + $0x460] sm:$0xff]
        %v1197 = vld [vmem:[#allocation2 + $0x468] sm:$0xff]
        %v1198 = vld [vmem:[#allocation2 + $0x470] sm:$0xff]
        %v1199 = vld [vmem:[#allocation2 + $0x478] sm:$0xff]
        %v1200 = vld [vmem:[#allocation2 + $0x480] sm:$0xff]
        %v1201 = vld [vmem:[#allocation2 + $0x488] sm:$0xff]
        %v1202 = vld [vmem:[#allocation2 + $0x490] sm:$0xff]
        %v1203 = vld [vmem:[#allocation2 + $0x498] sm:$0xff]
        %v1204 = vld [vmem:[#allocation2 + $0x4a0] sm:$0xff]
        %v1205 = vld [vmem:[#allocation2 + $0x4a8] sm:$0xff]
        %v1206 = vld [vmem:[%s2] sm:$0xff]
        %v1207 = vld [vmem:[%s2 + $0x8] sm:$0xff]
        %1209 = vset.pattern.permute.xlu0 0
        %1210 = vperm.xlu0 %1209, %v1206
        %v1211 = vpop.permute.xlu0 %1210
        %1214 = vset.pattern.permute.xlu0 0
        %1215 = vperm.xlu0 %1214, %v1207
        %v1216 = vpop.permute.xlu0 %1215
        %vm1218 = vcmask 588800
        %v1220 = vsel %vm1218, %v1053, 0
        %v1223 = vsel %vm1218, %v1055, 0
        %1225 = vmatprep.subr.mxu0 %v1147
        %1226 = vmatpush1.msra.mxu0 %v1146
        %1227 = vmatprep.subr.mxu0 %v1141
        %1228 = vmatpush1.msra.mxu0 %v1140
        %1229 = vmatprep.subr.mxu0 %v1135
        %1230 = vmatpush1.msra.mxu0 %v1134
        %1231 = vmatprep.subr.mxu0 %v1129
        %1232 = vmatpush1.msra.mxu0 %v1128
        %1233 = vmatprep.subr.mxu0 %v1123
        %1234 = vmatpush1.msra.mxu0 %v1122
        %1235 = vmatprep.subr.mxu0 %v1117
        %1236 = vmatpush1.msra.mxu0 %v1116
        %1237 = vmatprep.subr.mxu0 %v1111
        %1238 = vmatpush1.msra.mxu0 %v1110
        %1239 = vmatprep.subr.mxu0 %v1105
        %1240 = vmatpush1.msra.mxu0 %v1104
        %1241 = vmatprep.subr.mxu0 %v1099
        %1242 = vmatpush1.msra.mxu0 %v1098
        %1243 = vmatprep.subr.mxu0 %v1093
        %1244 = vmatpush1.msra.mxu0 %v1092
        %1245 = vmatprep.subr.mxu0 %v1087
        %1246 = vmatpush1.msra.mxu0 %v1086
        %1247 = vmatprep.subr.mxu0 %v1081
        %1248 = vmatpush1.msra.mxu0 %v1080
        %1249 = vmatprep.subr.mxu0 %v1075
        %1250 = vmatpush1.msra.mxu0 %v1074
        %1251 = vmatprep.subr.mxu0 %v1069
        %1252 = vmatpush1.msra.mxu0 %v1068
        %1253 = vmatprep.subr.mxu0 %v1063
        %1254 = vmatpush1.msra.mxu0 %v1062
        %1255 = vmatprep.subr.mxu0 %v1057
        %1256 = vmatpush1.msra.mxu0 %v1056
        %1257 = vmatprep.subr.mxu0 0.0
        %1258 = vmatpush2.msra.mxu0 0.0
        %1259 = vmatprep.subr.mxu0 0.0
        %1260 = vmatpush2.msra.mxu0 0.0
        %1261 = vmatprep.subr.mxu0 0.0
        %1262 = vmatpush2.msra.mxu0 0.0
        %1263 = vmatprep.subr.mxu0 0.0
        %1264 = vmatpush2.msra.mxu0 0.0
        %1265 = vmatprep.subr.mxu0 0.0
        %1266 = vmatpush2.msra.mxu0 0.0
        %1267 = vmatprep.subr.mxu0 0.0
        %1268 = vmatpush2.msra.mxu0 0.0
        %1269 = vmatprep.subr.mxu0 0.0
        %1270 = vmatpush2.msra.mxu0 0.0
        %1271 = vmatprep.subr.mxu0 %v1201
        %1272 = vmatpush2.msra.mxu0 %v1200
        %1273 = vmatprep.subr.mxu0 %v1195
        %1274 = vmatpush2.msra.mxu0 %v1194
        %1275 = vmatprep.subr.mxu0 %v1189
        %1276 = vmatpush2.msra.mxu0 %v1188
        %1277 = vmatprep.subr.mxu0 %v1183
        %1278 = vmatpush2.msra.mxu0 %v1182
        %1279 = vmatprep.subr.mxu0 %v1177
        %1280 = vmatpush2.msra.mxu0 %v1176
        %1281 = vmatprep.subr.mxu0 %v1171
        %1282 = vmatpush2.msra.mxu0 %v1170
        %1283 = vmatprep.subr.mxu0 %v1165
        %1284 = vmatpush2.msra.mxu0 %v1164
        %1285 = vmatprep.subr.mxu0 %v1159
        %1286 = vmatpush2.msra.mxu0 %v1158
        %1287 = vmatprep.subr.mxu0 %v1153
        %1288 = vmatpush2.msra.mxu0 %v1152
        %1289 = vmatprep.mubr.f32.mxu0 %v1220
        %1290 = vmatmul.mubr.f32.gmra.mxu0 %v1052
        %v1291 = vpop.f32.mrf.mxu0
        %v1292 = vadd.f32 %v1211, %v1291
        %v1293 = vpop.f32.mrf.mxu0
        %v1294 = vadd.f32 %v1211, %v1293
        %1295 = vmatprep.mubr.f32.mxu0 %v1223
        %1296 = vmatmul.mubr.f32.gmra.mxu0 %v1054
        %v1297 = vpop.f32.mrf.mxu0
        %v1298 = vadd.f32 %v1216, %v1297
        %v1299 = vpop.f32.mrf.mxu0
        %v1300 = vadd.f32 %v1216, %v1299
        %1301 = vdwg.mxu0
        %1302 = vmatprep.subr.mxu0 %v1149
        %1303 = vmatpush1.msra.mxu0 %v1148
        %1304 = vmatprep.subr.mxu0 %v1143
        %1305 = vmatpush1.msra.mxu0 %v1142
        %1306 = vmatprep.subr.mxu0 %v1137
        %1307 = vmatpush1.msra.mxu0 %v1136
        %1308 = vmatprep.subr.mxu0 %v1131
        %1309 = vmatpush1.msra.mxu0 %v1130
        %1310 = vmatprep.subr.mxu0 %v1125
        %1311 = vmatpush1.msra.mxu0 %v1124
        %1312 = vmatprep.subr.mxu0 %v1119
        %1313 = vmatpush1.msra.mxu0 %v1118
        %1314 = vmatprep.subr.mxu0 %v1113
        %1315 = vmatpush1.msra.mxu0 %v1112
        %1316 = vmatprep.subr.mxu0 %v1107
        %1317 = vmatpush1.msra.mxu0 %v1106
        %1318 = vmatprep.subr.mxu0 %v1101
        %1319 = vmatpush1.msra.mxu0 %v1100
        %1320 = vmatprep.subr.mxu0 %v1095
        %1321 = vmatpush1.msra.mxu0 %v1094
        %1322 = vmatprep.subr.mxu0 %v1089
        %1323 = vmatpush1.msra.mxu0 %v1088
        %1324 = vmatprep.subr.mxu0 %v1083
        %1325 = vmatpush1.msra.mxu0 %v1082
        %1326 = vmatprep.subr.mxu0 %v1077
        %1327 = vmatpush1.msra.mxu0 %v1076
        %1328 = vmatprep.subr.mxu0 %v1071
        %1329 = vmatpush1.msra.mxu0 %v1070
        %1330 = vmatprep.subr.mxu0 %v1065
        %1331 = vmatpush1.msra.mxu0 %v1064
        %1332 = vmatprep.subr.mxu0 %v1059
        %1333 = vmatpush1.msra.mxu0 %v1058
        %1334 = vmatprep.subr.mxu0 0.0
        %1335 = vmatpush2.msra.mxu0 0.0
        %1336 = vmatprep.subr.mxu0 0.0
        %1337 = vmatpush2.msra.mxu0 0.0
        %1338 = vmatprep.subr.mxu0 0.0
        %1339 = vmatpush2.msra.mxu0 0.0
        %1340 = vmatprep.subr.mxu0 0.0
        %1341 = vmatpush2.msra.mxu0 0.0
        %1342 = vmatprep.subr.mxu0 0.0
        %1343 = vmatpush2.msra.mxu0 0.0
        %1344 = vmatprep.subr.mxu0 0.0
        %1345 = vmatpush2.msra.mxu0 0.0
        %1346 = vmatprep.subr.mxu0 0.0
        %1347 = vmatpush2.msra.mxu0 0.0
        %1348 = vmatprep.subr.mxu0 %v1203
        %1349 = vmatpush2.msra.mxu0 %v1202
        %1350 = vmatprep.subr.mxu0 %v1197
        %1351 = vmatpush2.msra.mxu0 %v1196
        %1352 = vmatprep.subr.mxu0 %v1191
        %1353 = vmatpush2.msra.mxu0 %v1190
        %1354 = vmatprep.subr.mxu0 %v1185
        %1355 = vmatpush2.msra.mxu0 %v1184
        %1356 = vmatprep.subr.mxu0 %v1179
        %1357 = vmatpush2.msra.mxu0 %v1178
        %1358 = vmatprep.subr.mxu0 %v1173
        %1359 = vmatpush2.msra.mxu0 %v1172
        %1360 = vmatprep.subr.mxu0 %v1167
        %1361 = vmatpush2.msra.mxu0 %v1166
        %1362 = vmatprep.subr.mxu0 %v1161
        %1363 = vmatpush2.msra.mxu0 %v1160
        %1364 = vmatprep.subr.mxu0 %v1155
        %1365 = vmatpush2.msra.mxu0 %v1154
        %1366 = vmatprep.mubr.f32.mxu0 %v1220
        %1367 = vmatmul.mubr.f32.gmra.mxu0 %v1052
        %v1368 = vpop.f32.mrf.mxu0
        %v1369 = vadd.f32 %v1211, %v1368
        %v1370 = vpop.f32.mrf.mxu0
        %v1371 = vadd.f32 %v1211, %v1370
        %1372 = vmatprep.mubr.f32.mxu0 %v1223
        %1373 = vmatmul.mubr.f32.gmra.mxu0 %v1054
        %v1374 = vpop.f32.mrf.mxu0
        %v1375 = vadd.f32 %v1216, %v1374
        %v1376 = vpop.f32.mrf.mxu0
        %v1377 = vadd.f32 %v1216, %v1376
        %1378 = vdwg.mxu0
        %1379 = vmatprep.subr.mxu0 %v1151
        %1380 = vmatpush1.msra.mxu0 %v1150
        %1381 = vmatprep.subr.mxu0 %v1145
        %1382 = vmatpush1.msra.mxu0 %v1144
        %1383 = vmatprep.subr.mxu0 %v1139
        %1384 = vmatpush1.msra.mxu0 %v1138
        %1385 = vmatprep.subr.mxu0 %v1133
        %1386 = vmatpush1.msra.mxu0 %v1132
        %1387 = vmatprep.subr.mxu0 %v1127
        %1388 = vmatpush1.msra.mxu0 %v1126
        %1389 = vmatprep.subr.mxu0 %v1121
        %1390 = vmatpush1.msra.mxu0 %v1120
        %1391 = vmatprep.subr.mxu0 %v1115
        %1392 = vmatpush1.msra.mxu0 %v1114
        %1393 = vmatprep.subr.mxu0 %v1109
        %1394 = vmatpush1.msra.mxu0 %v1108
        %1395 = vmatprep.subr.mxu0 %v1103
        %1396 = vmatpush1.msra.mxu0 %v1102
        %1397 = vmatprep.subr.mxu0 %v1097
        %1398 = vmatpush1.msra.mxu0 %v1096
        %1399 = vmatprep.subr.mxu0 %v1091
        %1400 = vmatpush1.msra.mxu0 %v1090
        %1401 = vmatprep.subr.mxu0 %v1085
        %1402 = vmatpush1.msra.mxu0 %v1084
        %1403 = vmatprep.subr.mxu0 %v1079
        %1404 = vmatpush1.msra.mxu0 %v1078
        %1405 = vmatprep.subr.mxu0 %v1073
        %1406 = vmatpush1.msra.mxu0 %v1072
        %1407 = vmatprep.subr.mxu0 %v1067
        %1408 = vmatpush1.msra.mxu0 %v1066
        %1409 = vmatprep.subr.mxu0 %v1061
        %1410 = vmatpush1.msra.mxu0 %v1060
        %1411 = vmatprep.subr.mxu0 0.0
        %1412 = vmatpush2.msra.mxu0 0.0
        %1413 = vmatprep.subr.mxu0 0.0
        %1414 = vmatpush2.msra.mxu0 0.0
        %1415 = vmatprep.subr.mxu0 0.0
        %1416 = vmatpush2.msra.mxu0 0.0
        %1417 = vmatprep.subr.mxu0 0.0
        %1418 = vmatpush2.msra.mxu0 0.0
        %1419 = vmatprep.subr.mxu0 0.0
        %1420 = vmatpush2.msra.mxu0 0.0
        %1421 = vmatprep.subr.mxu0 0.0
        %1422 = vmatpush2.msra.mxu0 0.0
        %1423 = vmatprep.subr.mxu0 0.0
        %1424 = vmatpush2.msra.mxu0 0.0
        %1425 = vmatprep.subr.mxu0 %v1205
        %1426 = vmatpush2.msra.mxu0 %v1204
        %1427 = vmatprep.subr.mxu0 %v1199
        %1428 = vmatpush2.msra.mxu0 %v1198
        %1429 = vmatprep.subr.mxu0 %v1193
        %1430 = vmatpush2.msra.mxu0 %v1192
        %1431 = vmatprep.subr.mxu0 %v1187
        %1432 = vmatpush2.msra.mxu0 %v1186
        %1433 = vmatprep.subr.mxu0 %v1181
        %1434 = vmatpush2.msra.mxu0 %v1180
        %1435 = vmatprep.subr.mxu0 %v1175
        %1436 = vmatpush2.msra.mxu0 %v1174
        %1437 = vmatprep.subr.mxu0 %v1169
        %1438 = vmatpush2.msra.mxu0 %v1168
        %1439 = vmatprep.subr.mxu0 %v1163
        %1440 = vmatpush2.msra.mxu0 %v1162
        %1441 = vmatprep.subr.mxu0 %v1157
        %1442 = vmatpush2.msra.mxu0 %v1156
        %1443 = vmatprep.mubr.f32.mxu0 %v1220
        %1444 = vmatmul.mubr.f32.gmra.mxu0 %v1052
        %v1445 = vpop.f32.mrf.mxu0
        %v1446 = vadd.f32 %v1211, %v1445
        %v1447 = vpop.f32.mrf.mxu0
        %v1448 = vadd.f32 %v1211, %v1447
        %1449 = vmatprep.mubr.f32.mxu0 %v1223
        %1450 = vmatmul.mubr.f32.gmra.mxu0 %v1054
        %v1451 = vpop.f32.mrf.mxu0
        %v1452 = vadd.f32 %v1216, %v1451
        %v1453 = vpop.f32.mrf.mxu0
        %v1454 = vadd.f32 %v1216, %v1453
        %1455 = vdwg.mxu0
        %v1456 = vmax.f32 %v1292, 0.0
        %v1457 = vmax.f32 %v1294, 0.0
        %v1458 = vmax.f32 %v1369, 0.0
        %v1459 = vmax.f32 %v1371, 0.0
        %v1460 = vmax.f32 %v1446, 0.0
        %v1461 = vmax.f32 %v1448, 0.0
        %v1462 = vmax.f32 %v1298, 0.0
        %v1463 = vmax.f32 %v1300, 0.0
        %v1464 = vmax.f32 %v1375, 0.0
        %v1465 = vmax.f32 %v1377, 0.0
        %v1466 = vmax.f32 %v1452, 0.0
        %v1467 = vmax.f32 %v1454, 0.0
        %1480 = vrot.lane.b32.xlu0 %v1456, 127
        %v1481 = vpop.permute.xlu0 %1480
        %1482 = vrot.lane.b32.xlu0 %v1457, 127
        %v1483 = vpop.permute.xlu0 %1482
        %1484 = vrot.lane.b32.xlu0 %v1458, 127
        %v1485 = vpop.permute.xlu0 %1484
        %1486 = vrot.lane.b32.xlu0 %v1459, 127
        %v1487 = vpop.permute.xlu0 %1486
        %1488 = vrot.lane.b32.xlu0 %v1460, 127
        %v1489 = vpop.permute.xlu0 %1488
        %1490 = vrot.lane.b32.xlu0 %v1461, 127
        %v1491 = vpop.permute.xlu0 %1490
        %1492 = vrot.lane.b32.xlu0 %v1462, 127
        %v1493 = vpop.permute.xlu0 %1492
        %1494 = vrot.lane.b32.xlu0 %v1463, 127
        %v1495 = vpop.permute.xlu0 %1494
        %1496 = vrot.lane.b32.xlu0 %v1464, 127
        %v1497 = vpop.permute.xlu0 %1496
        %1498 = vrot.lane.b32.xlu0 %v1465, 127
        %v1499 = vpop.permute.xlu0 %1498
        %1500 = vrot.lane.b32.xlu0 %v1466, 127
        %v1501 = vpop.permute.xlu0 %1500
        %1502 = vrot.lane.b32.xlu0 %v1467, 127
        %v1503 = vpop.permute.xlu0 %1502
        %v1504 = vsel %vm392, %v1481, %v1483
        %v1505 = vsel %vm392, %v1483, %v1485
        %v1506 = vsel %vm392, %v1485, %v1487
        %v1507 = vsel %vm392, %v1487, %v1489
        %v1508 = vsel %vm392, %v1489, %v1491
        %v1509 = vsel %vm392, %v1493, %v1495
        %v1510 = vsel %vm392, %v1495, %v1497
        %v1511 = vsel %vm392, %v1497, %v1499
        %v1512 = vsel %vm392, %v1499, %v1501
        %v1513 = vsel %vm392, %v1501, %v1503
        %v1526 = vmax.f32 %v1456, %v1504
        %v1527 = vmax.f32 %v1457, %v1505
        %v1528 = vmax.f32 %v1458, %v1506
        %v1529 = vmax.f32 %v1459, %v1507
        %v1530 = vmax.f32 %v1460, %v1508
        %v1531 = vmax.f32 %v1461, %v1491
        %v1532 = vmax.f32 %v1462, %v1509
        %v1533 = vmax.f32 %v1463, %v1510
        %v1534 = vmax.f32 %v1464, %v1511
        %v1535 = vmax.f32 %v1465, %v1512
        %v1536 = vmax.f32 %v1466, %v1513
        %v1537 = vmax.f32 %v1467, %v1503
        %1550 = vrot.lane.b32.xlu0 %v1526, 96
        %v1551 = vpop.permute.xlu0 %1550
        %1552 = vrot.lane.b32.xlu0 %v1527, 96
        %v1553 = vpop.permute.xlu0 %1552
        %1554 = vrot.lane.b32.xlu0 %v1528, 96
        %v1555 = vpop.permute.xlu0 %1554
        %1556 = vrot.lane.b32.xlu0 %v1529, 96
        %v1557 = vpop.permute.xlu0 %1556
        %1558 = vrot.lane.b32.xlu0 %v1530, 96
        %v1559 = vpop.permute.xlu0 %1558
        %1560 = vrot.lane.b32.xlu0 %v1531, 96
        %v1561 = vpop.permute.xlu0 %1560
        %1562 = vrot.lane.b32.xlu0 %v1532, 96
        %v1563 = vpop.permute.xlu0 %1562
        %1564 = vrot.lane.b32.xlu0 %v1533, 96
        %v1565 = vpop.permute.xlu0 %1564
        %1566 = vrot.lane.b32.xlu0 %v1534, 96
        %v1567 = vpop.permute.xlu0 %1566
        %1568 = vrot.lane.b32.xlu0 %v1535, 96
        %v1569 = vpop.permute.xlu0 %1568
        %1570 = vrot.lane.b32.xlu0 %v1536, 96
        %v1571 = vpop.permute.xlu0 %1570
        %1572 = vrot.lane.b32.xlu0 %v1537, 96
        %v1573 = vpop.permute.xlu0 %1572
        %v1574 = vsel %vm524, %v1551, %v1553
        %v1575 = vsel %vm524, %v1553, %v1555
        %v1576 = vsel %vm524, %v1555, %v1557
        %v1577 = vsel %vm524, %v1557, %v1559
        %v1578 = vsel %vm524, %v1559, %v1561
        %v1579 = vsel %vm524, %v1563, %v1565
        %v1580 = vsel %vm524, %v1565, %v1567
        %v1581 = vsel %vm524, %v1567, %v1569
        %v1582 = vsel %vm524, %v1569, %v1571
        %v1583 = vsel %vm524, %v1571, %v1573
        %v1596 = vmax.f32 %v1526, %v1574
        %v1597 = vmax.f32 %v1527, %v1575
        %v1598 = vmax.f32 %v1528, %v1576
        %v1599 = vmax.f32 %v1529, %v1577
        %v1600 = vmax.f32 %v1530, %v1578
        %v1601 = vmax.f32 %v1531, %v1561
        %v1602 = vmax.f32 %v1532, %v1579
        %v1603 = vmax.f32 %v1533, %v1580
        %v1604 = vmax.f32 %v1534, %v1581
        %v1605 = vmax.f32 %v1535, %v1582
        %v1606 = vmax.f32 %v1536, %v1583
        %v1607 = vmax.f32 %v1537, %v1573
        %1608 = vst [vmem:[#allocation3] sm:$0xff] %v1596
        %1609 = vst [vmem:[#allocation3 + $0x8] sm:$0xff] %v1597
        %1610 = vst [vmem:[#allocation3 + $0x10] sm:$0xff] %v1598
        %vm1611 = vcmask 654336
        %1612 = vst.msk [vmem:[#allocation3 + $0x18] sm:$0xff] %vm1611, %v1599
        %1613 = vst [vmem:[#allocation3 + $0x20] sm:$0xff] %v1602
        %1614 = vst [vmem:[#allocation3 + $0x28] sm:$0xff] %v1603
        %1615 = vst [vmem:[#allocation3 + $0x30] sm:$0xff] %v1604
        %1616 = vst.msk [vmem:[#allocation3 + $0x38] sm:$0xff] %vm1611, %v1605
        %1625 = vrot.lane.b32.xlu0 %v1596, 126
        %v1626 = vpop.permute.xlu0 %1625
        %1627 = vrot.lane.b32.xlu0 %v1597, 126
        %v1628 = vpop.permute.xlu0 %1627
        %1629 = vrot.lane.b32.xlu0 %v1598, 126
        %v1630 = vpop.permute.xlu0 %1629
        %1631 = vrot.lane.b32.xlu0 %v1599, 126
        %v1632 = vpop.permute.xlu0 %1631
        %1633 = vrot.lane.b32.xlu0 %v1602, 126
        %v1634 = vpop.permute.xlu0 %1633
        %1635 = vrot.lane.b32.xlu0 %v1603, 126
        %v1636 = vpop.permute.xlu0 %1635
        %1637 = vrot.lane.b32.xlu0 %v1604, 126
        %v1638 = vpop.permute.xlu0 %1637
        %1639 = vrot.lane.b32.xlu0 %v1605, 126
        %v1640 = vpop.permute.xlu0 %1639
        %v1641 = vsel %vm425, %v1626, %v1628
        %v1642 = vsel %vm425, %v1628, %v1630
        %v1643 = vsel %vm425, %v1630, %v1632
        %v1644 = vsel %vm425, %v1634, %v1636
        %v1645 = vsel %vm425, %v1636, %v1638
        %v1646 = vsel %vm425, %v1638, %v1640
        %1655 = vst [vmem:[#allocation3 + $0x40] sm:$0xff] %v1641
        %1656 = vst [vmem:[#allocation3 + $0x48] sm:$0xff] %v1642
        %1657 = vst [vmem:[#allocation3 + $0x50] sm:$0xff] %v1643
        %1658 = vst.msk [vmem:[#allocation3 + $0x58] sm:$0xff] %vm1611, %v1632
        %1659 = vst [vmem:[#allocation3 + $0x60] sm:$0xff] %v1644
        %1660 = vst [vmem:[#allocation3 + $0x68] sm:$0xff] %v1645
        %1661 = vst [vmem:[#allocation3 + $0x70] sm:$0xff] %v1646
        %1662 = vst.msk [vmem:[#allocation3 + $0x78] sm:$0xff] %vm1611, %v1640
        %1663 = vrot.lane.b32.xlu0 %v1596, 124
        %v1664 = vpop.permute.xlu0 %1663
        %1665 = vrot.lane.b32.xlu0 %v1597, 124
        %v1666 = vpop.permute.xlu0 %1665
        %1667 = vrot.lane.b32.xlu0 %v1598, 124
        %v1668 = vpop.permute.xlu0 %1667
        %1669 = vrot.lane.b32.xlu0 %v1599, 124
        %v1670 = vpop.permute.xlu0 %1669
        %1671 = vrot.lane.b32.xlu0 %v1602, 124
        %v1672 = vpop.permute.xlu0 %1671
        %1673 = vrot.lane.b32.xlu0 %v1603, 124
        %v1674 = vpop.permute.xlu0 %1673
        %1675 = vrot.lane.b32.xlu0 %v1604, 124
        %v1676 = vpop.permute.xlu0 %1675
        %1677 = vrot.lane.b32.xlu0 %v1605, 124
        %v1678 = vpop.permute.xlu0 %1677
        %v1679 = vsel %vm491, %v1664, %v1666
        %v1680 = vsel %vm491, %v1666, %v1668
        %v1681 = vsel %vm491, %v1668, %v1670
        %v1682 = vsel %vm491, %v1672, %v1674
        %v1683 = vsel %vm491, %v1674, %v1676
        %v1684 = vsel %vm491, %v1676, %v1678
        %1693 = vst [vmem:[#allocation3 + $0x80] sm:$0xff] %v1679
        %1694 = vst [vmem:[#allocation3 + $0x88] sm:$0xff] %v1680
        %1695 = vst [vmem:[#allocation3 + $0x90] sm:$0xff] %v1681
        %1696 = vst.msk [vmem:[#allocation3 + $0x98] sm:$0xff] %vm1611, %v1670
        %1697 = vst [vmem:[#allocation3 + $0xa0] sm:$0xff] %v1682
        %1698 = vst [vmem:[#allocation3 + $0xa8] sm:$0xff] %v1683
        %1699 = vst [vmem:[#allocation3 + $0xb0] sm:$0xff] %v1684
        %1700 = vst.msk [vmem:[#allocation3 + $0xb8] sm:$0xff] %vm1611, %v1678
        %1701 = vrot.lane.b32.xlu0 %v1596, 122
        %v1702 = vpop.permute.xlu0 %1701
        %1703 = vrot.lane.b32.xlu0 %v1597, 122
        %v1704 = vpop.permute.xlu0 %1703
        %1705 = vrot.lane.b32.xlu0 %v1598, 122
        %v1706 = vpop.permute.xlu0 %1705
        %1707 = vrot.lane.b32.xlu0 %v1599, 122
        %v1708 = vpop.permute.xlu0 %1707
        %1709 = vrot.lane.b32.xlu0 %v1602, 122
        %v1710 = vpop.permute.xlu0 %1709
        %1711 = vrot.lane.b32.xlu0 %v1603, 122
        %v1712 = vpop.permute.xlu0 %1711
        %1713 = vrot.lane.b32.xlu0 %v1604, 122
        %v1714 = vpop.permute.xlu0 %1713
        %1715 = vrot.lane.b32.xlu0 %v1605, 122
        %v1716 = vpop.permute.xlu0 %1715
        %vm1717 = vcmask 998400
        %v1718 = vsel %vm1717, %v1702, %v1704
        %v1719 = vsel %vm1717, %v1704, %v1706
        %v1720 = vsel %vm1717, %v1706, %v1708
        %v1721 = vsel %vm1717, %v1710, %v1712
        %v1722 = vsel %vm1717, %v1712, %v1714
        %v1723 = vsel %vm1717, %v1714, %v1716
        %1732 = vst [vmem:[#allocation3 + $0xc0] sm:$0xff] %v1718
        %1733 = vst [vmem:[#allocation3 + $0xc8] sm:$0xff] %v1719
        %1734 = vst [vmem:[#allocation3 + $0xd0] sm:$0xff] %v1720
        %1735 = vst.msk [vmem:[#allocation3 + $0xd8] sm:$0xff] %vm1611, %v1708
        %1736 = vst [vmem:[#allocation3 + $0xe0] sm:$0xff] %v1721
        %1737 = vst [vmem:[#allocation3 + $0xe8] sm:$0xff] %v1722
        %1738 = vst [vmem:[#allocation3 + $0xf0] sm:$0xff] %v1723
        %1739 = vst.msk [vmem:[#allocation3 + $0xf8] sm:$0xff] %vm1611, %v1716
        %1740 = vrot.lane.b32.xlu0 %v1596, 120
        %v1741 = vpop.permute.xlu0 %1740
        %1742 = vrot.lane.b32.xlu0 %v1597, 120
        %v1743 = vpop.permute.xlu0 %1742
        %1744 = vrot.lane.b32.xlu0 %v1598, 120
        %v1745 = vpop.permute.xlu0 %1744
        %1746 = vrot.lane.b32.xlu0 %v1599, 120
        %v1747 = vpop.permute.xlu0 %1746
        %1748 = vrot.lane.b32.xlu0 %v1602, 120
        %v1749 = vpop.permute.xlu0 %1748
        %1750 = vrot.lane.b32.xlu0 %v1603, 120
        %v1751 = vpop.permute.xlu0 %1750
        %1752 = vrot.lane.b32.xlu0 %v1604, 120
        %v1753 = vpop.permute.xlu0 %1752
        %1754 = vrot.lane.b32.xlu0 %v1605, 120
        %v1755 = vpop.permute.xlu0 %1754
        %vm1756 = vcmask 982016
        %v1757 = vsel %vm1756, %v1741, %v1743
        %v1758 = vsel %vm1756, %v1743, %v1745
        %v1759 = vsel %vm1756, %v1745, %v1747
        %v1760 = vsel %vm1756, %v1749, %v1751
        %v1761 = vsel %vm1756, %v1751, %v1753
        %v1762 = vsel %vm1756, %v1753, %v1755
        %1771 = vst [vmem:[#allocation3 + $0x100] sm:$0xff] %v1757
        %1772 = vst [vmem:[#allocation3 + $0x108] sm:$0xff] %v1758
        %1773 = vst [vmem:[#allocation3 + $0x110] sm:$0xff] %v1759
        %1774 = vst.msk [vmem:[#allocation3 + $0x118] sm:$0xff] %vm1611, %v1747
        %1775 = vst [vmem:[#allocation3 + $0x120] sm:$0xff] %v1760
        %1776 = vst [vmem:[#allocation3 + $0x128] sm:$0xff] %v1761
        %1777 = vst [vmem:[#allocation3 + $0x130] sm:$0xff] %v1762
        %1778 = vst.msk [vmem:[#allocation3 + $0x138] sm:$0xff] %vm1611, %v1755
        %1781 = vrot.lane.b32.xlu0 %v1596, 64
        %v1782 = vpop.permute.xlu0 %1781
        %1783 = vrot.lane.b32.xlu0 %v1597, 64
        %v1784 = vpop.permute.xlu0 %1783
        %1785 = vrot.lane.b32.xlu0 %v1598, 64
        %v1786 = vpop.permute.xlu0 %1785
        %1787 = vrot.lane.b32.xlu0 %v1599, 64
        %v1788 = vpop.permute.xlu0 %1787
        %1789 = vrot.lane.b32.xlu0 %v1600, 64
        %v1790 = vpop.permute.xlu0 %1789
        %1791 = vrot.lane.b32.xlu0 %v1602, 64
        %v1792 = vpop.permute.xlu0 %1791
        %1793 = vrot.lane.b32.xlu0 %v1603, 64
        %v1794 = vpop.permute.xlu0 %1793
        %1795 = vrot.lane.b32.xlu0 %v1604, 64
        %v1796 = vpop.permute.xlu0 %1795
        %1797 = vrot.lane.b32.xlu0 %v1605, 64
        %v1798 = vpop.permute.xlu0 %1797
        %1799 = vrot.lane.b32.xlu0 %v1606, 64
        %v1800 = vpop.permute.xlu0 %1799
        %v1801 = vsel %vm689, %v1782, %v1784
        %v1802 = vsel %vm689, %v1784, %v1786
        %v1803 = vsel %vm689, %v1786, %v1788
        %v1804 = vsel %vm689, %v1788, %v1790
        %v1805 = vsel %vm689, %v1792, %v1794
        %v1806 = vsel %vm689, %v1794, %v1796
        %v1807 = vsel %vm689, %v1796, %v1798
        %v1808 = vsel %vm689, %v1798, %v1800
        %1817 = vst [vmem:[#allocation3 + $0x140] sm:$0xff] %v1801
        %1818 = vst [vmem:[#allocation3 + $0x148] sm:$0xff] %v1802
        %1819 = vst [vmem:[#allocation3 + $0x150] sm:$0xff] %v1803
        %1820 = vst.msk [vmem:[#allocation3 + $0x158] sm:$0xff] %vm1611, %v1804
        %1821 = vst [vmem:[#allocation3 + $0x160] sm:$0xff] %v1805
        %1822 = vst [vmem:[#allocation3 + $0x168] sm:$0xff] %v1806
        %1823 = vst [vmem:[#allocation3 + $0x170] sm:$0xff] %v1807
        %1824 = vst.msk [vmem:[#allocation3 + $0x178] sm:$0xff] %vm1611, %v1808
        %1825 = vrot.lane.b32.xlu0 %v1596, 62
        %v1826 = vpop.permute.xlu0 %1825
        %1827 = vrot.lane.b32.xlu0 %v1597, 62
        %v1828 = vpop.permute.xlu0 %1827
        %1829 = vrot.lane.b32.xlu0 %v1598, 62
        %v1830 = vpop.permute.xlu0 %1829
        %1831 = vrot.lane.b32.xlu0 %v1599, 62
        %v1832 = vpop.permute.xlu0 %1831
        %1833 = vrot.lane.b32.xlu0 %v1600, 62
        %v1834 = vpop.permute.xlu0 %1833
        %1835 = vrot.lane.b32.xlu0 %v1602, 62
        %v1836 = vpop.permute.xlu0 %1835
        %1837 = vrot.lane.b32.xlu0 %v1603, 62
        %v1838 = vpop.permute.xlu0 %1837
        %1839 = vrot.lane.b32.xlu0 %v1604, 62
        %v1840 = vpop.permute.xlu0 %1839
        %1841 = vrot.lane.b32.xlu0 %v1605, 62
        %v1842 = vpop.permute.xlu0 %1841
        %1843 = vrot.lane.b32.xlu0 %v1606, 62
        %v1844 = vpop.permute.xlu0 %1843
        %v1845 = vsel %vm755, %v1826, %v1828
        %v1846 = vsel %vm755, %v1828, %v1830
        %v1847 = vsel %vm755, %v1830, %v1832
        %v1848 = vsel %vm755, %v1832, %v1834
        %v1849 = vsel %vm755, %v1836, %v1838
        %v1850 = vsel %vm755, %v1838, %v1840
        %v1851 = vsel %vm755, %v1840, %v1842
        %v1852 = vsel %vm755, %v1842, %v1844
        %1861 = vst [vmem:[#allocation3 + $0x180] sm:$0xff] %v1845
        %1862 = vst [vmem:[#allocation3 + $0x188] sm:$0xff] %v1846
        %1863 = vst [vmem:[#allocation3 + $0x190] sm:$0xff] %v1847
        %1864 = vst.msk [vmem:[#allocation3 + $0x198] sm:$0xff] %vm1611, %v1848
        %1865 = vst [vmem:[#allocation3 + $0x1a0] sm:$0xff] %v1849
        %1866 = vst [vmem:[#allocation3 + $0x1a8] sm:$0xff] %v1850
        %1867 = vst [vmem:[#allocation3 + $0x1b0] sm:$0xff] %v1851
        %1868 = vst.msk [vmem:[#allocation3 + $0x1b8] sm:$0xff] %vm1611, %v1852
        %1869 = vrot.lane.b32.xlu0 %v1596, 60
        %v1870 = vpop.permute.xlu0 %1869
        %1871 = vrot.lane.b32.xlu0 %v1597, 60
        %v1872 = vpop.permute.xlu0 %1871
        %1873 = vrot.lane.b32.xlu0 %v1598, 60
        %v1874 = vpop.permute.xlu0 %1873
        %1875 = vrot.lane.b32.xlu0 %v1599, 60
        %v1876 = vpop.permute.xlu0 %1875
        %1877 = vrot.lane.b32.xlu0 %v1600, 60
        %v1878 = vpop.permute.xlu0 %1877
        %1879 = vrot.lane.b32.xlu0 %v1602, 60
        %v1880 = vpop.permute.xlu0 %1879
        %1881 = vrot.lane.b32.xlu0 %v1603, 60
        %v1882 = vpop.permute.xlu0 %1881
        %1883 = vrot.lane.b32.xlu0 %v1604, 60
        %v1884 = vpop.permute.xlu0 %1883
        %1885 = vrot.lane.b32.xlu0 %v1605, 60
        %v1886 = vpop.permute.xlu0 %1885
        %1887 = vrot.lane.b32.xlu0 %v1606, 60
        %v1888 = vpop.permute.xlu0 %1887
        %v1889 = vsel %vm821, %v1870, %v1872
        %v1890 = vsel %vm821, %v1872, %v1874
        %v1891 = vsel %vm821, %v1874, %v1876
        %v1892 = vsel %vm821, %v1876, %v1878
        %v1893 = vsel %vm821, %v1880, %v1882
        %v1894 = vsel %vm821, %v1882, %v1884
        %v1895 = vsel %vm821, %v1884, %v1886
        %v1896 = vsel %vm821, %v1886, %v1888
        %1905 = vst [vmem:[#allocation3 + $0x1c0] sm:$0xff] %v1889
        %1906 = vst [vmem:[#allocation3 + $0x1c8] sm:$0xff] %v1890
        %1907 = vst [vmem:[#allocation3 + $0x1d0] sm:$0xff] %v1891
        %1908 = vst.msk [vmem:[#allocation3 + $0x1d8] sm:$0xff] %vm1611, %v1892
        %1909 = vst [vmem:[#allocation3 + $0x1e0] sm:$0xff] %v1893
        %1910 = vst [vmem:[#allocation3 + $0x1e8] sm:$0xff] %v1894
        %1911 = vst [vmem:[#allocation3 + $0x1f0] sm:$0xff] %v1895
        %1912 = vst.msk [vmem:[#allocation3 + $0x1f8] sm:$0xff] %vm1611, %v1896
        %1913 = vrot.lane.b32.xlu0 %v1596, 58
        %v1914 = vpop.permute.xlu0 %1913
        %1915 = vrot.lane.b32.xlu0 %v1597, 58
        %v1916 = vpop.permute.xlu0 %1915
        %1917 = vrot.lane.b32.xlu0 %v1598, 58
        %v1918 = vpop.permute.xlu0 %1917
        %1919 = vrot.lane.b32.xlu0 %v1599, 58
        %v1920 = vpop.permute.xlu0 %1919
        %1921 = vrot.lane.b32.xlu0 %v1600, 58
        %v1922 = vpop.permute.xlu0 %1921
        %1923 = vrot.lane.b32.xlu0 %v1602, 58
        %v1924 = vpop.permute.xlu0 %1923
        %1925 = vrot.lane.b32.xlu0 %v1603, 58
        %v1926 = vpop.permute.xlu0 %1925
        %1927 = vrot.lane.b32.xlu0 %v1604, 58
        %v1928 = vpop.permute.xlu0 %1927
        %1929 = vrot.lane.b32.xlu0 %v1605, 58
        %v1930 = vpop.permute.xlu0 %1929
        %1931 = vrot.lane.b32.xlu0 %v1606, 58
        %v1932 = vpop.permute.xlu0 %1931
        %vm1933 = vcmask 474112
        %v1934 = vsel %vm1933, %v1914, %v1916
        %v1935 = vsel %vm1933, %v1916, %v1918
        %v1936 = vsel %vm1933, %v1918, %v1920
        %v1937 = vsel %vm1933, %v1920, %v1922
        %v1938 = vsel %vm1933, %v1924, %v1926
        %v1939 = vsel %vm1933, %v1926, %v1928
        %v1940 = vsel %vm1933, %v1928, %v1930
        %v1941 = vsel %vm1933, %v1930, %v1932
        %1950 = vst [vmem:[#allocation3 + $0x200] sm:$0xff] %v1934
        %1951 = vst [vmem:[#allocation3 + $0x208] sm:$0xff] %v1935
        %1952 = vst [vmem:[#allocation3 + $0x210] sm:$0xff] %v1936
        %1953 = vst.msk [vmem:[#allocation3 + $0x218] sm:$0xff] %vm1611, %v1937
        %1954 = vst [vmem:[#allocation3 + $0x220] sm:$0xff] %v1938
        %1955 = vst [vmem:[#allocation3 + $0x228] sm:$0xff] %v1939
        %1956 = vst [vmem:[#allocation3 + $0x230] sm:$0xff] %v1940
        %1957 = vst.msk [vmem:[#allocation3 + $0x238] sm:$0xff] %vm1611, %v1941
        %1958 = vrot.lane.b32.xlu0 %v1596, 56
        %v1959 = vpop.permute.xlu0 %1958
        %1960 = vrot.lane.b32.xlu0 %v1597, 56
        %v1961 = vpop.permute.xlu0 %1960
        %1962 = vrot.lane.b32.xlu0 %v1598, 56
        %v1963 = vpop.permute.xlu0 %1962
        %1964 = vrot.lane.b32.xlu0 %v1599, 56
        %v1965 = vpop.permute.xlu0 %1964
        %1966 = vrot.lane.b32.xlu0 %v1600, 56
        %v1967 = vpop.permute.xlu0 %1966
        %1968 = vrot.lane.b32.xlu0 %v1602, 56
        %v1969 = vpop.permute.xlu0 %1968
        %1970 = vrot.lane.b32.xlu0 %v1603, 56
        %v1971 = vpop.permute.xlu0 %1970
        %1972 = vrot.lane.b32.xlu0 %v1604, 56
        %v1973 = vpop.permute.xlu0 %1972
        %1974 = vrot.lane.b32.xlu0 %v1605, 56
        %v1975 = vpop.permute.xlu0 %1974
        %1976 = vrot.lane.b32.xlu0 %v1606, 56
        %v1977 = vpop.permute.xlu0 %1976
        %vm1978 = vcmask 457728
        %v1979 = vsel %vm1978, %v1959, %v1961
        %v1980 = vsel %vm1978, %v1961, %v1963
        %v1981 = vsel %vm1978, %v1963, %v1965
        %v1982 = vsel %vm1978, %v1965, %v1967
        %v1983 = vsel %vm1978, %v1969, %v1971
        %v1984 = vsel %vm1978, %v1971, %v1973
        %v1985 = vsel %vm1978, %v1973, %v1975
        %v1986 = vsel %vm1978, %v1975, %v1977
        %1995 = vst [vmem:[#allocation3 + $0x240] sm:$0xff] %v1979
        %1996 = vst [vmem:[#allocation3 + $0x248] sm:$0xff] %v1980
        %1997 = vst [vmem:[#allocation3 + $0x250] sm:$0xff] %v1981
        %1998 = vst.msk [vmem:[#allocation3 + $0x258] sm:$0xff] %vm1611, %v1982
        %1999 = vst [vmem:[#allocation3 + $0x260] sm:$0xff] %v1983
        %2000 = vst [vmem:[#allocation3 + $0x268] sm:$0xff] %v1984
        %2001 = vst [vmem:[#allocation3 + $0x270] sm:$0xff] %v1985
        %2002 = vst.msk [vmem:[#allocation3 + $0x278] sm:$0xff] %vm1611, %v1986
        %2003 = vst [vmem:[#allocation3 + $0x280] sm:$0xff] %v1597
        %2004 = vst [vmem:[#allocation3 + $0x288] sm:$0xff] %v1598
        %2005 = vst [vmem:[#allocation3 + $0x290] sm:$0xff] %v1599
        %2006 = vst.msk [vmem:[#allocation3 + $0x298] sm:$0xff] %vm1611, %v1600
        %2007 = vst [vmem:[#allocation3 + $0x2a0] sm:$0xff] %v1603
        %2008 = vst [vmem:[#allocation3 + $0x2a8] sm:$0xff] %v1604
        %2009 = vst [vmem:[#allocation3 + $0x2b0] sm:$0xff] %v1605
        %2010 = vst.msk [vmem:[#allocation3 + $0x2b8] sm:$0xff] %vm1611, %v1606
        %2011 = vrot.lane.b32.xlu0 %v1600, 126
        %v2012 = vpop.permute.xlu0 %2011
        %2013 = vrot.lane.b32.xlu0 %v1606, 126
        %v2014 = vpop.permute.xlu0 %2013
        %v2015 = vsel %vm425, %v1632, %v2012
        %v2016 = vsel %vm425, %v1640, %v2014
        %2021 = vst [vmem:[#allocation3 + $0x2c0] sm:$0xff] %v1642
        %2022 = vst [vmem:[#allocation3 + $0x2c8] sm:$0xff] %v1643
        %2023 = vst [vmem:[#allocation3 + $0x2d0] sm:$0xff] %v2015
        %2024 = vst.msk [vmem:[#allocation3 + $0x2d8] sm:$0xff] %vm1611, %v2012
        %2025 = vst [vmem:[#allocation3 + $0x2e0] sm:$0xff] %v1645
        %2026 = vst [vmem:[#allocation3 + $0x2e8] sm:$0xff] %v1646
        %2027 = vst [vmem:[#allocation3 + $0x2f0] sm:$0xff] %v2016
        %2028 = vst.msk [vmem:[#allocation3 + $0x2f8] sm:$0xff] %vm1611, %v2014
        %2029 = vrot.lane.b32.xlu0 %v1600, 124
        %v2030 = vpop.permute.xlu0 %2029
        %2031 = vrot.lane.b32.xlu0 %v1606, 124
        %v2032 = vpop.permute.xlu0 %2031
        %v2033 = vsel %vm491, %v1670, %v2030
        %v2034 = vsel %vm491, %v1678, %v2032
        %2039 = vst [vmem:[#allocation3 + $0x300] sm:$0xff] %v1680
        %2040 = vst [vmem:[#allocation3 + $0x308] sm:$0xff] %v1681
        %2041 = vst [vmem:[#allocation3 + $0x310] sm:$0xff] %v2033
        %2042 = vst.msk [vmem:[#allocation3 + $0x318] sm:$0xff] %vm1611, %v2030
        %2043 = vst [vmem:[#allocation3 + $0x320] sm:$0xff] %v1683
        %2044 = vst [vmem:[#allocation3 + $0x328] sm:$0xff] %v1684
        %2045 = vst [vmem:[#allocation3 + $0x330] sm:$0xff] %v2034
        %2046 = vst.msk [vmem:[#allocation3 + $0x338] sm:$0xff] %vm1611, %v2032
        %2047 = vrot.lane.b32.xlu0 %v1600, 122
        %v2048 = vpop.permute.xlu0 %2047
        %2049 = vrot.lane.b32.xlu0 %v1606, 122
        %v2050 = vpop.permute.xlu0 %2049
        %v2051 = vsel %vm1717, %v1708, %v2048
        %v2052 = vsel %vm1717, %v1716, %v2050
        %2057 = vst [vmem:[#allocation3 + $0x340] sm:$0xff] %v1719
        %2058 = vst [vmem:[#allocation3 + $0x348] sm:$0xff] %v1720
        %2059 = vst [vmem:[#allocation3 + $0x350] sm:$0xff] %v2051
        %2060 = vst.msk [vmem:[#allocation3 + $0x358] sm:$0xff] %vm1611, %v2048
        %2061 = vst [vmem:[#allocation3 + $0x360] sm:$0xff] %v1722
        %2062 = vst [vmem:[#allocation3 + $0x368] sm:$0xff] %v1723
        %2063 = vst [vmem:[#allocation3 + $0x370] sm:$0xff] %v2052
        %2064 = vst.msk [vmem:[#allocation3 + $0x378] sm:$0xff] %vm1611, %v2050
        %2065 = vrot.lane.b32.xlu0 %v1600, 120
        %v2066 = vpop.permute.xlu0 %2065
        %2067 = vrot.lane.b32.xlu0 %v1606, 120
        %v2068 = vpop.permute.xlu0 %2067
        %v2069 = vsel %vm1756, %v1747, %v2066
        %v2070 = vsel %vm1756, %v1755, %v2068
        %2075 = vst [vmem:[#allocation3 + $0x380] sm:$0xff] %v1758
        %2076 = vst [vmem:[#allocation3 + $0x388] sm:$0xff] %v1759
        %2077 = vst [vmem:[#allocation3 + $0x390] sm:$0xff] %v2069
        %2078 = vst.msk [vmem:[#allocation3 + $0x398] sm:$0xff] %vm1611, %v2066
        %2079 = vst [vmem:[#allocation3 + $0x3a0] sm:$0xff] %v1761
        %2080 = vst [vmem:[#allocation3 + $0x3a8] sm:$0xff] %v1762
        %2081 = vst [vmem:[#allocation3 + $0x3b0] sm:$0xff] %v2070
        %2082 = vst.msk [vmem:[#allocation3 + $0x3b8] sm:$0xff] %vm1611, %v2068
        %2085 = vrot.lane.b32.xlu0 %v1601, 64
        %v2086 = vpop.permute.xlu0 %2085
        %2087 = vrot.lane.b32.xlu0 %v1607, 64
        %v2088 = vpop.permute.xlu0 %2087
        %v2089 = vsel %vm689, %v1790, %v2086
        %v2090 = vsel %vm689, %v1800, %v2088
        %2093 = vst [vmem:[#allocation3 + $0x3c0] sm:$0xff] %v1802
        %2094 = vst [vmem:[#allocation3 + $0x3c8] sm:$0xff] %v1803
        %2095 = vst [vmem:[#allocation3 + $0x3d0] sm:$0xff] %v1804
        %2096 = vst.msk [vmem:[#allocation3 + $0x3d8] sm:$0xff] %vm1611, %v2089
        %2097 = vst [vmem:[#allocation3 + $0x3e0] sm:$0xff] %v1806
        %2098 = vst [vmem:[#allocation3 + $0x3e8] sm:$0xff] %v1807
        %2099 = vst [vmem:[#allocation3 + $0x3f0] sm:$0xff] %v1808
        %2100 = vst.msk [vmem:[#allocation3 + $0x3f8] sm:$0xff] %vm1611, %v2090
        %2101 = vrot.lane.b32.xlu0 %v1601, 62
        %v2102 = vpop.permute.xlu0 %2101
        %2103 = vrot.lane.b32.xlu0 %v1607, 62
        %v2104 = vpop.permute.xlu0 %2103
        %v2105 = vsel %vm755, %v1834, %v2102
        %v2106 = vsel %vm755, %v1844, %v2104
        %2109 = vst [vmem:[#allocation3 + $0x400] sm:$0xff] %v1846
        %2110 = vst [vmem:[#allocation3 + $0x408] sm:$0xff] %v1847
        %2111 = vst [vmem:[#allocation3 + $0x410] sm:$0xff] %v1848
        %2112 = vst.msk [vmem:[#allocation3 + $0x418] sm:$0xff] %vm1611, %v2105
        %2113 = vst [vmem:[#allocation3 + $0x420] sm:$0xff] %v1850
        %2114 = vst [vmem:[#allocation3 + $0x428] sm:$0xff] %v1851
        %2115 = vst [vmem:[#allocation3 + $0x430] sm:$0xff] %v1852
        %2116 = vst.msk [vmem:[#allocation3 + $0x438] sm:$0xff] %vm1611, %v2106
        %2117 = vrot.lane.b32.xlu0 %v1601, 60
        %v2118 = vpop.permute.xlu0 %2117
        %2119 = vrot.lane.b32.xlu0 %v1607, 60
        %v2120 = vpop.permute.xlu0 %2119
        %v2121 = vsel %vm821, %v1878, %v2118
        %v2122 = vsel %vm821, %v1888, %v2120
        %2125 = vst [vmem:[#allocation3 + $0x440] sm:$0xff] %v1890
        %2126 = vst [vmem:[#allocation3 + $0x448] sm:$0xff] %v1891
        %2127 = vst [vmem:[#allocation3 + $0x450] sm:$0xff] %v1892
        %2128 = vst.msk [vmem:[#allocation3 + $0x458] sm:$0xff] %vm1611, %v2121
        %2129 = vst [vmem:[#allocation3 + $0x460] sm:$0xff] %v1894
        %2130 = vst [vmem:[#allocation3 + $0x468] sm:$0xff] %v1895
        %2131 = vst [vmem:[#allocation3 + $0x470] sm:$0xff] %v1896
        %2132 = vst.msk [vmem:[#allocation3 + $0x478] sm:$0xff] %vm1611, %v2122
        %2133 = vrot.lane.b32.xlu0 %v1601, 58
        %v2134 = vpop.permute.xlu0 %2133
        %2135 = vrot.lane.b32.xlu0 %v1607, 58
        %v2136 = vpop.permute.xlu0 %2135
        %v2137 = vsel %vm1933, %v1922, %v2134
        %v2138 = vsel %vm1933, %v1932, %v2136
        %2141 = vst [vmem:[#allocation3 + $0x480] sm:$0xff] %v1935
        %2142 = vst [vmem:[#allocation3 + $0x488] sm:$0xff] %v1936
        %2143 = vst [vmem:[#allocation3 + $0x490] sm:$0xff] %v1937
        %2144 = vst.msk [vmem:[#allocation3 + $0x498] sm:$0xff] %vm1611, %v2137
        %2145 = vst [vmem:[#allocation3 + $0x4a0] sm:$0xff] %v1939
        %2146 = vst [vmem:[#allocation3 + $0x4a8] sm:$0xff] %v1940
        %2147 = vst [vmem:[#allocation3 + $0x4b0] sm:$0xff] %v1941
        %2148 = vst.msk [vmem:[#allocation3 + $0x4b8] sm:$0xff] %vm1611, %v2138
        %2149 = vrot.lane.b32.xlu0 %v1601, 56
        %v2150 = vpop.permute.xlu0 %2149
        %2151 = vrot.lane.b32.xlu0 %v1607, 56
        %v2152 = vpop.permute.xlu0 %2151
        %v2153 = vsel %vm1978, %v1967, %v2150
        %v2154 = vsel %vm1978, %v1977, %v2152
        %2157 = vst [vmem:[#allocation3 + $0x4c0] sm:$0xff] %v1980
        %2158 = vst [vmem:[#allocation3 + $0x4c8] sm:$0xff] %v1981
        %2159 = vst [vmem:[#allocation3 + $0x4d0] sm:$0xff] %v1982
        %2160 = vst.msk [vmem:[#allocation3 + $0x4d8] sm:$0xff] %vm1611, %v2153
        %2161 = vst [vmem:[#allocation3 + $0x4e0] sm:$0xff] %v1984
        %2162 = vst [vmem:[#allocation3 + $0x4e8] sm:$0xff] %v1985
        %2163 = vst [vmem:[#allocation3 + $0x4f0] sm:$0xff] %v1986
        %2164 = vst.msk [vmem:[#allocation3 + $0x4f8] sm:$0xff] %vm1611, %v2154
        %2165 = vst [vmem:[#allocation3 + $0x500] sm:$0xff] %v1598
        %2166 = vst [vmem:[#allocation3 + $0x508] sm:$0xff] %v1599
        %2167 = vst [vmem:[#allocation3 + $0x510] sm:$0xff] %v1600
        %2168 = vst.msk [vmem:[#allocation3 + $0x518] sm:$0xff] %vm1611, %v1601
        %2169 = vst [vmem:[#allocation3 + $0x520] sm:$0xff] %v1604
        %2170 = vst [vmem:[#allocation3 + $0x528] sm:$0xff] %v1605
        %2171 = vst [vmem:[#allocation3 + $0x530] sm:$0xff] %v1606
        %2172 = vst.msk [vmem:[#allocation3 + $0x538] sm:$0xff] %vm1611, %v1607
        %2173 = vrot.lane.b32.xlu0 %v1601, 126
        %v2174 = vpop.permute.xlu0 %2173
        %2175 = vrot.lane.b32.xlu0 %v1607, 126
        %v2176 = vpop.permute.xlu0 %2175
        %v2177 = vsel %vm425, %v2012, %v2174
        %v2178 = vsel %vm425, %v2014, %v2176
        %2183 = vst [vmem:[#allocation3 + $0x540] sm:$0xff] %v1643
        %2184 = vst [vmem:[#allocation3 + $0x548] sm:$0xff] %v2015
        %2185 = vst [vmem:[#allocation3 + $0x550] sm:$0xff] %v2177
        %2186 = vst.msk [vmem:[#allocation3 + $0x558] sm:$0xff] %vm1611, %v2174
        %2187 = vst [vmem:[#allocation3 + $0x560] sm:$0xff] %v1646
        %2188 = vst [vmem:[#allocation3 + $0x568] sm:$0xff] %v2016
        %2189 = vst [vmem:[#allocation3 + $0x570] sm:$0xff] %v2178
        %2190 = vst.msk [vmem:[#allocation3 + $0x578] sm:$0xff] %vm1611, %v2176
        %2191 = vrot.lane.b32.xlu0 %v1601, 124
        %v2192 = vpop.permute.xlu0 %2191
        %2193 = vrot.lane.b32.xlu0 %v1607, 124
        %v2194 = vpop.permute.xlu0 %2193
        %v2195 = vsel %vm491, %v2030, %v2192
        %v2196 = vsel %vm491, %v2032, %v2194
        %2201 = vst [vmem:[#allocation3 + $0x580] sm:$0xff] %v1681
        %2202 = vst [vmem:[#allocation3 + $0x588] sm:$0xff] %v2033
        %2203 = vst [vmem:[#allocation3 + $0x590] sm:$0xff] %v2195
        %2204 = vst.msk [vmem:[#allocation3 + $0x598] sm:$0xff] %vm1611, %v2192
        %2205 = vst [vmem:[#allocation3 + $0x5a0] sm:$0xff] %v1684
        %2206 = vst [vmem:[#allocation3 + $0x5a8] sm:$0xff] %v2034
        %2207 = vst [vmem:[#allocation3 + $0x5b0] sm:$0xff] %v2196
        %2208 = vst.msk [vmem:[#allocation3 + $0x5b8] sm:$0xff] %vm1611, %v2194
        %2209 = vrot.lane.b32.xlu0 %v1601, 122
        %v2210 = vpop.permute.xlu0 %2209
        %2211 = vrot.lane.b32.xlu0 %v1607, 122
        %v2212 = vpop.permute.xlu0 %2211
        %v2213 = vsel %vm1717, %v2048, %v2210
        %v2214 = vsel %vm1717, %v2050, %v2212
        %2219 = vst [vmem:[#allocation3 + $0x5c0] sm:$0xff] %v1720
        %2220 = vst [vmem:[#allocation3 + $0x5c8] sm:$0xff] %v2051
        %2221 = vst [vmem:[#allocation3 + $0x5d0] sm:$0xff] %v2213
        %2222 = vst.msk [vmem:[#allocation3 + $0x5d8] sm:$0xff] %vm1611, %v2210
        %2223 = vst [vmem:[#allocation3 + $0x5e0] sm:$0xff] %v1723
        %2224 = vst [vmem:[#allocation3 + $0x5e8] sm:$0xff] %v2052
        %2225 = vst [vmem:[#allocation3 + $0x5f0] sm:$0xff] %v2214
        %2226 = vst.msk [vmem:[#allocation3 + $0x5f8] sm:$0xff] %vm1611, %v2212
        %2227 = vrot.lane.b32.xlu0 %v1601, 120
        %v2228 = vpop.permute.xlu0 %2227
        %2229 = vrot.lane.b32.xlu0 %v1607, 120
        %v2230 = vpop.permute.xlu0 %2229
        %v2231 = vsel %vm1756, %v2066, %v2228
        %v2232 = vsel %vm1756, %v2068, %v2230
        %2237 = vst [vmem:[#allocation3 + $0x600] sm:$0xff] %v1759
        %2238 = vst [vmem:[#allocation3 + $0x608] sm:$0xff] %v2069
        %2239 = vst [vmem:[#allocation3 + $0x610] sm:$0xff] %v2231
        %2240 = vst.msk [vmem:[#allocation3 + $0x618] sm:$0xff] %vm1611, %v2228
        %2241 = vst [vmem:[#allocation3 + $0x620] sm:$0xff] %v1762
        %2242 = vst [vmem:[#allocation3 + $0x628] sm:$0xff] %v2070
        %2243 = vst [vmem:[#allocation3 + $0x630] sm:$0xff] %v2232
        %2244 = vst.msk [vmem:[#allocation3 + $0x638] sm:$0xff] %vm1611, %v2230
        %v2245 = vld [vmem:[%s3] sm:$0xff]
        %v2246 = vld [vmem:[%s3 + $0x8] sm:$0xff]
        %v2247 = vld [vmem:[%s3 + $0x10] sm:$0xff]
        %v2248 = vld [vmem:[%s3 + $0x18] sm:$0xff]
        %v2249 = vld [vmem:[%s3 + $0x20] sm:$0xff]
        %v2250 = vld [vmem:[%s3 + $0x28] sm:$0xff]
        %v2251 = vld [vmem:[%s3 + $0x30] sm:$0xff]
        %v2252 = vld [vmem:[%s3 + $0x38] sm:$0xff]
        %v2253 = vld [vmem:[%s3 + $0x40] sm:$0xf]
        %v2254 = vld [vmem:[%s3 + $0x48] sm:$0xf]
        %v2255 = vld [vmem:[%s3 + $0x50] sm:$0xf]
        %v2256 = vld [vmem:[%s3 + $0x58] sm:$0xf]
        %v2257 = vld [vmem:[#allocation3] sm:$0xff]
        %v2258 = vld [vmem:[#allocation3 + $0x8] sm:$0xff]
        %v2259 = vld [vmem:[#allocation3 + $0x10] sm:$0xff]
        %v2260 = vld [vmem:[#allocation3 + $0x18] sm:$0xff]
        %v2261 = vld [vmem:[#allocation3 + $0x20] sm:$0xff]
        %v2262 = vld [vmem:[#allocation3 + $0x28] sm:$0xff]
        %v2263 = vld [vmem:[#allocation3 + $0x30] sm:$0xff]
        %v2264 = vld [vmem:[#allocation3 + $0x38] sm:$0xff]
        %v2265 = vld [vmem:[#allocation3 + $0x40] sm:$0xff]
        %v2266 = vld [vmem:[#allocation3 + $0x48] sm:$0xff]
        %v2267 = vld [vmem:[#allocation3 + $0x50] sm:$0xff]
        %v2268 = vld [vmem:[#allocation3 + $0x58] sm:$0xff]
        %v2269 = vld [vmem:[#allocation3 + $0x60] sm:$0xff]
        %v2270 = vld [vmem:[#allocation3 + $0x68] sm:$0xff]
        %v2271 = vld [vmem:[#allocation3 + $0x70] sm:$0xff]
        %v2272 = vld [vmem:[#allocation3 + $0x78] sm:$0xff]
        %v2273 = vld [vmem:[#allocation3 + $0x80] sm:$0xff]
        %v2274 = vld [vmem:[#allocation3 + $0x88] sm:$0xff]
        %v2275 = vld [vmem:[#allocation3 + $0x90] sm:$0xff]
        %v2276 = vld [vmem:[#allocation3 + $0x98] sm:$0xff]
        %v2277 = vld [vmem:[#allocation3 + $0xa0] sm:$0xff]
        %v2278 = vld [vmem:[#allocation3 + $0xa8] sm:$0xff]
        %v2279 = vld [vmem:[#allocation3 + $0xb0] sm:$0xff]
        %v2280 = vld [vmem:[#allocation3 + $0xb8] sm:$0xff]
        %v2281 = vld [vmem:[#allocation3 + $0xc0] sm:$0xff]
        %v2282 = vld [vmem:[#allocation3 + $0xc8] sm:$0xff]
        %v2283 = vld [vmem:[#allocation3 + $0xd0] sm:$0xff]
        %v2284 = vld [vmem:[#allocation3 + $0xd8] sm:$0xff]
        %v2285 = vld [vmem:[#allocation3 + $0xe0] sm:$0xff]
        %v2286 = vld [vmem:[#allocation3 + $0xe8] sm:$0xff]
        %v2287 = vld [vmem:[#allocation3 + $0xf0] sm:$0xff]
        %v2288 = vld [vmem:[#allocation3 + $0xf8] sm:$0xff]
        %v2289 = vld [vmem:[#allocation3 + $0x100] sm:$0xff]
        %v2290 = vld [vmem:[#allocation3 + $0x108] sm:$0xff]
        %v2291 = vld [vmem:[#allocation3 + $0x110] sm:$0xff]
        %v2292 = vld [vmem:[#allocation3 + $0x118] sm:$0xff]
        %v2293 = vld [vmem:[#allocation3 + $0x120] sm:$0xff]
        %v2294 = vld [vmem:[#allocation3 + $0x128] sm:$0xff]
        %v2295 = vld [vmem:[#allocation3 + $0x130] sm:$0xff]
        %v2296 = vld [vmem:[#allocation3 + $0x138] sm:$0xff]
        %v2297 = vld [vmem:[#allocation3 + $0x140] sm:$0xff]
        %v2298 = vld [vmem:[#allocation3 + $0x148] sm:$0xff]
        %v2299 = vld [vmem:[#allocation3 + $0x150] sm:$0xff]
        %v2300 = vld [vmem:[#allocation3 + $0x158] sm:$0xff]
        %v2301 = vld [vmem:[#allocation3 + $0x160] sm:$0xff]
        %v2302 = vld [vmem:[#allocation3 + $0x168] sm:$0xff]
        %v2303 = vld [vmem:[#allocation3 + $0x170] sm:$0xff]
        %v2304 = vld [vmem:[#allocation3 + $0x178] sm:$0xff]
        %v2305 = vld [vmem:[#allocation3 + $0x180] sm:$0xff]
        %v2306 = vld [vmem:[#allocation3 + $0x188] sm:$0xff]
        %v2307 = vld [vmem:[#allocation3 + $0x190] sm:$0xff]
        %v2308 = vld [vmem:[#allocation3 + $0x198] sm:$0xff]
        %v2309 = vld [vmem:[#allocation3 + $0x1a0] sm:$0xff]
        %v2310 = vld [vmem:[#allocation3 + $0x1a8] sm:$0xff]
        %v2311 = vld [vmem:[#allocation3 + $0x1b0] sm:$0xff]
        %v2312 = vld [vmem:[#allocation3 + $0x1b8] sm:$0xff]
        %v2313 = vld [vmem:[#allocation3 + $0x1c0] sm:$0xff]
        %v2314 = vld [vmem:[#allocation3 + $0x1c8] sm:$0xff]
        %v2315 = vld [vmem:[#allocation3 + $0x1d0] sm:$0xff]
        %v2316 = vld [vmem:[#allocation3 + $0x1d8] sm:$0xff]
        %v2317 = vld [vmem:[#allocation3 + $0x1e0] sm:$0xff]
        %v2318 = vld [vmem:[#allocation3 + $0x1e8] sm:$0xff]
        %v2319 = vld [vmem:[#allocation3 + $0x1f0] sm:$0xff]
        %v2320 = vld [vmem:[#allocation3 + $0x1f8] sm:$0xff]
        %v2321 = vld [vmem:[#allocation3 + $0x200] sm:$0xff]
        %v2322 = vld [vmem:[#allocation3 + $0x208] sm:$0xff]
        %v2323 = vld [vmem:[#allocation3 + $0x210] sm:$0xff]
        %v2324 = vld [vmem:[#allocation3 + $0x218] sm:$0xff]
        %v2325 = vld [vmem:[#allocation3 + $0x220] sm:$0xff]
        %v2326 = vld [vmem:[#allocation3 + $0x228] sm:$0xff]
        %v2327 = vld [vmem:[#allocation3 + $0x230] sm:$0xff]
        %v2328 = vld [vmem:[#allocation3 + $0x238] sm:$0xff]
        %v2329 = vld [vmem:[#allocation3 + $0x240] sm:$0xff]
        %v2330 = vld [vmem:[#allocation3 + $0x248] sm:$0xff]
        %v2331 = vld [vmem:[#allocation3 + $0x250] sm:$0xff]
        %v2332 = vld [vmem:[#allocation3 + $0x258] sm:$0xff]
        %v2333 = vld [vmem:[#allocation3 + $0x260] sm:$0xff]
        %v2334 = vld [vmem:[#allocation3 + $0x268] sm:$0xff]
        %v2335 = vld [vmem:[#allocation3 + $0x270] sm:$0xff]
        %v2336 = vld [vmem:[#allocation3 + $0x278] sm:$0xff]
        %v2337 = vld [vmem:[#allocation3 + $0x280] sm:$0xff]
        %v2338 = vld [vmem:[#allocation3 + $0x288] sm:$0xff]
        %v2339 = vld [vmem:[#allocation3 + $0x290] sm:$0xff]
        %v2340 = vld [vmem:[#allocation3 + $0x298] sm:$0xff]
        %v2341 = vld [vmem:[#allocation3 + $0x2a0] sm:$0xff]
        %v2342 = vld [vmem:[#allocation3 + $0x2a8] sm:$0xff]
        %v2343 = vld [vmem:[#allocation3 + $0x2b0] sm:$0xff]
        %v2344 = vld [vmem:[#allocation3 + $0x2b8] sm:$0xff]
        %v2345 = vld [vmem:[#allocation3 + $0x2c0] sm:$0xff]
        %v2346 = vld [vmem:[#allocation3 + $0x2c8] sm:$0xff]
        %v2347 = vld [vmem:[#allocation3 + $0x2d0] sm:$0xff]
        %v2348 = vld [vmem:[#allocation3 + $0x2d8] sm:$0xff]
        %v2349 = vld [vmem:[#allocation3 + $0x2e0] sm:$0xff]
        %v2350 = vld [vmem:[#allocation3 + $0x2e8] sm:$0xff]
        %v2351 = vld [vmem:[#allocation3 + $0x2f0] sm:$0xff]
        %v2352 = vld [vmem:[#allocation3 + $0x2f8] sm:$0xff]
        %v2353 = vld [vmem:[#allocation3 + $0x300] sm:$0xff]
        %v2354 = vld [vmem:[#allocation3 + $0x308] sm:$0xff]
        %v2355 = vld [vmem:[#allocation3 + $0x310] sm:$0xff]
        %v2356 = vld [vmem:[#allocation3 + $0x318] sm:$0xff]
        %v2357 = vld [vmem:[#allocation3 + $0x320] sm:$0xff]
        %v2358 = vld [vmem:[#allocation3 + $0x328] sm:$0xff]
        %v2359 = vld [vmem:[#allocation3 + $0x330] sm:$0xff]
        %v2360 = vld [vmem:[#allocation3 + $0x338] sm:$0xff]
        %v2361 = vld [vmem:[#allocation3 + $0x340] sm:$0xff]
        %v2362 = vld [vmem:[#allocation3 + $0x348] sm:$0xff]
        %v2363 = vld [vmem:[#allocation3 + $0x350] sm:$0xff]
        %v2364 = vld [vmem:[#allocation3 + $0x358] sm:$0xff]
        %v2365 = vld [vmem:[#allocation3 + $0x360] sm:$0xff]
        %v2366 = vld [vmem:[#allocation3 + $0x368] sm:$0xff]
        %v2367 = vld [vmem:[#allocation3 + $0x370] sm:$0xff]
        %v2368 = vld [vmem:[#allocation3 + $0x378] sm:$0xff]
        %v2369 = vld [vmem:[#allocation3 + $0x380] sm:$0xff]
        %v2370 = vld [vmem:[#allocation3 + $0x388] sm:$0xff]
        %v2371 = vld [vmem:[#allocation3 + $0x390] sm:$0xff]
        %v2372 = vld [vmem:[#allocation3 + $0x398] sm:$0xff]
        %v2373 = vld [vmem:[#allocation3 + $0x3a0] sm:$0xff]
        %v2374 = vld [vmem:[#allocation3 + $0x3a8] sm:$0xff]
        %v2375 = vld [vmem:[#allocation3 + $0x3b0] sm:$0xff]
        %v2376 = vld [vmem:[#allocation3 + $0x3b8] sm:$0xff]
        %v2377 = vld [vmem:[#allocation3 + $0x3c0] sm:$0xff]
        %v2378 = vld [vmem:[#allocation3 + $0x3c8] sm:$0xff]
        %v2379 = vld [vmem:[#allocation3 + $0x3d0] sm:$0xff]
        %v2380 = vld [vmem:[#allocation3 + $0x3d8] sm:$0xff]
        %v2381 = vld [vmem:[#allocation3 + $0x3e0] sm:$0xff]
        %v2382 = vld [vmem:[#allocation3 + $0x3e8] sm:$0xff]
        %v2383 = vld [vmem:[#allocation3 + $0x3f0] sm:$0xff]
        %v2384 = vld [vmem:[#allocation3 + $0x3f8] sm:$0xff]
        %v2385 = vld [vmem:[#allocation3 + $0x400] sm:$0xff]
        %v2386 = vld [vmem:[#allocation3 + $0x408] sm:$0xff]
        %v2387 = vld [vmem:[#allocation3 + $0x410] sm:$0xff]
        %v2388 = vld [vmem:[#allocation3 + $0x418] sm:$0xff]
        %v2389 = vld [vmem:[#allocation3 + $0x420] sm:$0xff]
        %v2390 = vld [vmem:[#allocation3 + $0x428] sm:$0xff]
        %v2391 = vld [vmem:[#allocation3 + $0x430] sm:$0xff]
        %v2392 = vld [vmem:[#allocation3 + $0x438] sm:$0xff]
        %v2393 = vld [vmem:[#allocation3 + $0x440] sm:$0xff]
        %v2394 = vld [vmem:[#allocation3 + $0x448] sm:$0xff]
        %v2395 = vld [vmem:[#allocation3 + $0x450] sm:$0xff]
        %v2396 = vld [vmem:[#allocation3 + $0x458] sm:$0xff]
        %v2397 = vld [vmem:[#allocation3 + $0x460] sm:$0xff]
        %v2398 = vld [vmem:[#allocation3 + $0x468] sm:$0xff]
        %v2399 = vld [vmem:[#allocation3 + $0x470] sm:$0xff]
        %v2400 = vld [vmem:[#allocation3 + $0x478] sm:$0xff]
        %v2401 = vld [vmem:[#allocation3 + $0x480] sm:$0xff]
        %v2402 = vld [vmem:[#allocation3 + $0x488] sm:$0xff]
        %v2403 = vld [vmem:[#allocation3 + $0x490] sm:$0xff]
        %v2404 = vld [vmem:[#allocation3 + $0x498] sm:$0xff]
        %v2405 = vld [vmem:[#allocation3 + $0x4a0] sm:$0xff]
        %v2406 = vld [vmem:[#allocation3 + $0x4a8] sm:$0xff]
        %v2407 = vld [vmem:[#allocation3 + $0x4b0] sm:$0xff]
        %v2408 = vld [vmem:[#allocation3 + $0x4b8] sm:$0xff]
        %v2409 = vld [vmem:[#allocation3 + $0x4c0] sm:$0xff]
        %v2410 = vld [vmem:[#allocation3 + $0x4c8] sm:$0xff]
        %v2411 = vld [vmem:[#allocation3 + $0x4d0] sm:$0xff]
        %v2412 = vld [vmem:[#allocation3 + $0x4d8] sm:$0xff]
        %v2413 = vld [vmem:[#allocation3 + $0x4e0] sm:$0xff]
        %v2414 = vld [vmem:[#allocation3 + $0x4e8] sm:$0xff]
        %v2415 = vld [vmem:[#allocation3 + $0x4f0] sm:$0xff]
        %v2416 = vld [vmem:[#allocation3 + $0x4f8] sm:$0xff]
        %v2417 = vld [vmem:[#allocation3 + $0x500] sm:$0xff]
        %v2418 = vld [vmem:[#allocation3 + $0x508] sm:$0xff]
        %v2419 = vld [vmem:[#allocation3 + $0x510] sm:$0xff]
        %v2420 = vld [vmem:[#allocation3 + $0x518] sm:$0xff]
        %v2421 = vld [vmem:[#allocation3 + $0x520] sm:$0xff]
        %v2422 = vld [vmem:[#allocation3 + $0x528] sm:$0xff]
        %v2423 = vld [vmem:[#allocation3 + $0x530] sm:$0xff]
        %v2424 = vld [vmem:[#allocation3 + $0x538] sm:$0xff]
        %v2425 = vld [vmem:[#allocation3 + $0x540] sm:$0xff]
        %v2426 = vld [vmem:[#allocation3 + $0x548] sm:$0xff]
        %v2427 = vld [vmem:[#allocation3 + $0x550] sm:$0xff]
        %v2428 = vld [vmem:[#allocation3 + $0x558] sm:$0xff]
        %v2429 = vld [vmem:[#allocation3 + $0x560] sm:$0xff]
        %v2430 = vld [vmem:[#allocation3 + $0x568] sm:$0xff]
        %v2431 = vld [vmem:[#allocation3 + $0x570] sm:$0xff]
        %v2432 = vld [vmem:[#allocation3 + $0x578] sm:$0xff]
        %v2433 = vld [vmem:[#allocation3 + $0x580] sm:$0xff]
        %v2434 = vld [vmem:[#allocation3 + $0x588] sm:$0xff]
        %v2435 = vld [vmem:[#allocation3 + $0x590] sm:$0xff]
        %v2436 = vld [vmem:[#allocation3 + $0x598] sm:$0xff]
        %v2437 = vld [vmem:[#allocation3 + $0x5a0] sm:$0xff]
        %v2438 = vld [vmem:[#allocation3 + $0x5a8] sm:$0xff]
        %v2439 = vld [vmem:[#allocation3 + $0x5b0] sm:$0xff]
        %v2440 = vld [vmem:[#allocation3 + $0x5b8] sm:$0xff]
        %v2441 = vld [vmem:[#allocation3 + $0x5c0] sm:$0xff]
        %v2442 = vld [vmem:[#allocation3 + $0x5c8] sm:$0xff]
        %v2443 = vld [vmem:[#allocation3 + $0x5d0] sm:$0xff]
        %v2444 = vld [vmem:[#allocation3 + $0x5d8] sm:$0xff]
        %v2445 = vld [vmem:[#allocation3 + $0x5e0] sm:$0xff]
        %v2446 = vld [vmem:[#allocation3 + $0x5e8] sm:$0xff]
        %v2447 = vld [vmem:[#allocation3 + $0x5f0] sm:$0xff]
        %v2448 = vld [vmem:[#allocation3 + $0x5f8] sm:$0xff]
        %v2449 = vld [vmem:[#allocation3 + $0x600] sm:$0xff]
        %v2450 = vld [vmem:[#allocation3 + $0x608] sm:$0xff]
        %v2451 = vld [vmem:[#allocation3 + $0x610] sm:$0xff]
        %v2452 = vld [vmem:[#allocation3 + $0x618] sm:$0xff]
        %v2453 = vld [vmem:[#allocation3 + $0x620] sm:$0xff]
        %v2454 = vld [vmem:[#allocation3 + $0x628] sm:$0xff]
        %v2455 = vld [vmem:[#allocation3 + $0x630] sm:$0xff]
        %v2456 = vld [vmem:[#allocation3 + $0x638] sm:$0xff]
        %v2457 = vld [vmem:[%s4] sm:$0xff]
        %v2458 = vld [vmem:[%s4 + $0x8] sm:$0xff]
        %v2459 = vld [vmem:[%s4 + $0x10] sm:$0xf]
        %2461 = vset.pattern.permute.xlu0 0
        %2462 = vperm.xlu0 %2461, %v2457
        %v2463 = vpop.permute.xlu0 %2462
        %2466 = vset.pattern.permute.xlu0 0
        %2467 = vperm.xlu0 %2466, %v2458
        %v2468 = vpop.permute.xlu0 %2467
        %2471 = vset.pattern.permute.xlu0 0
        %2472 = vperm.xlu0 %2471, %v2459
        %v2473 = vpop.permute.xlu0 %2472
        %vm2475 = vcmask 130048
        %v2477 = vsel %vm2475, %v2248, 0
        %v2480 = vsel %vm2475, %v2252, 0
        %v2483 = vsel %vm2475, %v2256, 0
        %2485 = vmatprep.subr.mxu0 %v2318
        %2486 = vmatpush1.msra.mxu0 %v2317
        %2487 = vmatprep.subr.mxu0 %v2314
        %2488 = vmatpush1.msra.mxu0 %v2313
        %2489 = vmatprep.subr.mxu0 %v2310
        %2490 = vmatpush1.msra.mxu0 %v2309
        %2491 = vmatprep.subr.mxu0 %v2306
        %2492 = vmatpush1.msra.mxu0 %v2305
        %2493 = vmatprep.subr.mxu0 %v2302
        %2494 = vmatpush1.msra.mxu0 %v2301
        %2495 = vmatprep.subr.mxu0 %v2298
        %2496 = vmatpush1.msra.mxu0 %v2297
        %2497 = vmatprep.subr.mxu0 %v2294
        %2498 = vmatpush1.msra.mxu0 %v2293
        %2499 = vmatprep.subr.mxu0 %v2290
        %2500 = vmatpush1.msra.mxu0 %v2289
        %2501 = vmatprep.subr.mxu0 %v2286
        %2502 = vmatpush1.msra.mxu0 %v2285
        %2503 = vmatprep.subr.mxu0 %v2282
        %2504 = vmatpush1.msra.mxu0 %v2281
        %2505 = vmatprep.subr.mxu0 %v2278
        %2506 = vmatpush1.msra.mxu0 %v2277
        %2507 = vmatprep.subr.mxu0 %v2274
        %2508 = vmatpush1.msra.mxu0 %v2273
        %2509 = vmatprep.subr.mxu0 %v2270
        %2510 = vmatpush1.msra.mxu0 %v2269
        %2511 = vmatprep.subr.mxu0 %v2266
        %2512 = vmatpush1.msra.mxu0 %v2265
        %2513 = vmatprep.subr.mxu0 %v2262
        %2514 = vmatpush1.msra.mxu0 %v2261
        %2515 = vmatprep.subr.mxu0 %v2258
        %2516 = vmatpush1.msra.mxu0 %v2257
        %2517 = vmatprep.subr.mxu0 %v2382
        %2518 = vmatpush2.msra.mxu0 %v2381
        %2519 = vmatprep.subr.mxu0 %v2378
        %2520 = vmatpush2.msra.mxu0 %v2377
        %2521 = vmatprep.subr.mxu0 %v2374
        %2522 = vmatpush2.msra.mxu0 %v2373
        %2523 = vmatprep.subr.mxu0 %v2370
        %2524 = vmatpush2.msra.mxu0 %v2369
        %2525 = vmatprep.subr.mxu0 %v2366
        %2526 = vmatpush2.msra.mxu0 %v2365
        %2527 = vmatprep.subr.mxu0 %v2362
        %2528 = vmatpush2.msra.mxu0 %v2361
        %2529 = vmatprep.subr.mxu0 %v2358
        %2530 = vmatpush2.msra.mxu0 %v2357
        %2531 = vmatprep.subr.mxu0 %v2354
        %2532 = vmatpush2.msra.mxu0 %v2353
        %2533 = vmatprep.subr.mxu0 %v2350
        %2534 = vmatpush2.msra.mxu0 %v2349
        %2535 = vmatprep.subr.mxu0 %v2346
        %2536 = vmatpush2.msra.mxu0 %v2345
        %2537 = vmatprep.subr.mxu0 %v2342
        %2538 = vmatpush2.msra.mxu0 %v2341
        %2539 = vmatprep.subr.mxu0 %v2338
        %2540 = vmatpush2.msra.mxu0 %v2337
        %2541 = vmatprep.subr.mxu0 %v2334
        %2542 = vmatpush2.msra.mxu0 %v2333
        %2543 = vmatprep.subr.mxu0 %v2330
        %2544 = vmatpush2.msra.mxu0 %v2329
        %2545 = vmatprep.subr.mxu0 %v2326
        %2546 = vmatpush2.msra.mxu0 %v2325
        %2547 = vmatprep.subr.mxu0 %v2322
        %2548 = vmatpush2.msra.mxu0 %v2321
        %2549 = vmatprep.mubr.f32.mxu0 %v2246
        %2550 = vmatmul.mubr.f32.gmra.mxu0 %v2245
        %v2551 = vpop.f32.mrf.mxu0
        %v2552 = vadd.f32 %v2463, %v2551
        %v2553 = vpop.f32.mrf.mxu0
        %v2554 = vadd.f32 %v2463, %v2553
        %2555 = vmatprep.mubr.f32.mxu0 %v2250
        %2556 = vmatmul.mubr.f32.gmra.mxu0 %v2249
        %v2557 = vpop.f32.mrf.mxu0
        %v2558 = vadd.f32 %v2468, %v2557
        %v2559 = vpop.f32.mrf.mxu0
        %v2560 = vadd.f32 %v2468, %v2559
        %2561 = vmatprep.mubr.f32.mxu0 %v2254
        %2562 = vmatmul.mubr.f32.gmra.mxu0 %v2253
        %v2563 = vpop.f32.mrf.mxu0
        %v2564 = vadd.f32 %v2473, %v2563
        %v2565 = vpop.f32.mrf.mxu0
        %v2566 = vadd.f32 %v2473, %v2565
        %2567 = vdwg.mxu0
        %2568 = vmatprep.subr.mxu0 %v2446
        %2569 = vmatpush1.msra.mxu0 %v2445
        %2570 = vmatprep.subr.mxu0 %v2442
        %2571 = vmatpush1.msra.mxu0 %v2441
        %2572 = vmatprep.subr.mxu0 %v2438
        %2573 = vmatpush1.msra.mxu0 %v2437
        %2574 = vmatprep.subr.mxu0 %v2434
        %2575 = vmatpush1.msra.mxu0 %v2433
        %2576 = vmatprep.subr.mxu0 %v2430
        %2577 = vmatpush1.msra.mxu0 %v2429
        %2578 = vmatprep.subr.mxu0 %v2426
        %2579 = vmatpush1.msra.mxu0 %v2425
        %2580 = vmatprep.subr.mxu0 %v2422
        %2581 = vmatpush1.msra.mxu0 %v2421
        %2582 = vmatprep.subr.mxu0 %v2418
        %2583 = vmatpush1.msra.mxu0 %v2417
        %2584 = vmatprep.subr.mxu0 %v2414
        %2585 = vmatpush1.msra.mxu0 %v2413
        %2586 = vmatprep.subr.mxu0 %v2410
        %2587 = vmatpush1.msra.mxu0 %v2409
        %2588 = vmatprep.subr.mxu0 %v2406
        %2589 = vmatpush1.msra.mxu0 %v2405
        %2590 = vmatprep.subr.mxu0 %v2402
        %2591 = vmatpush1.msra.mxu0 %v2401
        %2592 = vmatprep.subr.mxu0 %v2398
        %2593 = vmatpush1.msra.mxu0 %v2397
        %2594 = vmatprep.subr.mxu0 %v2394
        %2595 = vmatpush1.msra.mxu0 %v2393
        %2596 = vmatprep.subr.mxu0 %v2390
        %2597 = vmatpush1.msra.mxu0 %v2389
        %2598 = vmatprep.subr.mxu0 %v2386
        %2599 = vmatpush1.msra.mxu0 %v2385
        %2600 = vmatprep.subr.mxu0 0.0
        %2601 = vmatpush2.msra.mxu0 0.0
        %2602 = vmatprep.subr.mxu0 0.0
        %2603 = vmatpush2.msra.mxu0 0.0
        %2604 = vmatprep.subr.mxu0 0.0
        %2605 = vmatpush2.msra.mxu0 0.0
        %2606 = vmatprep.subr.mxu0 0.0
        %2607 = vmatpush2.msra.mxu0 0.0
        %2608 = vmatprep.subr.mxu0 0.0
        %2609 = vmatpush2.msra.mxu0 0.0
        %2610 = vmatprep.subr.mxu0 0.0
        %2611 = vmatpush2.msra.mxu0 0.0
        %2612 = vmatprep.subr.mxu0 0.0
        %2613 = vmatpush2.msra.mxu0 0.0
        %2614 = vmatprep.subr.mxu0 0.0
        %2615 = vmatpush2.msra.mxu0 0.0
        %2616 = vmatprep.subr.mxu0 0.0
        %2617 = vmatpush2.msra.mxu0 0.0
        %2618 = vmatprep.subr.mxu0 0.0
        %2619 = vmatpush2.msra.mxu0 0.0
        %2620 = vmatprep.subr.mxu0 0.0
        %2621 = vmatpush2.msra.mxu0 0.0
        %2622 = vmatprep.subr.mxu0 0.0
        %2623 = vmatpush2.msra.mxu0 0.0
        %2624 = vmatprep.subr.mxu0 0.0
        %2625 = vmatpush2.msra.mxu0 0.0
        %2626 = vmatprep.subr.mxu0 0.0
        %2627 = vmatpush2.msra.mxu0 0.0
        %2628 = vmatprep.subr.mxu0 %v2454
        %2629 = vmatpush2.msra.mxu0 %v2453
        %2630 = vmatprep.subr.mxu0 %v2450
        %2631 = vmatpush2.msra.mxu0 %v2449
        %2632 = vmatprep.mubr.f32.mxu0 %v2477
        %2633 = vmatmul.mubr.f32.gmra.mxu0 %v2247
        %v2634 = vpop.f32.mrf.mxu0
        %v2635 = vadd.f32 %v2552, %v2634
        %v2636 = vpop.f32.mrf.mxu0
        %v2637 = vadd.f32 %v2554, %v2636
        %2638 = vmatprep.mubr.f32.mxu0 %v2480
        %2639 = vmatmul.mubr.f32.gmra.mxu0 %v2251
        %v2640 = vpop.f32.mrf.mxu0
        %v2641 = vadd.f32 %v2558, %v2640
        %v2642 = vpop.f32.mrf.mxu0
        %v2643 = vadd.f32 %v2560, %v2642
        %2644 = vmatprep.mubr.f32.mxu0 %v2483
        %2645 = vmatmul.mubr.f32.gmra.mxu0 %v2255
        %v2646 = vpop.f32.mrf.mxu0
        %v2647 = vadd.f32 %v2564, %v2646
        %v2648 = vpop.f32.mrf.mxu0
        %v2649 = vadd.f32 %v2566, %v2648
        %2650 = vdwg.mxu0
        %2651 = vmatprep.subr.mxu0 %v2320
        %2652 = vmatpush1.msra.mxu0 %v2319
        %2653 = vmatprep.subr.mxu0 %v2316
        %2654 = vmatpush1.msra.mxu0 %v2315
        %2655 = vmatprep.subr.mxu0 %v2312
        %2656 = vmatpush1.msra.mxu0 %v2311
        %2657 = vmatprep.subr.mxu0 %v2308
        %2658 = vmatpush1.msra.mxu0 %v2307
        %2659 = vmatprep.subr.mxu0 %v2304
        %2660 = vmatpush1.msra.mxu0 %v2303
        %2661 = vmatprep.subr.mxu0 %v2300
        %2662 = vmatpush1.msra.mxu0 %v2299
        %2663 = vmatprep.subr.mxu0 %v2296
        %2664 = vmatpush1.msra.mxu0 %v2295
        %2665 = vmatprep.subr.mxu0 %v2292
        %2666 = vmatpush1.msra.mxu0 %v2291
        %2667 = vmatprep.subr.mxu0 %v2288
        %2668 = vmatpush1.msra.mxu0 %v2287
        %2669 = vmatprep.subr.mxu0 %v2284
        %2670 = vmatpush1.msra.mxu0 %v2283
        %2671 = vmatprep.subr.mxu0 %v2280
        %2672 = vmatpush1.msra.mxu0 %v2279
        %2673 = vmatprep.subr.mxu0 %v2276
        %2674 = vmatpush1.msra.mxu0 %v2275
        %2675 = vmatprep.subr.mxu0 %v2272
        %2676 = vmatpush1.msra.mxu0 %v2271
        %2677 = vmatprep.subr.mxu0 %v2268
        %2678 = vmatpush1.msra.mxu0 %v2267
        %2679 = vmatprep.subr.mxu0 %v2264
        %2680 = vmatpush1.msra.mxu0 %v2263
        %2681 = vmatprep.subr.mxu0 %v2260
        %2682 = vmatpush1.msra.mxu0 %v2259
        %2683 = vmatprep.subr.mxu0 %v2384
        %2684 = vmatpush2.msra.mxu0 %v2383
        %2685 = vmatprep.subr.mxu0 %v2380
        %2686 = vmatpush2.msra.mxu0 %v2379
        %2687 = vmatprep.subr.mxu0 %v2376
        %2688 = vmatpush2.msra.mxu0 %v2375
        %2689 = vmatprep.subr.mxu0 %v2372
        %2690 = vmatpush2.msra.mxu0 %v2371
        %2691 = vmatprep.subr.mxu0 %v2368
        %2692 = vmatpush2.msra.mxu0 %v2367
        %2693 = vmatprep.subr.mxu0 %v2364
        %2694 = vmatpush2.msra.mxu0 %v2363
        %2695 = vmatprep.subr.mxu0 %v2360
        %2696 = vmatpush2.msra.mxu0 %v2359
        %2697 = vmatprep.subr.mxu0 %v2356
        %2698 = vmatpush2.msra.mxu0 %v2355
        %2699 = vmatprep.subr.mxu0 %v2352
        %2700 = vmatpush2.msra.mxu0 %v2351
        %2701 = vmatprep.subr.mxu0 %v2348
        %2702 = vmatpush2.msra.mxu0 %v2347
        %2703 = vmatprep.subr.mxu0 %v2344
        %2704 = vmatpush2.msra.mxu0 %v2343
        %2705 = vmatprep.subr.mxu0 %v2340
        %2706 = vmatpush2.msra.mxu0 %v2339
        %2707 = vmatprep.subr.mxu0 %v2336
        %2708 = vmatpush2.msra.mxu0 %v2335
        %2709 = vmatprep.subr.mxu0 %v2332
        %2710 = vmatpush2.msra.mxu0 %v2331
        %2711 = vmatprep.subr.mxu0 %v2328
        %2712 = vmatpush2.msra.mxu0 %v2327
        %2713 = vmatprep.subr.mxu0 %v2324
        %2714 = vmatpush2.msra.mxu0 %v2323
        %2715 = vmatprep.mubr.f32.mxu0 %v2246
        %2716 = vmatmul.mubr.f32.gmra.mxu0 %v2245
        %v2717 = vpop.f32.mrf.mxu0
        %v2718 = vadd.f32 %v2463, %v2717
        %v2719 = vpop.f32.mrf.mxu0
        %v2720 = vadd.f32 %v2463, %v2719
        %2721 = vmatprep.mubr.f32.mxu0 %v2250
        %2722 = vmatmul.mubr.f32.gmra.mxu0 %v2249
        %v2723 = vpop.f32.mrf.mxu0
        %v2724 = vadd.f32 %v2468, %v2723
        %v2725 = vpop.f32.mrf.mxu0
        %v2726 = vadd.f32 %v2468, %v2725
        %2727 = vmatprep.mubr.f32.mxu0 %v2254
        %2728 = vmatmul.mubr.f32.gmra.mxu0 %v2253
        %v2729 = vpop.f32.mrf.mxu0
        %v2730 = vadd.f32 %v2473, %v2729
        %v2731 = vpop.f32.mrf.mxu0
        %v2732 = vadd.f32 %v2473, %v2731
        %2733 = vdwg.mxu0
        %2734 = vmatprep.subr.mxu0 %v2448
        %2735 = vmatpush1.msra.mxu0 %v2447
        %2736 = vmatprep.subr.mxu0 %v2444
        %2737 = vmatpush1.msra.mxu0 %v2443
        %2738 = vmatprep.subr.mxu0 %v2440
        %2739 = vmatpush1.msra.mxu0 %v2439
        %2740 = vmatprep.subr.mxu0 %v2436
        %2741 = vmatpush1.msra.mxu0 %v2435
        %2742 = vmatprep.subr.mxu0 %v2432
        %2743 = vmatpush1.msra.mxu0 %v2431
        %2744 = vmatprep.subr.mxu0 %v2428
        %2745 = vmatpush1.msra.mxu0 %v2427
        %2746 = vmatprep.subr.mxu0 %v2424
        %2747 = vmatpush1.msra.mxu0 %v2423
        %2748 = vmatprep.subr.mxu0 %v2420
        %2749 = vmatpush1.msra.mxu0 %v2419
        %2750 = vmatprep.subr.mxu0 %v2416
        %2751 = vmatpush1.msra.mxu0 %v2415
        %2752 = vmatprep.subr.mxu0 %v2412
        %2753 = vmatpush1.msra.mxu0 %v2411
        %2754 = vmatprep.subr.mxu0 %v2408
        %2755 = vmatpush1.msra.mxu0 %v2407
        %2756 = vmatprep.subr.mxu0 %v2404
        %2757 = vmatpush1.msra.mxu0 %v2403
        %2758 = vmatprep.subr.mxu0 %v2400
        %2759 = vmatpush1.msra.mxu0 %v2399
        %2760 = vmatprep.subr.mxu0 %v2396
        %2761 = vmatpush1.msra.mxu0 %v2395
        %2762 = vmatprep.subr.mxu0 %v2392
        %2763 = vmatpush1.msra.mxu0 %v2391
        %2764 = vmatprep.subr.mxu0 %v2388
        %2765 = vmatpush1.msra.mxu0 %v2387
        %2766 = vmatprep.subr.mxu0 0.0
        %2767 = vmatpush2.msra.mxu0 0.0
        %2768 = vmatprep.subr.mxu0 0.0
        %2769 = vmatpush2.msra.mxu0 0.0
        %2770 = vmatprep.subr.mxu0 0.0
        %2771 = vmatpush2.msra.mxu0 0.0
        %2772 = vmatprep.subr.mxu0 0.0
        %2773 = vmatpush2.msra.mxu0 0.0
        %2774 = vmatprep.subr.mxu0 0.0
        %2775 = vmatpush2.msra.mxu0 0.0
        %2776 = vmatprep.subr.mxu0 0.0
        %2777 = vmatpush2.msra.mxu0 0.0
        %2778 = vmatprep.subr.mxu0 0.0
        %2779 = vmatpush2.msra.mxu0 0.0
        %2780 = vmatprep.subr.mxu0 0.0
        %2781 = vmatpush2.msra.mxu0 0.0
        %2782 = vmatprep.subr.mxu0 0.0
        %2783 = vmatpush2.msra.mxu0 0.0
        %2784 = vmatprep.subr.mxu0 0.0
        %2785 = vmatpush2.msra.mxu0 0.0
        %2786 = vmatprep.subr.mxu0 0.0
        %2787 = vmatpush2.msra.mxu0 0.0
        %2788 = vmatprep.subr.mxu0 0.0
        %2789 = vmatpush2.msra.mxu0 0.0
        %2790 = vmatprep.subr.mxu0 0.0
        %2791 = vmatpush2.msra.mxu0 0.0
        %2792 = vmatprep.subr.mxu0 0.0
        %2793 = vmatpush2.msra.mxu0 0.0
        %2794 = vmatprep.subr.mxu0 %v2456
        %2795 = vmatpush2.msra.mxu0 %v2455
        %2796 = vmatprep.subr.mxu0 %v2452
        %2797 = vmatpush2.msra.mxu0 %v2451
        %2798 = vmatprep.mubr.f32.mxu0 %v2477
        %2799 = vmatmul.mubr.f32.gmra.mxu0 %v2247
        %v2800 = vpop.f32.mrf.mxu0
        %v2801 = vadd.f32 %v2718, %v2800
        %v2802 = vpop.f32.mrf.mxu0
        %v2803 = vadd.f32 %v2720, %v2802
        %2804 = vmatprep.mubr.f32.mxu0 %v2480
        %2805 = vmatmul.mubr.f32.gmra.mxu0 %v2251
        %v2806 = vpop.f32.mrf.mxu0
        %v2807 = vadd.f32 %v2724, %v2806
        %v2808 = vpop.f32.mrf.mxu0
        %v2809 = vadd.f32 %v2726, %v2808
        %2810 = vmatprep.mubr.f32.mxu0 %v2483
        %2811 = vmatmul.mubr.f32.gmra.mxu0 %v2255
        %v2812 = vpop.f32.mrf.mxu0
        %v2813 = vadd.f32 %v2730, %v2812
        %v2814 = vpop.f32.mrf.mxu0
        %v2815 = vadd.f32 %v2732, %v2814
        %2816 = vdwg.mxu0
        %v2817 = vmax.f32 %v2635, 0.0
        %v2818 = vmax.f32 %v2637, 0.0
        %v2819 = vmax.f32 %v2801, 0.0
        %v2820 = vmax.f32 %v2803, 0.0
        %v2821 = vmax.f32 %v2641, 0.0
        %v2822 = vmax.f32 %v2643, 0.0
        %v2823 = vmax.f32 %v2807, 0.0
        %v2824 = vmax.f32 %v2809, 0.0
        %v2825 = vmax.f32 %v2647, 0.0
        %v2826 = vmax.f32 %v2649, 0.0
        %v2827 = vmax.f32 %v2813, 0.0
        %v2828 = vmax.f32 %v2815, 0.0
        %2841 = vrot.lane.b32.xlu0 %v2817, 126
        %v2842 = vpop.permute.xlu0 %2841
        %2843 = vrot.lane.b32.xlu0 %v2818, 126
        %v2844 = vpop.permute.xlu0 %2843
        %2845 = vrot.lane.b32.xlu0 %v2819, 126
        %v2846 = vpop.permute.xlu0 %2845
        %2847 = vrot.lane.b32.xlu0 %v2820, 126
        %v2848 = vpop.permute.xlu0 %2847
        %2849 = vrot.lane.b32.xlu0 %v2821, 126
        %v2850 = vpop.permute.xlu0 %2849
        %2851 = vrot.lane.b32.xlu0 %v2822, 126
        %v2852 = vpop.permute.xlu0 %2851
        %2853 = vrot.lane.b32.xlu0 %v2823, 126
        %v2854 = vpop.permute.xlu0 %2853
        %2855 = vrot.lane.b32.xlu0 %v2824, 126
        %v2856 = vpop.permute.xlu0 %2855
        %2857 = vrot.lane.b32.xlu0 %v2825, 126
        %v2858 = vpop.permute.xlu0 %2857
        %2859 = vrot.lane.b32.xlu0 %v2826, 126
        %v2860 = vpop.permute.xlu0 %2859
        %2861 = vrot.lane.b32.xlu0 %v2827, 126
        %v2862 = vpop.permute.xlu0 %2861
        %2863 = vrot.lane.b32.xlu0 %v2828, 126
        %v2864 = vpop.permute.xlu0 %2863
        %v2865 = vsel %vm425, %v2842, %v2844
        %v2866 = vsel %vm425, %v2844, %v2846
        %v2867 = vsel %vm425, %v2846, %v2848
        %v2868 = vsel %vm425, %v2850, %v2852
        %v2869 = vsel %vm425, %v2852, %v2854
        %v2870 = vsel %vm425, %v2854, %v2856
        %v2871 = vsel %vm425, %v2858, %v2860
        %v2872 = vsel %vm425, %v2860, %v2862
        %v2873 = vsel %vm425, %v2862, %v2864
        %v2886 = vmax.f32 %v2817, %v2865
        %v2887 = vmax.f32 %v2818, %v2866
        %v2888 = vmax.f32 %v2819, %v2867
        %v2889 = vmax.f32 %v2820, %v2848
        %v2890 = vmax.f32 %v2821, %v2868
        %v2891 = vmax.f32 %v2822, %v2869
        %v2892 = vmax.f32 %v2823, %v2870
        %v2893 = vmax.f32 %v2824, %v2856
        %v2894 = vmax.f32 %v2825, %v2871
        %v2895 = vmax.f32 %v2826, %v2872
        %v2896 = vmax.f32 %v2827, %v2873
        %v2897 = vmax.f32 %v2828, %v2864
        %2910 = vrot.lane.b32.xlu0 %v2886, 64
        %v2911 = vpop.permute.xlu0 %2910
        %2912 = vrot.lane.b32.xlu0 %v2887, 64
        %v2913 = vpop.permute.xlu0 %2912
        %2914 = vrot.lane.b32.xlu0 %v2888, 64
        %v2915 = vpop.permute.xlu0 %2914
        %2916 = vrot.lane.b32.xlu0 %v2889, 64
        %v2917 = vpop.permute.xlu0 %2916
        %2918 = vrot.lane.b32.xlu0 %v2890, 64
        %v2919 = vpop.permute.xlu0 %2918
        %2920 = vrot.lane.b32.xlu0 %v2891, 64
        %v2921 = vpop.permute.xlu0 %2920
        %2922 = vrot.lane.b32.xlu0 %v2892, 64
        %v2923 = vpop.permute.xlu0 %2922
        %2924 = vrot.lane.b32.xlu0 %v2893, 64
        %v2925 = vpop.permute.xlu0 %2924
        %2926 = vrot.lane.b32.xlu0 %v2894, 64
        %v2927 = vpop.permute.xlu0 %2926
        %2928 = vrot.lane.b32.xlu0 %v2895, 64
        %v2929 = vpop.permute.xlu0 %2928
        %2930 = vrot.lane.b32.xlu0 %v2896, 64
        %v2931 = vpop.permute.xlu0 %2930
        %2932 = vrot.lane.b32.xlu0 %v2897, 64
        %v2933 = vpop.permute.xlu0 %2932
        %v2934 = vsel %vm689, %v2911, %v2913
        %v2935 = vsel %vm689, %v2913, %v2915
        %v2936 = vsel %vm689, %v2915, %v2917
        %v2937 = vsel %vm689, %v2919, %v2921
        %v2938 = vsel %vm689, %v2921, %v2923
        %v2939 = vsel %vm689, %v2923, %v2925
        %v2940 = vsel %vm689, %v2927, %v2929
        %v2941 = vsel %vm689, %v2929, %v2931
        %v2942 = vsel %vm689, %v2931, %v2933
        %v2955 = vmax.f32 %v2886, %v2934
        %v2956 = vmax.f32 %v2887, %v2935
        %v2957 = vmax.f32 %v2888, %v2936
        %v2958 = vmax.f32 %v2889, %v2917
        %v2959 = vmax.f32 %v2890, %v2937
        %v2960 = vmax.f32 %v2891, %v2938
        %v2961 = vmax.f32 %v2892, %v2939
        %v2962 = vmax.f32 %v2893, %v2925
        %v2963 = vmax.f32 %v2894, %v2940
        %v2964 = vmax.f32 %v2895, %v2941
        %v2965 = vmax.f32 %v2896, %v2942
        %v2966 = vmax.f32 %v2897, %v2933
        %v2967 = vld [vmem:[%s5] sm:$0xff]
        %v2968 = vld [vmem:[%s5 + $0x8] sm:$0xff]
        %v2969 = vld [vmem:[%s5 + $0x10] sm:$0xff]
        %v2970 = vld [vmem:[%s5 + $0x18] sm:$0xff]
        %v2971 = vld [vmem:[%s5 + $0x20] sm:$0xff]
        %v2972 = vld [vmem:[%s5 + $0x28] sm:$0xff]
        %v2973 = vld [vmem:[%s5 + $0x30] sm:$0xff]
        %v2974 = vld [vmem:[%s5 + $0x38] sm:$0xff]
        %v2975 = vld [vmem:[%s5 + $0x40] sm:$0xff]
        %v2976 = vld [vmem:[%s5 + $0x48] sm:$0xff]
        %v2977 = vld [vmem:[%s5 + $0x50] sm:$0xff]
        %v2978 = vld [vmem:[%s5 + $0x58] sm:$0xff]
        %v2979 = vld [vmem:[%s5 + $0x60] sm:$0xff]
        %v2980 = vld [vmem:[%s5 + $0x68] sm:$0xff]
        %v2981 = vld [vmem:[%s5 + $0x70] sm:$0xff]
        %v2982 = vld [vmem:[%s5 + $0x78] sm:$0xff]
        %v2983 = vld [vmem:[%s5 + $0x80] sm:$0xff]
        %v2984 = vld [vmem:[%s5 + $0x88] sm:$0xff]
        %v2985 = vld [vmem:[%s5 + $0x90] sm:$0xff]
        %v2986 = vld [vmem:[%s5 + $0x98] sm:$0xff]
        %v2987 = vld [vmem:[%s5 + $0xa0] sm:$0xff]
        %v2988 = vld [vmem:[%s5 + $0xa8] sm:$0xff]
        %v2989 = vld [vmem:[%s5 + $0xb0] sm:$0xff]
        %v2990 = vld [vmem:[%s5 + $0xb8] sm:$0xff]
        %v2991 = vld [vmem:[%s5 + $0xc0] sm:$0xff]
        %v2992 = vld [vmem:[%s5 + $0xc8] sm:$0xff]
        %v2993 = vld [vmem:[%s5 + $0xd0] sm:$0xff]
        %v2994 = vld [vmem:[%s5 + $0xd8] sm:$0xff]
        %v2995 = vld [vmem:[%s5 + $0xe0] sm:$0xff]
        %v2996 = vld [vmem:[%s5 + $0xe8] sm:$0xff]
        %v2997 = vld [vmem:[%s5 + $0xf0] sm:$0xff]
        %v2998 = vld [vmem:[%s5 + $0xf8] sm:$0xff]
        %v2999 = vld [vmem:[%s5 + $0x100] sm:$0xff]
        %v3000 = vld [vmem:[%s5 + $0x108] sm:$0xff]
        %v3001 = vld [vmem:[%s5 + $0x110] sm:$0xff]
        %v3002 = vld [vmem:[%s5 + $0x118] sm:$0xff]
        %v3003 = vld [vmem:[%s5 + $0x120] sm:$0xff]
        %v3004 = vld [vmem:[%s5 + $0x128] sm:$0xff]
        %v3005 = vld [vmem:[%s5 + $0x130] sm:$0xff]
        %v3006 = vld [vmem:[%s5 + $0x138] sm:$0xff]
        %v3007 = vld [vmem:[%s5 + $0x140] sm:$0xff]
        %v3008 = vld [vmem:[%s5 + $0x148] sm:$0xff]
        %v3009 = vld [vmem:[%s5 + $0x150] sm:$0xff]
        %v3010 = vld [vmem:[%s5 + $0x158] sm:$0xff]
        %v3011 = vld [vmem:[%s5 + $0x160] sm:$0xff]
        %v3012 = vld [vmem:[%s5 + $0x168] sm:$0xff]
        %v3013 = vld [vmem:[%s5 + $0x170] sm:$0xff]
        %v3014 = vld [vmem:[%s5 + $0x178] sm:$0xff]
        %v3015 = vld [vmem:[%s5 + $0x180] sm:$0xff]
        %v3016 = vld [vmem:[%s5 + $0x188] sm:$0x1f]
        %vm3017 = vcmask 105472
        %v3019 = vsel %vm3017, %v2958, 0
        %v3022 = vsel %vm3017, %v2962, 0
        %v3025 = vsel %vm3017, %v2966, 0
        %vm3027 = vcmask 1044480
        %v3029 = vsel %vm3027, %v3016, 0
        %3031 = vmatprep.subr.mxu0 0.0
        %3032 = vmatpush1.msra.mxu0 %v2982
        %3033 = vmatprep.subr.mxu0 0.0
        %3034 = vmatpush1.msra.mxu0 %v2981
        %3035 = vmatprep.subr.mxu0 0.0
        %3036 = vmatpush1.msra.mxu0 %v2980
        %3037 = vmatprep.subr.mxu0 0.0
        %3038 = vmatpush1.msra.mxu0 %v2979
        %3039 = vmatprep.subr.mxu0 0.0
        %3040 = vmatpush1.msra.mxu0 %v2978
        %3041 = vmatprep.subr.mxu0 0.0
        %3042 = vmatpush1.msra.mxu0 %v2977
        %3043 = vmatprep.subr.mxu0 0.0
        %3044 = vmatpush1.msra.mxu0 %v2976
        %3045 = vmatprep.subr.mxu0 0.0
        %3046 = vmatpush1.msra.mxu0 %v2975
        %3047 = vmatprep.subr.mxu0 0.0
        %3048 = vmatpush1.msra.mxu0 %v2974
        %3049 = vmatprep.subr.mxu0 0.0
        %3050 = vmatpush1.msra.mxu0 %v2973
        %3051 = vmatprep.subr.mxu0 0.0
        %3052 = vmatpush1.msra.mxu0 %v2972
        %3053 = vmatprep.subr.mxu0 0.0
        %3054 = vmatpush1.msra.mxu0 %v2971
        %3055 = vmatprep.subr.mxu0 0.0
        %3056 = vmatpush1.msra.mxu0 %v2970
        %3057 = vmatprep.subr.mxu0 0.0
        %3058 = vmatpush1.msra.mxu0 %v2969
        %3059 = vmatprep.subr.mxu0 0.0
        %3060 = vmatpush1.msra.mxu0 %v2968
        %3061 = vmatprep.subr.mxu0 0.0
        %3062 = vmatpush1.msra.mxu0 %v2967
        %3063 = vmatprep.subr.mxu0 0.0
        %3064 = vmatpush2.msra.mxu0 %v2998
        %3065 = vmatprep.subr.mxu0 0.0
        %3066 = vmatpush2.msra.mxu0 %v2997
        %3067 = vmatprep.subr.mxu0 0.0
        %3068 = vmatpush2.msra.mxu0 %v2996
        %3069 = vmatprep.subr.mxu0 0.0
        %3070 = vmatpush2.msra.mxu0 %v2995
        %3071 = vmatprep.subr.mxu0 0.0
        %3072 = vmatpush2.msra.mxu0 %v2994
        %3073 = vmatprep.subr.mxu0 0.0
        %3074 = vmatpush2.msra.mxu0 %v2993
        %3075 = vmatprep.subr.mxu0 0.0
        %3076 = vmatpush2.msra.mxu0 %v2992
        %3077 = vmatprep.subr.mxu0 0.0
        %3078 = vmatpush2.msra.mxu0 %v2991
        %3079 = vmatprep.subr.mxu0 0.0
        %3080 = vmatpush2.msra.mxu0 %v2990
        %3081 = vmatprep.subr.mxu0 0.0
        %3082 = vmatpush2.msra.mxu0 %v2989
        %3083 = vmatprep.subr.mxu0 0.0
        %3084 = vmatpush2.msra.mxu0 %v2988
        %3085 = vmatprep.subr.mxu0 0.0
        %3086 = vmatpush2.msra.mxu0 %v2987
        %3087 = vmatprep.subr.mxu0 0.0
        %3088 = vmatpush2.msra.mxu0 %v2986
        %3089 = vmatprep.subr.mxu0 0.0
        %3090 = vmatpush2.msra.mxu0 %v2985
        %3091 = vmatprep.subr.mxu0 0.0
        %3092 = vmatpush2.msra.mxu0 %v2984
        %3093 = vmatprep.subr.mxu0 0.0
        %3094 = vmatpush2.msra.mxu0 %v2983
        %3095 = vmatprep.mubr.f32.mxu0 %v2956
        %3096 = vmatmul.mubr.f32.gmra.mxu0 %v2955
        %v3097 = vpop.f32.mrf.mxu0
        %v3098 = vadd.f32 0.0, %v3097
        %v3099 = vpop.f32.mrf.mxu0
        %3100 = vmatprep.mubr.f32.mxu0 %v2960
        %3101 = vmatmul.mubr.f32.gmra.mxu0 %v2959
        %v3102 = vpop.f32.mrf.mxu0
        %v3103 = vadd.f32 0.0, %v3102
        %v3104 = vpop.f32.mrf.mxu0
        %3105 = vmatprep.mubr.f32.mxu0 %v2964
        %3106 = vmatmul.mubr.f32.gmra.mxu0 %v2963
        %v3107 = vpop.f32.mrf.mxu0
        %v3108 = vadd.f32 0.0, %v3107
        %v3109 = vpop.f32.mrf.mxu0
        %3110 = vdwg.mxu0
        %3111 = vmatprep.subr.mxu0 0.0
        %3112 = vmatpush1.msra.mxu0 %v3014
        %3113 = vmatprep.subr.mxu0 0.0
        %3114 = vmatpush1.msra.mxu0 %v3013
        %3115 = vmatprep.subr.mxu0 0.0
        %3116 = vmatpush1.msra.mxu0 %v3012
        %3117 = vmatprep.subr.mxu0 0.0
        %3118 = vmatpush1.msra.mxu0 %v3011
        %3119 = vmatprep.subr.mxu0 0.0
        %3120 = vmatpush1.msra.mxu0 %v3010
        %3121 = vmatprep.subr.mxu0 0.0
        %3122 = vmatpush1.msra.mxu0 %v3009
        %3123 = vmatprep.subr.mxu0 0.0
        %3124 = vmatpush1.msra.mxu0 %v3008
        %3125 = vmatprep.subr.mxu0 0.0
        %3126 = vmatpush1.msra.mxu0 %v3007
        %3127 = vmatprep.subr.mxu0 0.0
        %3128 = vmatpush1.msra.mxu0 %v3006
        %3129 = vmatprep.subr.mxu0 0.0
        %3130 = vmatpush1.msra.mxu0 %v3005
        %3131 = vmatprep.subr.mxu0 0.0
        %3132 = vmatpush1.msra.mxu0 %v3004
        %3133 = vmatprep.subr.mxu0 0.0
        %3134 = vmatpush1.msra.mxu0 %v3003
        %3135 = vmatprep.subr.mxu0 0.0
        %3136 = vmatpush1.msra.mxu0 %v3002
        %3137 = vmatprep.subr.mxu0 0.0
        %3138 = vmatpush1.msra.mxu0 %v3001
        %3139 = vmatprep.subr.mxu0 0.0
        %3140 = vmatpush1.msra.mxu0 %v3000
        %3141 = vmatprep.subr.mxu0 0.0
        %3142 = vmatpush1.msra.mxu0 %v2999
        %3143 = vmatprep.subr.mxu0 0.0
        %3144 = vmatpush2.msra.mxu0 0.0
        %3145 = vmatprep.subr.mxu0 0.0
        %3146 = vmatpush2.msra.mxu0 0.0
        %3147 = vmatprep.subr.mxu0 0.0
        %3148 = vmatpush2.msra.mxu0 0.0
        %3149 = vmatprep.subr.mxu0 0.0
        %3150 = vmatpush2.msra.mxu0 0.0
        %3151 = vmatprep.subr.mxu0 0.0
        %3152 = vmatpush2.msra.mxu0 0.0
        %3153 = vmatprep.subr.mxu0 0.0
        %3154 = vmatpush2.msra.mxu0 0.0
        %3155 = vmatprep.subr.mxu0 0.0
        %3156 = vmatpush2.msra.mxu0 0.0
        %3157 = vmatprep.subr.mxu0 0.0
        %3158 = vmatpush2.msra.mxu0 0.0
        %3159 = vmatprep.subr.mxu0 0.0
        %3160 = vmatpush2.msra.mxu0 0.0
        %3161 = vmatprep.subr.mxu0 0.0
        %3162 = vmatpush2.msra.mxu0 0.0
        %3163 = vmatprep.subr.mxu0 0.0
        %3164 = vmatpush2.msra.mxu0 0.0
        %3165 = vmatprep.subr.mxu0 0.0
        %3166 = vmatpush2.msra.mxu0 0.0
        %3167 = vmatprep.subr.mxu0 0.0
        %3168 = vmatpush2.msra.mxu0 0.0
        %3169 = vmatprep.subr.mxu0 0.0
        %3170 = vmatpush2.msra.mxu0 0.0
        %3171 = vmatprep.subr.mxu0 0.0
        %3172 = vmatpush2.msra.mxu0 %v3029
        %3173 = vmatprep.subr.mxu0 0.0
        %3174 = vmatpush2.msra.mxu0 %v3015
        %3175 = vmatprep.mubr.f32.mxu0 %v3019
        %3176 = vmatmul.mubr.f32.gmra.mxu0 %v2957
        %v3177 = vpop.f32.mrf.mxu0
        %v3178 = vadd.f32 %v3098, %v3177
        %v3179 = vpop.f32.mrf.mxu0
        %3180 = vmatprep.mubr.f32.mxu0 %v3022
        %3181 = vmatmul.mubr.f32.gmra.mxu0 %v2961
        %v3182 = vpop.f32.mrf.mxu0
        %v3183 = vadd.f32 %v3103, %v3182
        %v3184 = vpop.f32.mrf.mxu0
        %3185 = vmatprep.mubr.f32.mxu0 %v3025
        %3186 = vmatmul.mubr.f32.gmra.mxu0 %v2965
        %v3187 = vpop.f32.mrf.mxu0
        %v3188 = vadd.f32 %v3108, %v3187
        %v3189 = vpop.f32.mrf.mxu0
        %3190 = vdwg.mxu0
        %v3191 = vlaneseq
        %vm3192 = vcmp.ge.s32.totalorder %v3191, 0
        %vm3193 = vcmp.lt.s32.totalorder %v3191, 16
        %vm3194 = vmand %vm3192, %vm3193
        %3195 = vst.msk [vmem:[#allocation4] sm:$0x1] %vm3194, %v3178
        %v3198 = vunpack.c.l.s4 1966171168
        %v3199 = vunpack.c.0.s8 %v3198
        %v3200 = vlaneseq
        %v3201 = vshrl.u32 %v3200, 7
        %v3202 = vsub.s32 %v3199, %v3201
        %v3203 = vrot.slane %v3178, %v3202
        %v3204 = vcombine.high %v3203, %v3203
        %v3206 = vunpack.c.l.s4 1966171168
        %v3207 = vunpack.c.0.s8 %v3206
        %v3208 = vlaneseq
        %v3209 = vshrl.u32 %v3208, 7
        %v3210 = vsub.s32 %v3207, %v3209
        %v3211 = vrot.slane %v3203, %v3210
        %v3213 = vunpack.c.l.s4 1966171168
        %v3214 = vunpack.c.0.s8 %v3213
        %v3215 = vlaneseq
        %v3216 = vshrl.u32 %v3215, 7
        %v3217 = vsub.s32 %v3214, %v3216
        %v3218 = vrot.slane %v3204, %v3217
        %3219 = vrot.lane.b32.xlu0 %v3218, 16
        %v3220 = vpop.permute.xlu0 %3219
        %vm3222 = vcmp.ge.s32.totalorder %v3191, 16
        %vm3223 = vcmp.lt.s32.totalorder %v3191, 32
        %vm3224 = vmand %vm3222, %vm3223
        %3225 = vst.msk [vmem:[#allocation4] sm:$0x1] %vm3224, %v3220
        %v3226 = vcombine.high %v3211, %v3211
        %3227 = vrot.lane.b32.xlu0 %v3226, 32
        %v3228 = vpop.permute.xlu0 %3227
        %vm3230 = vcmp.ge.s32.totalorder %v3191, 32
        %vm3231 = vcmp.lt.s32.totalorder %v3191, 48
        %vm3232 = vmand %vm3230, %vm3231
        %3233 = vst.msk [vmem:[#allocation4] sm:$0x1] %vm3232, %v3228
        %v3234 = vcombine.high %v3218, %v3218
        %3235 = vrot.lane.b32.xlu0 %v3234, 48
        %v3236 = vpop.permute.xlu0 %3235
        %vm3238 = vcmp.ge.s32.totalorder %v3191, 48
        %vm3239 = vcmp.lt.s32.totalorder %v3191, 64
        %vm3240 = vmand %vm3238, %vm3239
        %3241 = vst.msk [vmem:[#allocation4] sm:$0x1] %vm3240, %v3236
        %v3242 = vcombine.high %v3178, %v3178
        %v3244 = vunpack.c.l.s4 1966171168
        %v3245 = vunpack.c.0.s8 %v3244
        %v3246 = vlaneseq
        %v3247 = vshrl.u32 %v3246, 7
        %v3248 = vsub.s32 %v3245, %v3247
        %v3249 = vrot.slane %v3242, %v3248
        %v3251 = vunpack.c.l.s4 1966171168
        %v3252 = vunpack.c.0.s8 %v3251
        %v3253 = vlaneseq
        %v3254 = vshrl.u32 %v3253, 7
        %v3255 = vsub.s32 %v3252, %v3254
        %v3256 = vrot.slane %v3249, %v3255
        %3257 = vrot.lane.b32.xlu0 %v3256, 64
        %v3258 = vpop.permute.xlu0 %3257
        %vm3260 = vcmp.ge.s32.totalorder %v3191, 64
        %vm3261 = vcmp.lt.s32.totalorder %v3191, 80
        %vm3262 = vmand %vm3260, %vm3261
        %3263 = vst.msk [vmem:[#allocation4] sm:$0x1] %vm3262, %v3258
        %v3264 = vcombine.high %v3249, %v3249
        %v3266 = vunpack.c.l.s4 1966171168
        %v3267 = vunpack.c.0.s8 %v3266
        %v3268 = vlaneseq
        %v3269 = vshrl.u32 %v3268, 7
        %v3270 = vsub.s32 %v3267, %v3269
        %v3271 = vrot.slane %v3264, %v3270
        %3272 = vrot.lane.b32.xlu0 %v3271, 80
        %v3273 = vpop.permute.xlu0 %3272
        %vm3275 = vcmp.ge.s32.totalorder %v3191, 80
        %vm3276 = vcmp.lt.s32.totalorder %v3191, 96
        %vm3277 = vmand %vm3275, %vm3276
        %3278 = vst.msk [vmem:[#allocation4] sm:$0x1] %vm3277, %v3273
        %v3279 = vcombine.high %v3256, %v3256
        %3280 = vrot.lane.b32.xlu0 %v3279, 96
        %v3281 = vpop.permute.xlu0 %3280
        %vm3283 = vcmp.ge.s32.totalorder %v3191, 96
        %vm3284 = vcmp.lt.s32.totalorder %v3191, 112
        %vm3285 = vmand %vm3283, %vm3284
        %3286 = vst.msk [vmem:[#allocation4] sm:$0x1] %vm3285, %v3281
        %v3287 = vcombine.high %v3271, %v3271
        %3288 = vrot.lane.b32.xlu0 %v3287, 112
        %v3289 = vpop.permute.xlu0 %3288
        %vm3291 = vcmp.ge.s32.totalorder %v3191, 112
        %vm3292 = vcmp.lt.s32.totalorder %v3191, 128
        %vm3293 = vmand %vm3291, %vm3292
        %3294 = vst.msk [vmem:[#allocation4] sm:$0x1] %vm3293, %v3289
        %3295 = vst.msk [vmem:[#allocation4 + $0x1] sm:$0x1] %vm3194, %v3183
        %v3298 = vunpack.c.l.s4 1966171168
        %v3299 = vunpack.c.0.s8 %v3298
        %v3300 = vlaneseq
        %v3301 = vshrl.u32 %v3300, 7
        %v3302 = vsub.s32 %v3299, %v3301
        %v3303 = vrot.slane %v3183, %v3302
        %v3304 = vcombine.high %v3303, %v3303
        %v3306 = vunpack.c.l.s4 1966171168
        %v3307 = vunpack.c.0.s8 %v3306
        %v3308 = vlaneseq
        %v3309 = vshrl.u32 %v3308, 7
        %v3310 = vsub.s32 %v3307, %v3309
        %v3311 = vrot.slane %v3303, %v3310
        %v3313 = vunpack.c.l.s4 1966171168
        %v3314 = vunpack.c.0.s8 %v3313
        %v3315 = vlaneseq
        %v3316 = vshrl.u32 %v3315, 7
        %v3317 = vsub.s32 %v3314, %v3316
        %v3318 = vrot.slane %v3304, %v3317
        %3319 = vrot.lane.b32.xlu0 %v3318, 16
        %v3320 = vpop.permute.xlu0 %3319
        %3322 = vst.msk [vmem:[#allocation4 + $0x1] sm:$0x1] %vm3224, %v3320
        %v3323 = vcombine.high %v3311, %v3311
        %3324 = vrot.lane.b32.xlu0 %v3323, 32
        %v3325 = vpop.permute.xlu0 %3324
        %3327 = vst.msk [vmem:[#allocation4 + $0x1] sm:$0x1] %vm3232, %v3325
        %v3328 = vcombine.high %v3318, %v3318
        %3329 = vrot.lane.b32.xlu0 %v3328, 48
        %v3330 = vpop.permute.xlu0 %3329
        %3332 = vst.msk [vmem:[#allocation4 + $0x1] sm:$0x1] %vm3240, %v3330
        %v3333 = vcombine.high %v3183, %v3183
        %v3335 = vunpack.c.l.s4 1966171168
        %v3336 = vunpack.c.0.s8 %v3335
        %v3337 = vlaneseq
        %v3338 = vshrl.u32 %v3337, 7
        %v3339 = vsub.s32 %v3336, %v3338
        %v3340 = vrot.slane %v3333, %v3339
        %v3342 = vunpack.c.l.s4 1966171168
        %v3343 = vunpack.c.0.s8 %v3342
        %v3344 = vlaneseq
        %v3345 = vshrl.u32 %v3344, 7
        %v3346 = vsub.s32 %v3343, %v3345
        %v3347 = vrot.slane %v3340, %v3346
        %3348 = vrot.lane.b32.xlu0 %v3347, 64
        %v3349 = vpop.permute.xlu0 %3348
        %3351 = vst.msk [vmem:[#allocation4 + $0x1] sm:$0x1] %vm3262, %v3349
        %v3352 = vcombine.high %v3340, %v3340
        %v3354 = vunpack.c.l.s4 1966171168
        %v3355 = vunpack.c.0.s8 %v3354
        %v3356 = vlaneseq
        %v3357 = vshrl.u32 %v3356, 7
        %v3358 = vsub.s32 %v3355, %v3357
        %v3359 = vrot.slane %v3352, %v3358
        %3360 = vrot.lane.b32.xlu0 %v3359, 80
        %v3361 = vpop.permute.xlu0 %3360
        %3363 = vst.msk [vmem:[#allocation4 + $0x1] sm:$0x1] %vm3277, %v3361
        %v3364 = vcombine.high %v3347, %v3347
        %3365 = vrot.lane.b32.xlu0 %v3364, 96
        %v3366 = vpop.permute.xlu0 %3365
        %3368 = vst.msk [vmem:[#allocation4 + $0x1] sm:$0x1] %vm3285, %v3366
        %v3369 = vcombine.high %v3359, %v3359
        %3370 = vrot.lane.b32.xlu0 %v3369, 112
        %v3371 = vpop.permute.xlu0 %3370
        %3373 = vst.msk [vmem:[#allocation4 + $0x1] sm:$0x1] %vm3293, %v3371
        %3374 = vst.msk [vmem:[#allocation4 + $0x2] sm:$0x1] %vm3194, %v3188
        %v3377 = vunpack.c.l.s4 1966171168
        %v3378 = vunpack.c.0.s8 %v3377
        %v3379 = vlaneseq
        %v3380 = vshrl.u32 %v3379, 7
        %v3381 = vsub.s32 %v3378, %v3380
        %v3382 = vrot.slane %v3188, %v3381
        %v3383 = vcombine.high %v3382, %v3382
        %v3385 = vunpack.c.l.s4 1966171168
        %v3386 = vunpack.c.0.s8 %v3385
        %v3387 = vlaneseq
        %v3388 = vshrl.u32 %v3387, 7
        %v3389 = vsub.s32 %v3386, %v3388
        %v3390 = vrot.slane %v3382, %v3389
        %v3392 = vunpack.c.l.s4 1966171168
        %v3393 = vunpack.c.0.s8 %v3392
        %v3394 = vlaneseq
        %v3395 = vshrl.u32 %v3394, 7
        %v3396 = vsub.s32 %v3393, %v3395
        %v3397 = vrot.slane %v3383, %v3396
        %3398 = vrot.lane.b32.xlu0 %v3397, 16
        %v3399 = vpop.permute.xlu0 %3398
        %3401 = vst.msk [vmem:[#allocation4 + $0x2] sm:$0x1] %vm3224, %v3399
        %v3402 = vcombine.high %v3390, %v3390
        %3403 = vrot.lane.b32.xlu0 %v3402, 32
        %v3404 = vpop.permute.xlu0 %3403
        %3406 = vst.msk [vmem:[#allocation4 + $0x2] sm:$0x1] %vm3232, %v3404
        %v3407 = vcombine.high %v3397, %v3397
        %3408 = vrot.lane.b32.xlu0 %v3407, 48
        %v3409 = vpop.permute.xlu0 %3408
        %3411 = vst.msk [vmem:[#allocation4 + $0x2] sm:$0x1] %vm3240, %v3409
        %v3412 = vld [vmem:[#allocation4] sm:$0x7]
        %v3413 = vld [vmem:[%s6] sm:$0xff]
        %v3414 = vld [vmem:[%s6 + $0x8] sm:$0xff]
        %v3415 = vld [vmem:[%s6 + $0x10] sm:$0xff]
        %v3416 = vld [vmem:[%s6 + $0x18] sm:$0xff]
        %v3417 = vld [vmem:[%s6 + $0x20] sm:$0xff]
        %v3418 = vld [vmem:[%s6 + $0x28] sm:$0xff]
        %v3419 = vld [vmem:[%s6 + $0x30] sm:$0xff]
        %v3420 = vld [vmem:[%s6 + $0x38] sm:$0xff]
        %v3421 = vld [vmem:[%s6 + $0x40] sm:$0xff]
        %v3422 = vld [vmem:[%s6 + $0x48] sm:$0xff]
        %v3423 = vld [vmem:[%s6 + $0x50] sm:$0xff]
        %v3424 = vld [vmem:[%s6 + $0x58] sm:$0xff]
        %v3425 = vld [vmem:[%s6 + $0x60] sm:$0xff]
        %v3426 = vld [vmem:[%s6 + $0x68] sm:$0xff]
        %v3427 = vld [vmem:[%s6 + $0x70] sm:$0xff]
        %v3428 = vld [vmem:[%s6 + $0x78] sm:$0xff]
        %v3429 = vld [vmem:[%s6 + $0x80] sm:$0xff]
        %v3430 = vld [vmem:[%s6 + $0x88] sm:$0xff]
        %v3431 = vld [vmem:[%s6 + $0x90] sm:$0xff]
        %v3432 = vld [vmem:[%s6 + $0x98] sm:$0xff]
        %v3433 = vld [vmem:[%s6 + $0xa0] sm:$0xff]
        %v3434 = vld [vmem:[%s6 + $0xa8] sm:$0xff]
        %v3435 = vld [vmem:[%s6 + $0xb0] sm:$0xff]
        %v3436 = vld [vmem:[%s6 + $0xb8] sm:$0xff]
        %v3437 = vld [vmem:[%s6 + $0xc0] sm:$0xff]
        %v3438 = vld [vmem:[%s6 + $0xc8] sm:$0xff]
        %v3439 = vld [vmem:[%s6 + $0xd0] sm:$0xff]
        %v3440 = vld [vmem:[%s6 + $0xd8] sm:$0xff]
        %v3441 = vld [vmem:[%s6 + $0xe0] sm:$0xff]
        %v3442 = vld [vmem:[%s6 + $0xe8] sm:$0xff]
        %v3443 = vld [vmem:[%s6 + $0xf0] sm:$0xff]
        %v3444 = vld [vmem:[%s6 + $0xf8] sm:$0xff]
        %v3445 = vld [vmem:[%s6 + $0x100] sm:$0xff]
        %v3446 = vld [vmem:[%s6 + $0x108] sm:$0xff]
        %v3447 = vld [vmem:[%s6 + $0x110] sm:$0xff]
        %v3448 = vld [vmem:[%s6 + $0x118] sm:$0xff]
        %v3449 = vld [vmem:[%s6 + $0x120] sm:$0xff]
        %v3450 = vld [vmem:[%s6 + $0x128] sm:$0xff]
        %v3451 = vld [vmem:[%s6 + $0x130] sm:$0xff]
        %v3452 = vld [vmem:[%s6 + $0x138] sm:$0xff]
        %v3453 = vld [vmem:[%s7] sm:$0x1]
        %v3455 = vlaneseq
        %v3456 = vshrl.u32 %v3455, 7
        %v3457 = vsub.s32 0, %v3456
        %v3458 = vrot.slane %v3412, %v3457
        %v3459 = vlaneseq
        %v3460 = vshrl.u32 %v3459, 7
        %v3461 = vsub.s32 1, %v3460
        %v3462 = vrot.slane %v3412, %v3461
        %v3463 = vlaneseq
        %v3464 = vshrl.u32 %v3463, 7
        %v3465 = vsub.s32 2, %v3464
        %v3466 = vrot.slane %v3412, %v3465
        %v3469 = vsel %vm689, %v3466, 0
        %3471 = vmatprep.subr.mxu0 0.0
        %3472 = vmatpush1.msra.mxu0 %v3428
        %3473 = vmatprep.subr.mxu0 0.0
        %3474 = vmatpush1.msra.mxu0 %v3427
        %3475 = vmatprep.subr.mxu0 0.0
        %3476 = vmatpush1.msra.mxu0 %v3426
        %3477 = vmatprep.subr.mxu0 0.0
        %3478 = vmatpush1.msra.mxu0 %v3425
        %3479 = vmatprep.subr.mxu0 0.0
        %3480 = vmatpush1.msra.mxu0 %v3424
        %3481 = vmatprep.subr.mxu0 0.0
        %3482 = vmatpush1.msra.mxu0 %v3423
        %3483 = vmatprep.subr.mxu0 0.0
        %3484 = vmatpush1.msra.mxu0 %v3422
        %3485 = vmatprep.subr.mxu0 0.0
        %3486 = vmatpush1.msra.mxu0 %v3421
        %3487 = vmatprep.subr.mxu0 0.0
        %3488 = vmatpush1.msra.mxu0 %v3420
        %3489 = vmatprep.subr.mxu0 0.0
        %3490 = vmatpush1.msra.mxu0 %v3419
        %3491 = vmatprep.subr.mxu0 0.0
        %3492 = vmatpush1.msra.mxu0 %v3418
        %3493 = vmatprep.subr.mxu0 0.0
        %3494 = vmatpush1.msra.mxu0 %v3417
        %3495 = vmatprep.subr.mxu0 0.0
        %3496 = vmatpush1.msra.mxu0 %v3416
        %3497 = vmatprep.subr.mxu0 0.0
        %3498 = vmatpush1.msra.mxu0 %v3415
        %3499 = vmatprep.subr.mxu0 0.0
        %3500 = vmatpush1.msra.mxu0 %v3414
        %3501 = vmatprep.subr.mxu0 0.0
        %3502 = vmatpush1.msra.mxu0 %v3413
        %3503 = vmatprep.subr.mxu0 0.0
        %3504 = vmatpush2.msra.mxu0 %v3444
        %3505 = vmatprep.subr.mxu0 0.0
        %3506 = vmatpush2.msra.mxu0 %v3443
        %3507 = vmatprep.subr.mxu0 0.0
        %3508 = vmatpush2.msra.mxu0 %v3442
        %3509 = vmatprep.subr.mxu0 0.0
        %3510 = vmatpush2.msra.mxu0 %v3441
        %3511 = vmatprep.subr.mxu0 0.0
        %3512 = vmatpush2.msra.mxu0 %v3440
        %3513 = vmatprep.subr.mxu0 0.0
        %3514 = vmatpush2.msra.mxu0 %v3439
        %3515 = vmatprep.subr.mxu0 0.0
        %3516 = vmatpush2.msra.mxu0 %v3438
        %3517 = vmatprep.subr.mxu0 0.0
        %3518 = vmatpush2.msra.mxu0 %v3437
        %3519 = vmatprep.subr.mxu0 0.0
        %3520 = vmatpush2.msra.mxu0 %v3436
        %3521 = vmatprep.subr.mxu0 0.0
        %3522 = vmatpush2.msra.mxu0 %v3435
        %3523 = vmatprep.subr.mxu0 0.0
        %3524 = vmatpush2.msra.mxu0 %v3434
        %3525 = vmatprep.subr.mxu0 0.0
        %3526 = vmatpush2.msra.mxu0 %v3433
        %3527 = vmatprep.subr.mxu0 0.0
        %3528 = vmatpush2.msra.mxu0 %v3432
        %3529 = vmatprep.subr.mxu0 0.0
        %3530 = vmatpush2.msra.mxu0 %v3431
        %3531 = vmatprep.subr.mxu0 0.0
        %3532 = vmatpush2.msra.mxu0 %v3430
        %3533 = vmatprep.subr.mxu0 0.0
        %3534 = vmatpush2.msra.mxu0 %v3429
        %3535 = vmatprep.mubr.f32.mxu0 %v3462
        %3536 = vmatmul.mubr.f32.gmra.mxu0 %v3458
        %v3537 = vpop.f32.mrf.mxu0
        %v3538 = vadd.f32 %v3453, %v3537
        %v3539 = vpop.f32.mrf.mxu0
        %3540 = vdwg.mxu0
        %3541 = vmatprep.subr.mxu0 0.0
        %3542 = vmatpush1.msra.mxu0 0.0
        %3543 = vmatprep.subr.mxu0 0.0
        %3544 = vmatpush1.msra.mxu0 0.0
        %3545 = vmatprep.subr.mxu0 0.0
        %3546 = vmatpush1.msra.mxu0 0.0
        %3547 = vmatprep.subr.mxu0 0.0
        %3548 = vmatpush1.msra.mxu0 0.0
        %3549 = vmatprep.subr.mxu0 0.0
        %3550 = vmatpush1.msra.mxu0 0.0
        %3551 = vmatprep.subr.mxu0 0.0
        %3552 = vmatpush1.msra.mxu0 0.0
        %3553 = vmatprep.subr.mxu0 0.0
        %3554 = vmatpush1.msra.mxu0 0.0
        %3555 = vmatprep.subr.mxu0 0.0
        %3556 = vmatpush1.msra.mxu0 0.0
        %3557 = vmatprep.subr.mxu0 0.0
        %3558 = vmatpush1.msra.mxu0 %v3452
        %3559 = vmatprep.subr.mxu0 0.0
        %3560 = vmatpush1.msra.mxu0 %v3451
        %3561 = vmatprep.subr.mxu0 0.0
        %3562 = vmatpush1.msra.mxu0 %v3450
        %3563 = vmatprep.subr.mxu0 0.0
        %3564 = vmatpush1.msra.mxu0 %v3449
        %3565 = vmatprep.subr.mxu0 0.0
        %3566 = vmatpush1.msra.mxu0 %v3448
        %3567 = vmatprep.subr.mxu0 0.0
        %3568 = vmatpush1.msra.mxu0 %v3447
        %3569 = vmatprep.subr.mxu0 0.0
        %3570 = vmatpush1.msra.mxu0 %v3446
        %3571 = vmatprep.subr.mxu0 0.0
        %3572 = vmatpush1.msra.mxu0 %v3445
        %3573 = vmatprep.subr.mxu0 0.0
        %3574 = vmatpush2.msra.mxu0 0.0
        %3575 = vmatprep.subr.mxu0 0.0
        %3576 = vmatpush2.msra.mxu0 0.0
        %3577 = vmatprep.subr.mxu0 0.0
        %3578 = vmatpush2.msra.mxu0 0.0
        %3579 = vmatprep.subr.mxu0 0.0
        %3580 = vmatpush2.msra.mxu0 0.0
        %3581 = vmatprep.subr.mxu0 0.0
        %3582 = vmatpush2.msra.mxu0 0.0
        %3583 = vmatprep.subr.mxu0 0.0
        %3584 = vmatpush2.msra.mxu0 0.0
        %3585 = vmatprep.subr.mxu0 0.0
        %3586 = vmatpush2.msra.mxu0 0.0
        %3587 = vmatprep.subr.mxu0 0.0
        %3588 = vmatpush2.msra.mxu0 0.0
        %3589 = vmatprep.subr.mxu0 0.0
        %3590 = vmatpush2.msra.mxu0 0.0
        %3591 = vmatprep.subr.mxu0 0.0
        %3592 = vmatpush2.msra.mxu0 0.0
        %3593 = vmatprep.subr.mxu0 0.0
        %3594 = vmatpush2.msra.mxu0 0.0
        %3595 = vmatprep.subr.mxu0 0.0
        %3596 = vmatpush2.msra.mxu0 0.0
        %3597 = vmatprep.subr.mxu0 0.0
        %3598 = vmatpush2.msra.mxu0 0.0
        %3599 = vmatprep.subr.mxu0 0.0
        %3600 = vmatpush2.msra.mxu0 0.0
        %3601 = vmatprep.subr.mxu0 0.0
        %3602 = vmatpush2.msra.mxu0 0.0
        %3603 = vmatprep.subr.mxu0 0.0
        %3604 = vmatpush2.msra.mxu0 0.0
        %3605 = vmatprep.mubr.f32.mxu0 0.0
        %3606 = vmatmul.mubr.f32.gmra.mxu0 %v3469
        %v3607 = vpop.f32.mrf.mxu0
        %v3608 = vadd.f32 %v3538, %v3607
        %v3609 = vpop.f32.mrf.mxu0
        %3610 = vdwg.mxu0
        %v3611 = vmax.f32 %v3608, 0.0
        %v3612 = vld [vmem:[%s8] sm:$0xff]
        %v3613 = vld [vmem:[%s8 + $0x8] sm:$0xff]
        %v3614 = vld [vmem:[%s8 + $0x10] sm:$0xff]
        %v3615 = vld [vmem:[%s8 + $0x18] sm:$0xff]
        %v3616 = vld [vmem:[%s8 + $0x20] sm:$0xff]
        %v3617 = vld [vmem:[%s8 + $0x28] sm:$0xff]
        %v3618 = vld [vmem:[%s8 + $0x30] sm:$0x3]
        %v3619 = vld [vmem:[%s9] sm:$0x1]
        %vm3620 = vcmask 408576
        %v3622 = vsel %vm3620, %v3611, 0
        %vm3624 = vcmask 1041408
        %v3626 = vsel %vm3624, %v3618, 0
        %3628 = vmatprep.subr.mxu0 0.0
        %3629 = vmatpush1.msra.mxu0 0.0
        %3630 = vmatprep.subr.mxu0 0.0
        %3631 = vmatpush1.msra.mxu0 0.0
        %3632 = vmatprep.subr.mxu0 0.0
        %3633 = vmatpush1.msra.mxu0 0.0
        %3634 = vmatprep.subr.mxu0 0.0
        %3635 = vmatpush1.msra.mxu0 0.0
        %3636 = vmatprep.subr.mxu0 0.0
        %3637 = vmatpush1.msra.mxu0 0.0
        %3638 = vmatprep.subr.mxu0 0.0
        %3639 = vmatpush1.msra.mxu0 0.0
        %3640 = vmatprep.subr.mxu0 0.0
        %3641 = vmatpush1.msra.mxu0 0.0
        %3642 = vmatprep.subr.mxu0 0.0
        %3643 = vmatpush1.msra.mxu0 0.0
        %3644 = vmatprep.subr.mxu0 0.0
        %3645 = vmatpush1.msra.mxu0 0.0
        %3646 = vmatprep.subr.mxu0 0.0
        %3647 = vmatpush1.msra.mxu0 %v3626
        %3648 = vmatprep.subr.mxu0 0.0
        %3649 = vmatpush1.msra.mxu0 %v3617
        %3650 = vmatprep.subr.mxu0 0.0
        %3651 = vmatpush1.msra.mxu0 %v3616
        %3652 = vmatprep.subr.mxu0 0.0
        %3653 = vmatpush1.msra.mxu0 %v3615
        %3654 = vmatprep.subr.mxu0 0.0
        %3655 = vmatpush1.msra.mxu0 %v3614
        %3656 = vmatprep.subr.mxu0 0.0
        %3657 = vmatpush1.msra.mxu0 %v3613
        %3658 = vmatprep.subr.mxu0 0.0
        %3659 = vmatpush1.msra.mxu0 %v3612
        %3660 = vmatprep.subr.mxu0 0.0
        %3661 = vmatpush2.msra.mxu0 0.0
        %3662 = vmatprep.subr.mxu0 0.0
        %3663 = vmatpush2.msra.mxu0 0.0
        %3664 = vmatprep.subr.mxu0 0.0
        %3665 = vmatpush2.msra.mxu0 0.0
        %3666 = vmatprep.subr.mxu0 0.0
        %3667 = vmatpush2.msra.mxu0 0.0
        %3668 = vmatprep.subr.mxu0 0.0
        %3669 = vmatpush2.msra.mxu0 0.0
        %3670 = vmatprep.subr.mxu0 0.0
        %3671 = vmatpush2.msra.mxu0 0.0
        %3672 = vmatprep.subr.mxu0 0.0
        %3673 = vmatpush2.msra.mxu0 0.0
        %3674 = vmatprep.subr.mxu0 0.0
        %3675 = vmatpush2.msra.mxu0 0.0
        %3676 = vmatprep.subr.mxu0 0.0
        %3677 = vmatpush2.msra.mxu0 0.0
        %3678 = vmatprep.subr.mxu0 0.0
        %3679 = vmatpush2.msra.mxu0 0.0
        %3680 = vmatprep.subr.mxu0 0.0
        %3681 = vmatpush2.msra.mxu0 0.0
        %3682 = vmatprep.subr.mxu0 0.0
        %3683 = vmatpush2.msra.mxu0 0.0
        %3684 = vmatprep.subr.mxu0 0.0
        %3685 = vmatpush2.msra.mxu0 0.0
        %3686 = vmatprep.subr.mxu0 0.0
        %3687 = vmatpush2.msra.mxu0 0.0
        %3688 = vmatprep.subr.mxu0 0.0
        %3689 = vmatpush2.msra.mxu0 0.0
        %3690 = vmatprep.subr.mxu0 0.0
        %3691 = vmatpush2.msra.mxu0 0.0
        %3692 = vmatprep.mubr.f32.mxu0 0.0
        %3693 = vmatmul.mubr.f32.gmra.mxu0 %v3622
        %v3694 = vpop.f32.mrf.mxu0
        %v3695 = vadd.f32 %v3619, %v3694
        %v3696 = vpop.f32.mrf.mxu0
        %3697 = vdwg.mxu0
        %vm3698 = vcmask 73728
        %v3699 = vsel %vm3698, %v3695, -inf
        %3700 = vmax.xlane.f32.xlu0 %v3699
        %v3701 = vpop.xlane.xlu0 %3700
        %v3702 = vsub.f32 %v3695, %v3701
        %v3703 = vmul.f32 %v3702, 1.442695
        %v3704 = vpow.pop %v3703
        %v3705 = vsel %vm3698, %v3704, 0.0
        %3706 = vadd.xlane.f32.xlu0 %v3705
        %v3707 = vpop.xlane.xlu0 %3706
        %v3708 = vlog2.pop %v3707
        %v3709 = vmul.f32 %v3708, 0.6931472
        %v3710 = vsub.f32 %v3702, %v3709
        %3711 = vst.msk [vmem:[%s351] sm:$0x1] %vm3698, %v3710
        %s3712 = sand.u32 %s247, 1
        %s3713 = scalar_lea.sflag [#allocation6], %s3712
        %s3714 = sand.u32 %s247, 1
        %s3715 = scalar_lea.vmem [#allocation5], %s3714
        // Predicated region
        $region61: #{net_forward.1} parent=59 // pred_check
          %p3716 = pneg %p257
        $region62: #{net_forward.1} parent=59 // pred_check_branch
          %3718 = sbr.rel (%p3716) target = $region64
        $region63: #{net_forward.1} parent=59 // pred_region
          %s3720 = ssub.s32 16, 16
          %3721 = vsyncadd %s3713, %s3720
          %s3722 = smul.addr %s24, 16
          %s3723 = scalar_lea.hbm %s10, %s3722
          %s3725 = sshll.u32 %s3715, 4
          %s3726 = int_to_ptr.vmem [resolvable:$true] %s3725
          %3728 = dma.vmem_to_hbm [thread:$0]  %s3726, 16, %s3723, %s3713
        $region64: #{net_forward.1} parent=59 // pred_fallthru
          _
      $region60: #{net_forward.1} parent=5 // pred_fallthru
        _
      %p3729 = scmp.le.s32.totalorder 2, %s19
      // Predicated region
      $region65: #{net_forward.1} parent=5 // pred_check
        %p3730 = pneg %p3729
      $region66: #{net_forward.1} parent=5 // pred_check_branch
        %3732 = sbr.rel (%p3730) target = $region68
      $region67: #{net_forward.1} parent=5 // pred_region
        %s3733 = ssub.s32 %s19, 2
        // Predicated region
        $region69: #{net_forward.1} parent=67 // pred_check
          %p3734 = pneg %p263
        $region70: #{net_forward.1} parent=67 // pred_check_branch
          %3736 = sbr.rel (%p3734) target = $region72
        $region71: #{net_forward.1} parent=67 // pred_region
          %s3737 = sand.u32 %s248, 1
          %s3738 = scalar_lea.sflag [#allocation6], %s3737
          %s3739 = sand.u32 %s248, 1
          %s3740 = scalar_lea.vmem [#allocation5], %s3739
          %3741 = dma.done %s3738, 16
        $region72: #{net_forward.1} parent=67 // pred_fallthru
          _
      $region68: #{net_forward.1} parent=5 // pred_fallthru
        _
    $region6: #{net_forward.1} parent=1 // loop_footer
      %s23 = sadd.s32 1, %s19
    $region7: #{net_forward.1} parent=1 // loop_footer_branch
      %18 = sbr.rel target = $region3
    $region8: #{net_forward.1} parent=1 // loop_exit
      _
    %3742 = vsyncpa [#allocation6], 1
    %s3743 = scalar_lea.sflag [#allocation6], 1
    %3744 = vsyncpa %s3743, 1

</llo_original>
